<compile_context>
chip_gen: v7x
topology: tpu7x:2x2x1
jax: 0.10.0
libtpu: 0.0.40
codegen_flags: <defaults>
</compile_context>

<pallas_src>
import functools

import jax
import jax.numpy as jnp
import numpy as np
from jax.experimental import pallas as pl
from jax.experimental.pallas import tpu as pltpu

# ---- model dimensions (match the torch module) ----
VOCAB = 100        # synthetic vocab for the embedding matrix
EMB = 50           # embedding dim == LSTM input_size
HID = 30           # LSTM hidden_size
FC1_OUT = 50
FC2_OUT = 6

# ---- padded / packed layout constants ----
HPAD = 32              # per-direction hidden, padded to 32 lanes
SW = 2 * HPAD          # 64  : packed state width  [fwd 0:30 | pad | bwd 32:62 | pad]
GW = 2 * HPAD          # 64  : per-gate column block (fwd + bwd)
NG = 4 * GW            # 256 : gate columns, order [i | f | g | o]
EMBP = 64              # embedding dim padded 50 -> 64
XCATW = 2 * EMBP       # 128 : kernel input rows carry [x(t) | x(T-1-t)]
FCW = 128              # padded fc width


# ----------------------------------------------------------------------------------
# Pallas kernel
# ----------------------------------------------------------------------------------
def _lstm_kernel(x_ref, w_ref, fc_ref, b_ref, out_ref, a_scr, *, B, T):
    """x_ref  : (T*B, 128) f32  rows are time-major; cols 0:64 = x(t), 64:128 = x(T-1-t)
       w_ref  : (384, 256) f32  [W0cat(128) | Whh0(64) | W1cat(128) | Whh1(64)]
       fc_ref : (192, 128) f32  [fc1(64x128) | fc2(128x128)]
       b_ref  : (4, 256)   f32  [b0 | b1 | fc1_b | fc2_b]
       out_ref: (B, 128)   f32  sigmoid logits, real cols 0:6
       a_scr  : (T*B, 128) f32  layer-0 outputs, cols 0:64 = A[t], 64:128 = A_rev[t]
    """
    f32 = jnp.float32

    b0 = b_ref[0:1, :]
    b1 = b_ref[1:2, :]
    bf1 = b_ref[2:3, 0:FCW]
    bf2 = b_ref[3:4, 0:FCW]

    def cell(gate_in, h, c, whh):
        # gates: (B, 256) = [i | f | g | o], each 64 wide = [fwd 32 | bwd 32].
        gates = gate_in + jnp.dot(h, whh, preferred_element_type=f32)
        sg = jax.nn.sigmoid(gates)                     # single wide EUP pass
        i_g = sg[:, 0 * GW:1 * GW]
        f_g = sg[:, 1 * GW:2 * GW]
        g_g = 2.0 * sg[:, 2 * GW:3 * GW] - 1.0         # tanh(x)=2*sig(2x)-1; g cols pre-scaled by 2
        o_g = sg[:, 3 * GW:4 * GW]
        c = f_g * c + i_g * g_g
        h = o_g * (2.0 * jax.nn.sigmoid(2.0 * c) - 1.0)  # tanh(c) via sigmoid (2nd EUP pass)
        return h, c

    # ---------------- layer 0 (fwd + bwd fused) ----------------
    # Bulk input projection for BOTH directions; time reversal for the bwd half is already
    # baked into cols 64:128 of x_ref, so row block t is exactly the gate input of step t.
    xg0 = jnp.dot(x_ref[...], w_ref[0:XCATW, :], preferred_element_type=f32) + b0   # (T*B, 256)
    whh0 = w_ref[XCATW:XCATW + SW, :]

    h = jnp.zeros((B, SW), f32)
    c = jnp.zeros((B, SW), f32)
    for t in range(T):
        h, c = cell(xg0[t * B:(t + 1) * B, :], h, c, whh0)
        r = T - 1 - t
        # A[t]     = [h0_f(t)     | h0_b(T-1-t)]   (this step's packed state)
        # A_rev[r] = [h0_f(T-1-r) | h0_b(r)    ]   (same value, stored at the mirrored row)
        a_scr[t * B:(t + 1) * B, 0:SW] = h
        a_scr[r * B:(r + 1) * B, SW:2 * SW] = h

    # ---------------- layer 1 (fwd + bwd fused) ----------------
    base = XCATW + SW                                     # 192
    xg1 = jnp.dot(a_scr[...], w_ref[base:base + 2 * SW, :],
                  preferred_element_type=f32) + b1        # (T*B, 256)
    whh1 = w_ref[base + 2 * SW:base + 3 * SW, :]

    h = jnp.zeros((B, SW), f32)
    c = jnp.zeros((B, SW), f32)
    m = jnp.full((B, SW), -jnp.inf, f32)
    for t in range(T):
        h, c = cell(xg1[t * B:(t + 1) * B, :], h, c, whh1)
        m = jnp.maximum(m, h)                             # max-over-time fused into the loop

    # ---------------- fc1 -> ReLU -> fc2 -> sigmoid ----------------
    h1 = jnp.maximum(jnp.dot(m, fc_ref[0:SW, :], preferred_element_type=f32) + bf1, 0.0)
    h2 = jnp.dot(h1, fc_ref[SW:SW + FCW, :], preferred_element_type=f32) + bf2
    out_ref[...] = jax.nn.sigmoid(h2)


# ----------------------------------------------------------------------------------
# Parameter packing (done once, outside the kernel / outside jit)
# ----------------------------------------------------------------------------------
def pack_params(params):
    """Repack PyTorch-layout params into pre-transposed, zero-padded, lane-dense f32 slabs."""
    lstm = {k: np.asarray(v, np.float32) for k, v in params["lstm"].items()}
    H = HID

    def place_w(mat, w_t, row0, dir_off):
        # w_t: (D, 4H) input-major; gate gi -> columns [gi*GW + dir_off, +H)
        D = w_t.shape[0]
        for gi in range(4):
            mat[row0:row0 + D, gi * GW + dir_off: gi * GW + dir_off + H] = w_t[:, gi * H:(gi + 1) * H]

    def place_b(vec, b, dir_off):
        for gi in range(4):
            vec[gi * GW + dir_off: gi * GW + dir_off + H] = b[gi * H:(gi + 1) * H]

    # layer 0 input->gates: rows 0:64 act on x(t) (fwd cols), rows 64:128 on x(T-1-t) (bwd cols)
    w0cat = np.zeros((XCATW, NG), np.float32)
    place_w(w0cat, lstm["w_ih_l0f"].T, 0, 0)
    place_w(w0cat, lstm["w_ih_l0b"].T, EMBP, HPAD)

    # recurrent weights: block structure [fwd h -> fwd gates ; bwd h -> bwd gates]
    def make_whh(wf, wb):
        mat = np.zeros((SW, NG), np.float32)
        place_w(mat, wf.T, 0, 0)
        place_w(mat, wb.T, HPAD, HPAD)
        return mat

    whh0 = make_whh(lstm["w_hh_l0f"], lstm["w_hh_l0b"])
    whh1 = make_whh(lstm["w_hh_l1f"], lstm["w_hh_l1b"])

    # layer 1 input->gates acting on scratch rows [A | A_rev]:
    #   A[t]     cols 0:32 = h0_f(t),     cols 32:64 = h0_b(T-1-t)
    #   A_rev[t] cols 0:32 = h0_f(T-1-t), cols 32:64 = h0_b(t)
    wf1, wb1 = lstm["w_ih_l1f"], lstm["w_ih_l1b"]          # (4H, 2H) each
    w1cat = np.zeros((2 * SW, NG), np.float32)
    place_w(w1cat, wf1[:, 0:H].T, 0, 0)                    # h0_f(t)     -> fwd gates
    place_w(w1cat, wb1[:, H:2 * H].T, HPAD, HPAD)          # h0_b(T-1-t) -> bwd gates
    place_w(w1cat, wb1[:, 0:H].T, SW, HPAD)                # h0_f(T-1-t) -> bwd gates
    place_w(w1cat, wf1[:, H:2 * H].T, SW + HPAD, 0)        # h0_b(t)     -> fwd gates

    # biases (b_ih + b_hh already folded in init_params)
    b0 = np.zeros((NG,), np.float32)
    place_b(b0, lstm["b_l0f"].reshape(-1), 0)
    place_b(b0, lstm["b_l0b"].reshape(-1), HPAD)
    b1 = np.zeros((NG,), np.float32)
    place_b(b1, lstm["b_l1f"].reshape(-1), 0)
    place_b(b1, lstm["b_l1b"].reshape(-1), HPAD)

    # tanh(x) = 2*sigmoid(2x) - 1  ->  pre-scale g-gate columns by 2 (kernel does one wide sigmoid)
    gsl = slice(2 * GW, 3 * GW)
    for arr in (w0cat, whh0, w1cat, whh1):
        arr[:, gsl] *= 2.0
    b0[gsl] *= 2.0
    b1[gsl] *= 2.0

    w_slab = np.concatenate([w0cat, whh0, w1cat, whh1], axis=0)        # (384, 256)

    # fc layers, pre-transposed + padded
    fc1_w = np.asarray(params["fc1_w"], np.float32)
    fc1_b = np.asarray(params["fc1_b"], np.float32).reshape(-1)
    fc2_w = np.asarray(params["fc2_w"], np.float32)
    fc2_b = np.asarray(params["fc2_b"], np.float32).reshape(-1)
    fc1p = np.zeros((SW, FCW), np.float32)
    fc1p[0:H, 0:FC1_OUT] = fc1_w[:, 0:H].T                 # fwd half of the max state
    fc1p[HPAD:HPAD + H, 0:FC1_OUT] = fc1_w[:, H:2 * H].T   # bwd half
    fc2p = np.zeros((FCW, FCW), np.float32)
    fc2p[0:FC1_OUT, 0:FC2_OUT] = fc2_w.T
    fc_slab = np.concatenate([fc1p, fc2p], axis=0)         # (192, 128)

    b_slab = np.zeros((4, NG), np.float32)
    b_slab[0] = b0
    b_slab[1] = b1
    b_slab[2, 0:FC1_OUT] = fc1_b
    b_slab[3, 0:FC2_OUT] = fc2_b

    return {
        "embedding": params["embedding"],
        "w_slab": jnp.asarray(w_slab),
        "fc_slab": jnp.asarray(fc_slab),
        "b_slab": jnp.asarray(b_slab),
    }


# ----------------------------------------------------------------------------------
# Forward wrapper
# ----------------------------------------------------------------------------------
@jax.jit
def lstm_model_forward(token_ids, packed):
    # Embedding lookup (frozen, pre-trained in the original) — plain-JAX glue gather.
    emb = packed["embedding"][token_ids].astype(jnp.float32)      # (B, T, EMB)
    B, T, E = emb.shape

    x = jnp.transpose(emb, (1, 0, 2))                             # (T, B, EMB) time-major
    x = jnp.pad(x, ((0, 0), (0, 0), (0, EMBP - E)))               # lane-pad 50 -> 64
    xcat = jnp.concatenate([x, x[::-1]], axis=-1)                 # [x(t) | x(T-1-t)]
    xcat = xcat.reshape(T * B, XCATW)                             # (T*B, 128)

    kernel = functools.partial(_lstm_kernel, B=B, T=T)
    out = pl.pallas_call(
        kernel,
        out_shape=jax.ShapeDtypeStruct((B, FCW), jnp.float32),
        in_specs=[pl.BlockSpec(memory_space=pltpu.MemorySpace.VMEM)] * 4,
        out_specs=pl.BlockSpec(memory_space=pltpu.MemorySpace.VMEM),
        scratch_shapes=[pltpu.VMEM((T * B, 2 * SW), jnp.float32)],
    )(xcat, packed["w_slab"], packed["fc_slab"], packed["b_slab"])
    return out[:, :FC2_OUT]


# ----------------------------------------------------------------------------------
# Parameter init (PyTorch-style) and a pure-JAX reference for self-checking
# ----------------------------------------------------------------------------------
def init_params(key):
    """Deterministic synthetic parameters (PyTorch-style uniform init)."""
    # TODO(synk): original model loads ./embedding_matrix.dat via pickle; replaced with a
    # deterministic random embedding matrix of shape (VOCAB, EMB).
    keys = iter(jax.random.split(key, 64))

    def unif(shape, bound):
        return jax.random.uniform(next(keys), shape, jnp.float32, -bound, bound)

    params = {"embedding": unif((VOCAB, EMB), 1.0)}

    k_lstm = 1.0 / jnp.sqrt(jnp.float32(HID))
    lstm = {}
    for layer in (0, 1):
        d_in = EMB if layer == 0 else 2 * HID
        for direction in ("f", "b"):
            name = f"l{layer}{direction}"
            lstm[f"w_ih_{name}"] = unif((4 * HID, d_in), k_lstm)
            lstm[f"w_hh_{name}"] = unif((4 * HID, HID), k_lstm)
            b_ih = unif((4 * HID,), k_lstm)
            b_hh = unif((4 * HID,), k_lstm)
            lstm[f"b_{name}"] = (b_ih + b_hh).reshape(1, 4 * HID)
    params["lstm"] = lstm

    k1 = 1.0 / jnp.sqrt(jnp.float32(2 * HID))
    params["fc1_w"] = unif((FC1_OUT, 2 * HID), k1)
    params["fc1_b"] = unif((FC1_OUT,), k1).reshape(1, FC1_OUT)
    k2 = 1.0 / jnp.sqrt(jnp.float32(FC1_OUT))
    params["fc2_w"] = unif((FC2_OUT, FC1_OUT), k2)
    params["fc2_b"] = unif((FC2_OUT,), k2).reshape(1, FC2_OUT)
    return params


def reference_forward(token_ids, params):
    """Straightforward plain-JAX port of the PyTorch forward (for tolerance checking)."""
    emb = params["embedding"][token_ids].astype(jnp.float32)
    lstm = params["lstm"]

    def run_dir(xs, w_ih, w_hh, b, reverse):
        B, T, _ = xs.shape
        h = jnp.zeros((B, HID), jnp.float32)
        c = jnp.zeros((B, HID), jnp.float32)
        outs = [None] * T
        order = range(T - 1, -1, -1) if reverse else range(T)
        for t in order:
            g = xs[:, t, :] @ w_ih.T + h @ w_hh.T + b
            i = jax.nn.sigmoid(g[:, 0 * HID:1 * HID])
            f = jax.nn.sigmoid(g[:, 1 * HID:2 * HID])
            gg = jnp.tanh(g[:, 2 * HID:3 * HID])
            o = jax.nn.sigmoid(g[:, 3 * HID:4 * HID])
            c = f * c + i * gg
            h = o * jnp.tanh(c)
            outs[t] = h
        return jnp.stack(outs, axis=1)

    f0 = run_dir(emb, lstm["w_ih_l0f"], lstm["w_hh_l0f"], lstm["b_l0f"], False)
    b0 = run_dir(emb, lstm["w_ih_l0b"], lstm["w_hh_l0b"], lstm["b_l0b"], True)
    x0 = jnp.concatenate([f0, b0], axis=-1)
    f1 = run_dir(x0, lstm["w_ih_l1f"], lstm["w_hh_l1f"], lstm["b_l1f"], False)
    b1 = run_dir(x0, lstm["w_ih_l1b"], lstm["w_hh_l1b"], lstm["b_l1b"], True)
    x1 = jnp.concatenate([f1, b1], axis=-1)
    m = jnp.max(x1, axis=1)
    h1 = jax.nn.relu(m @ params["fc1_w"].T + params["fc1_b"])
    h2 = h1 @ params["fc2_w"].T + params["fc2_b"]
    return jax.nn.sigmoid(h2)


if __name__ == "__main__":
    key = jax.random.PRNGKey(0)
    params = init_params(key)
    packed = pack_params(params)

    B, T = 2, 8
    tokens = jax.random.randint(jax.random.fold_in(key, 123), (B, T), 0, VOCAB, dtype=jnp.int32)

    out = jax.block_until_ready(lstm_model_forward(tokens, packed))
    assert out.shape == (B, FC2_OUT) and out.dtype == jnp.float32
    assert bool(jnp.all((out >= 0.0) & (out <= 1.0)))

    ref = jax.block_until_ready(jax.jit(reference_forward)(tokens, params))
    assert bool(jnp.allclose(out, ref, rtol=0.0, atol=5e-3)), (out, ref)

    print("KERNEL_OK")
</pallas_src>

<mosaic_0001>
module attributes {stable_mosaic.version = 11 : i64} {
  func.func @_lstm_kernel(%arg0: memref<16x128xf32, #tpu.memory_space<vmem>>, %arg1: memref<384x256xf32, #tpu.memory_space<vmem>>, %arg2: memref<192x128xf32, #tpu.memory_space<vmem>>, %arg3: memref<4x256xf32, #tpu.memory_space<vmem>>, %arg4: memref<2x128xf32, #tpu.memory_space<vmem>>, %arg5: memref<16x128xf32, #tpu.memory_space<vmem>>) attributes {dimension_semantics = [], scalar_prefetch = 0 : i64, scratch_operands = 1 : i64, tpu.core_type = #tpu.core_type<tc>} {
    %c0 = arith.constant 0 : index
    %c0_0 = arith.constant 0 : index
    %0 = vector.load %arg3[%c0, %c0_0] : memref<4x256xf32, #tpu.memory_space<vmem>>, vector<1x256xf32>
    %c1 = arith.constant 1 : index
    %c0_1 = arith.constant 0 : index
    %1 = vector.load %arg3[%c1, %c0_1] : memref<4x256xf32, #tpu.memory_space<vmem>>, vector<1x256xf32>
    %c2 = arith.constant 2 : index
    %c0_2 = arith.constant 0 : index
    %2 = vector.load %arg3[%c2, %c0_2] : memref<4x256xf32, #tpu.memory_space<vmem>>, vector<1x128xf32>
    %c3 = arith.constant 3 : index
    %c0_3 = arith.constant 0 : index
    %3 = vector.load %arg3[%c3, %c0_3] : memref<4x256xf32, #tpu.memory_space<vmem>>, vector<1x128xf32>
    %c0_4 = arith.constant 0 : index
    %c0_5 = arith.constant 0 : index
    %4 = vector.load %arg0[%c0_4, %c0_5] : memref<16x128xf32, #tpu.memory_space<vmem>>, vector<16x128xf32>
    %c0_6 = arith.constant 0 : index
    %c0_7 = arith.constant 0 : index
    %5 = vector.load %arg1[%c0_6, %c0_7] : memref<384x256xf32, #tpu.memory_space<vmem>>, vector<128x256xf32>
    %cst = arith.constant dense<0.000000e+00> : vector<16x256xf32>
    %6 = tpu.matmul %4, %5, %cst {dimension_numbers = #tpu.dot_dimension_numbers<[1], [0], [0], [1], [0, 0, 1, 1], [], []>} : vector<16x128xf32>, vector<128x256xf32>, vector<16x256xf32> -> vector<16x256xf32>
    %7 = vector.broadcast %0 : vector<1x256xf32> to vector<16x256xf32>
    %8 = arith.addf %6, %7 : vector<16x256xf32>
    %c128 = arith.constant 128 : index
    %c0_8 = arith.constant 0 : index
    %9 = vector.load %arg1[%c128, %c0_8] : memref<384x256xf32, #tpu.memory_space<vmem>>, vector<64x256xf32>
    %cst_9 = arith.constant 0.000000e+00 : f32
    %10 = vector.broadcast %cst_9 : f32 to vector<2x64xf32>
    %cst_10 = arith.constant 0.000000e+00 : f32
    %11 = vector.broadcast %cst_10 : f32 to vector<2x64xf32>
    %12 = vector.extract_strided_slice %8 {offsets = [0, 0], sizes = [2, 256], strides = [1, 1]} : vector<16x256xf32> to vector<2x256xf32>
    %cst_11 = arith.constant dense<0.000000e+00> : vector<2x256xf32>
    %13 = tpu.matmul %10, %9, %cst_11 {dimension_numbers = #tpu.dot_dimension_numbers<[1], [0], [0], [1], [0, 0, 1, 1], [], []>} : vector<2x64xf32>, vector<64x256xf32>, vector<2x256xf32> -> vector<2x256xf32>
    %14 = arith.addf %12, %13 : vector<2x256xf32>
    %15 = arith.negf %14 : vector<2x256xf32>
    %16 = math.exp %15 : vector<2x256xf32>
    %cst_12 = arith.constant 1.000000e+00 : f32
    %17 = vector.broadcast %cst_12 : f32 to vector<2x256xf32>
    %18 = arith.addf %17, %16 : vector<2x256xf32>
    %19 = arith.divf %17, %18 : vector<2x256xf32>
    %20 = vector.extract_strided_slice %19 {offsets = [0, 0], sizes = [2, 64], strides = [1, 1]} : vector<2x256xf32> to vector<2x64xf32>
    %21 = vector.extract_strided_slice %19 {offsets = [0, 64], sizes = [2, 64], strides = [1, 1]} : vector<2x256xf32> to vector<2x64xf32>
    %22 = vector.extract_strided_slice %19 {offsets = [0, 128], sizes = [2, 64], strides = [1, 1]} : vector<2x256xf32> to vector<2x64xf32>
    %cst_13 = arith.constant 2.000000e+00 : f32
    %23 = vector.broadcast %cst_13 : f32 to vector<2x64xf32>
    %24 = arith.mulf %23, %22 : vector<2x64xf32>
    %cst_14 = arith.constant 1.000000e+00 : f32
    %25 = vector.broadcast %cst_14 : f32 to vector<2x64xf32>
    %26 = arith.subf %24, %25 : vector<2x64xf32>
    %27 = vector.extract_strided_slice %19 {offsets = [0, 192], sizes = [2, 64], strides = [1, 1]} : vector<2x256xf32> to vector<2x64xf32>
    %28 = arith.mulf %21, %11 : vector<2x64xf32>
    %29 = arith.mulf %20, %26 : vector<2x64xf32>
    %30 = arith.addf %28, %29 : vector<2x64xf32>
    %cst_15 = arith.constant 2.000000e+00 : f32
    %31 = vector.broadcast %cst_15 : f32 to vector<2x64xf32>
    %32 = arith.mulf %31, %30 : vector<2x64xf32>
    %33 = arith.negf %32 : vector<2x64xf32>
    %34 = math.exp %33 : vector<2x64xf32>
    %cst_16 = arith.constant 1.000000e+00 : f32
    %35 = vector.broadcast %cst_16 : f32 to vector<2x64xf32>
    %36 = arith.addf %35, %34 : vector<2x64xf32>
    %37 = arith.divf %35, %36 : vector<2x64xf32>
    %cst_17 = arith.constant 2.000000e+00 : f32
    %38 = vector.broadcast %cst_17 : f32 to vector<2x64xf32>
    %39 = arith.mulf %38, %37 : vector<2x64xf32>
    %cst_18 = arith.constant 1.000000e+00 : f32
    %40 = vector.broadcast %cst_18 : f32 to vector<2x64xf32>
    %41 = arith.subf %39, %40 : vector<2x64xf32>
    %42 = arith.mulf %27, %41 : vector<2x64xf32>
    %c0_19 = arith.constant 0 : index
    %c0_20 = arith.constant 0 : index
    %43 = vector.load %arg5[%c0_19, %c0_20] : memref<16x128xf32, #tpu.memory_space<vmem>>, vector<2x64xf32>
    tpu.vector_store %arg5[%c0_19, %c0_20], %42 {strides = array<i32>} : memref<16x128xf32, #tpu.memory_space<vmem>>, vector<2x64xf32>,
    %c14 = arith.constant 14 : index
    %c64 = arith.constant 64 : index
    %44 = vector.load %arg5[%c14, %c64] : memref<16x128xf32, #tpu.memory_space<vmem>>, vector<2x64xf32>
    tpu.vector_store %arg5[%c14, %c64], %42 {strides = array<i32>} : memref<16x128xf32, #tpu.memory_space<vmem>>, vector<2x64xf32>,
    %45 = vector.extract_strided_slice %8 {offsets = [2, 0], sizes = [2, 256], strides = [1, 1]} : vector<16x256xf32> to vector<2x256xf32>
    %cst_21 = arith.constant dense<0.000000e+00> : vector<2x256xf32>
    %46 = tpu.matmul %42, %9, %cst_21 {dimension_numbers = #tpu.dot_dimension_numbers<[1], [0], [0], [1], [0, 0, 1, 1], [], []>} : vector<2x64xf32>, vector<64x256xf32>, vector<2x256xf32> -> vector<2x256xf32>
    %47 = arith.addf %45, %46 : vector<2x256xf32>
    %48 = arith.negf %47 : vector<2x256xf32>
    %49 = math.exp %48 : vector<2x256xf32>
    %cst_22 = arith.constant 1.000000e+00 : f32
    %50 = vector.broadcast %cst_22 : f32 to vector<2x256xf32>
    %51 = arith.addf %50, %49 : vector<2x256xf32>
    %52 = arith.divf %50, %51 : vector<2x256xf32>
    %53 = vector.extract_strided_slice %52 {offsets = [0, 0], sizes = [2, 64], strides = [1, 1]} : vector<2x256xf32> to vector<2x64xf32>
    %54 = vector.extract_strided_slice %52 {offsets = [0, 64], sizes = [2, 64], strides = [1, 1]} : vector<2x256xf32> to vector<2x64xf32>
    %55 = vector.extract_strided_slice %52 {offsets = [0, 128], sizes = [2, 64], strides = [1, 1]} : vector<2x256xf32> to vector<2x64xf32>
    %cst_23 = arith.constant 2.000000e+00 : f32
    %56 = vector.broadcast %cst_23 : f32 to vector<2x64xf32>
    %57 = arith.mulf %56, %55 : vector<2x64xf32>
    %cst_24 = arith.constant 1.000000e+00 : f32
    %58 = vector.broadcast %cst_24 : f32 to vector<2x64xf32>
    %59 = arith.subf %57, %58 : vector<2x64xf32>
    %60 = vector.extract_strided_slice %52 {offsets = [0, 192], sizes = [2, 64], strides = [1, 1]} : vector<2x256xf32> to vector<2x64xf32>
    %61 = arith.mulf %54, %30 : vector<2x64xf32>
    %62 = arith.mulf %53, %59 : vector<2x64xf32>
    %63 = arith.addf %61, %62 : vector<2x64xf32>
    %cst_25 = arith.constant 2.000000e+00 : f32
    %64 = vector.broadcast %cst_25 : f32 to vector<2x64xf32>
    %65 = arith.mulf %64, %63 : vector<2x64xf32>
    %66 = arith.negf %65 : vector<2x64xf32>
    %67 = math.exp %66 : vector<2x64xf32>
    %cst_26 = arith.constant 1.000000e+00 : f32
    %68 = vector.broadcast %cst_26 : f32 to vector<2x64xf32>
    %69 = arith.addf %68, %67 : vector<2x64xf32>
    %70 = arith.divf %68, %69 : vector<2x64xf32>
    %cst_27 = arith.constant 2.000000e+00 : f32
    %71 = vector.broadcast %cst_27 : f32 to vector<2x64xf32>
    %72 = arith.mulf %71, %70 : vector<2x64xf32>
    %cst_28 = arith.constant 1.000000e+00 : f32
    %73 = vector.broadcast %cst_28 : f32 to vector<2x64xf32>
    %74 = arith.subf %72, %73 : vector<2x64xf32>
    %75 = arith.mulf %60, %74 : vector<2x64xf32>
    %c2_29 = arith.constant 2 : index
    %c0_30 = arith.constant 0 : index
    %76 = vector.load %arg5[%c2_29, %c0_30] : memref<16x128xf32, #tpu.memory_space<vmem>>, vector<2x64xf32>
    tpu.vector_store %arg5[%c2_29, %c0_30], %75 {strides = array<i32>} : memref<16x128xf32, #tpu.memory_space<vmem>>, vector<2x64xf32>,
    %c12 = arith.constant 12 : index
    %c64_31 = arith.constant 64 : index
    %77 = vector.load %arg5[%c12, %c64_31] : memref<16x128xf32, #tpu.memory_space<vmem>>, vector<2x64xf32>
    tpu.vector_store %arg5[%c12, %c64_31], %75 {strides = array<i32>} : memref<16x128xf32, #tpu.memory_space<vmem>>, vector<2x64xf32>,
    %78 = vector.extract_strided_slice %8 {offsets = [4, 0], sizes = [2, 256], strides = [1, 1]} : vector<16x256xf32> to vector<2x256xf32>
    %cst_32 = arith.constant dense<0.000000e+00> : vector<2x256xf32>
    %79 = tpu.matmul %75, %9, %cst_32 {dimension_numbers = #tpu.dot_dimension_numbers<[1], [0], [0], [1], [0, 0, 1, 1], [], []>} : vector<2x64xf32>, vector<64x256xf32>, vector<2x256xf32> -> vector<2x256xf32>
    %80 = arith.addf %78, %79 : vector<2x256xf32>
    %81 = arith.negf %80 : vector<2x256xf32>
    %82 = math.exp %81 : vector<2x256xf32>
    %cst_33 = arith.constant 1.000000e+00 : f32
    %83 = vector.broadcast %cst_33 : f32 to vector<2x256xf32>
    %84 = arith.addf %83, %82 : vector<2x256xf32>
    %85 = arith.divf %83, %84 : vector<2x256xf32>
    %86 = vector.extract_strided_slice %85 {offsets = [0, 0], sizes = [2, 64], strides = [1, 1]} : vector<2x256xf32> to vector<2x64xf32>
    %87 = vector.extract_strided_slice %85 {offsets = [0, 64], sizes = [2, 64], strides = [1, 1]} : vector<2x256xf32> to vector<2x64xf32>
    %88 = vector.extract_strided_slice %85 {offsets = [0, 128], sizes = [2, 64], strides = [1, 1]} : vector<2x256xf32> to vector<2x64xf32>
    %cst_34 = arith.constant 2.000000e+00 : f32
    %89 = vector.broadcast %cst_34 : f32 to vector<2x64xf32>
    %90 = arith.mulf %89, %88 : vector<2x64xf32>
    %cst_35 = arith.constant 1.000000e+00 : f32
    %91 = vector.broadcast %cst_35 : f32 to vector<2x64xf32>
    %92 = arith.subf %90, %91 : vector<2x64xf32>
    %93 = vector.extract_strided_slice %85 {offsets = [0, 192], sizes = [2, 64], strides = [1, 1]} : vector<2x256xf32> to vector<2x64xf32>
    %94 = arith.mulf %87, %63 : vector<2x64xf32>
    %95 = arith.mulf %86, %92 : vector<2x64xf32>
    %96 = arith.addf %94, %95 : vector<2x64xf32>
    %cst_36 = arith.constant 2.000000e+00 : f32
    %97 = vector.broadcast %cst_36 : f32 to vector<2x64xf32>
    %98 = arith.mulf %97, %96 : vector<2x64xf32>
    %99 = arith.negf %98 : vector<2x64xf32>
    %100 = math.exp %99 : vector<2x64xf32>
    %cst_37 = arith.constant 1.000000e+00 : f32
    %101 = vector.broadcast %cst_37 : f32 to vector<2x64xf32>
    %102 = arith.addf %101, %100 : vector<2x64xf32>
    %103 = arith.divf %101, %102 : vector<2x64xf32>
    %cst_38 = arith.constant 2.000000e+00 : f32
    %104 = vector.broadcast %cst_38 : f32 to vector<2x64xf32>
    %105 = arith.mulf %104, %103 : vector<2x64xf32>
    %cst_39 = arith.constant 1.000000e+00 : f32
    %106 = vector.broadcast %cst_39 : f32 to vector<2x64xf32>
    %107 = arith.subf %105, %106 : vector<2x64xf32>
    %108 = arith.mulf %93, %107 : vector<2x64xf32>
    %c4 = arith.constant 4 : index
    %c0_40 = arith.constant 0 : index
    %109 = vector.load %arg5[%c4, %c0_40] : memref<16x128xf32, #tpu.memory_space<vmem>>, vector<2x64xf32>
    tpu.vector_store %arg5[%c4, %c0_40], %108 {strides = array<i32>} : memref<16x128xf32, #tpu.memory_space<vmem>>, vector<2x64xf32>,
    %c10 = arith.constant 10 : index
    %c64_41 = arith.constant 64 : index
    %110 = vector.load %arg5[%c10, %c64_41] : memref<16x128xf32, #tpu.memory_space<vmem>>, vector<2x64xf32>
    tpu.vector_store %arg5[%c10, %c64_41], %108 {strides = array<i32>} : memref<16x128xf32, #tpu.memory_space<vmem>>, vector<2x64xf32>,
    %111 = vector.extract_strided_slice %8 {offsets = [6, 0], sizes = [2, 256], strides = [1, 1]} : vector<16x256xf32> to vector<2x256xf32>
    %cst_42 = arith.constant dense<0.000000e+00> : vector<2x256xf32>
    %112 = tpu.matmul %108, %9, %cst_42 {dimension_numbers = #tpu.dot_dimension_numbers<[1], [0], [0], [1], [0, 0, 1, 1], [], []>} : vector<2x64xf32>, vector<64x256xf32>, vector<2x256xf32> -> vector<2x256xf32>
    %113 = arith.addf %111, %112 : vector<2x256xf32>
    %114 = arith.negf %113 : vector<2x256xf32>
    %115 = math.exp %114 : vector<2x256xf32>
    %cst_43 = arith.constant 1.000000e+00 : f32
    %116 = vector.broadcast %cst_43 : f32 to vector<2x256xf32>
    %117 = arith.addf %116, %115 : vector<2x256xf32>
    %118 = arith.divf %116, %117 : vector<2x256xf32>
    %119 = vector.extract_strided_slice %118 {offsets = [0, 0], sizes = [2, 64], strides = [1, 1]} : vector<2x256xf32> to vector<2x64xf32>
    %120 = vector.extract_strided_slice %118 {offsets = [0, 64], sizes = [2, 64], strides = [1, 1]} : vector<2x256xf32> to vector<2x64xf32>
    %121 = vector.extract_strided_slice %118 {offsets = [0, 128], sizes = [2, 64], strides = [1, 1]} : vector<2x256xf32> to vector<2x64xf32>
    %cst_44 = arith.constant 2.000000e+00 : f32
    %122 = vector.broadcast %cst_44 : f32 to vector<2x64xf32>
    %123 = arith.mulf %122, %121 : vector<2x64xf32>
    %cst_45 = arith.constant 1.000000e+00 : f32
    %124 = vector.broadcast %cst_45 : f32 to vector<2x64xf32>
    %125 = arith.subf %123, %124 : vector<2x64xf32>
    %126 = vector.extract_strided_slice %118 {offsets = [0, 192], sizes = [2, 64], strides = [1, 1]} : vector<2x256xf32> to vector<2x64xf32>
    %127 = arith.mulf %120, %96 : vector<2x64xf32>
    %128 = arith.mulf %119, %125 : vector<2x64xf32>
    %129 = arith.addf %127, %128 : vector<2x64xf32>
    %cst_46 = arith.constant 2.000000e+00 : f32
    %130 = vector.broadcast %cst_46 : f32 to vector<2x64xf32>
    %131 = arith.mulf %130, %129 : vector<2x64xf32>
    %132 = arith.negf %131 : vector<2x64xf32>
    %133 = math.exp %132 : vector<2x64xf32>
    %cst_47 = arith.constant 1.000000e+00 : f32
    %134 = vector.broadcast %cst_47 : f32 to vector<2x64xf32>
    %135 = arith.addf %134, %133 : vector<2x64xf32>
    %136 = arith.divf %134, %135 : vector<2x64xf32>
    %cst_48 = arith.constant 2.000000e+00 : f32
    %137 = vector.broadcast %cst_48 : f32 to vector<2x64xf32>
    %138 = arith.mulf %137, %136 : vector<2x64xf32>
    %cst_49 = arith.constant 1.000000e+00 : f32
    %139 = vector.broadcast %cst_49 : f32 to vector<2x64xf32>
    %140 = arith.subf %138, %139 : vector<2x64xf32>
    %141 = arith.mulf %126, %140 : vector<2x64xf32>
    %c6 = arith.constant 6 : index
    %c0_50 = arith.constant 0 : index
    %142 = vector.load %arg5[%c6, %c0_50] : memref<16x128xf32, #tpu.memory_space<vmem>>, vector<2x64xf32>
    tpu.vector_store %arg5[%c6, %c0_50], %141 {strides = array<i32>} : memref<16x128xf32, #tpu.memory_space<vmem>>, vector<2x64xf32>,
    %c8 = arith.constant 8 : index
    %c64_51 = arith.constant 64 : index
    %143 = vector.load %arg5[%c8, %c64_51] : memref<16x128xf32, #tpu.memory_space<vmem>>, vector<2x64xf32>
    tpu.vector_store %arg5[%c8, %c64_51], %141 {strides = array<i32>} : memref<16x128xf32, #tpu.memory_space<vmem>>, vector<2x64xf32>,
    %144 = vector.extract_strided_slice %8 {offsets = [8, 0], sizes = [2, 256], strides = [1, 1]} : vector<16x256xf32> to vector<2x256xf32>
    %cst_52 = arith.constant dense<0.000000e+00> : vector<2x256xf32>
    %145 = tpu.matmul %141, %9, %cst_52 {dimension_numbers = #tpu.dot_dimension_numbers<[1], [0], [0], [1], [0, 0, 1, 1], [], []>} : vector<2x64xf32>, vector<64x256xf32>, vector<2x256xf32> -> vector<2x256xf32>
    %146 = arith.addf %144, %145 : vector<2x256xf32>
    %147 = arith.negf %146 : vector<2x256xf32>
    %148 = math.exp %147 : vector<2x256xf32>
    %cst_53 = arith.constant 1.000000e+00 : f32
    %149 = vector.broadcast %cst_53 : f32 to vector<2x256xf32>
    %150 = arith.addf %149, %148 : vector<2x256xf32>
    %151 = arith.divf %149, %150 : vector<2x256xf32>
    %152 = vector.extract_strided_slice %151 {offsets = [0, 0], sizes = [2, 64], strides = [1, 1]} : vector<2x256xf32> to vector<2x64xf32>
    %153 = vector.extract_strided_slice %151 {offsets = [0, 64], sizes = [2, 64], strides = [1, 1]} : vector<2x256xf32> to vector<2x64xf32>
    %154 = vector.extract_strided_slice %151 {offsets = [0, 128], sizes = [2, 64], strides = [1, 1]} : vector<2x256xf32> to vector<2x64xf32>
    %cst_54 = arith.constant 2.000000e+00 : f32
    %155 = vector.broadcast %cst_54 : f32 to vector<2x64xf32>
    %156 = arith.mulf %155, %154 : vector<2x64xf32>
    %cst_55 = arith.constant 1.000000e+00 : f32
    %157 = vector.broadcast %cst_55 : f32 to vector<2x64xf32>
    %158 = arith.subf %156, %157 : vector<2x64xf32>
    %159 = vector.extract_strided_slice %151 {offsets = [0, 192], sizes = [2, 64], strides = [1, 1]} : vector<2x256xf32> to vector<2x64xf32>
    %160 = arith.mulf %153, %129 : vector<2x64xf32>
    %161 = arith.mulf %152, %158 : vector<2x64xf32>
    %162 = arith.addf %160, %161 : vector<2x64xf32>
    %cst_56 = arith.constant 2.000000e+00 : f32
    %163 = vector.broadcast %cst_56 : f32 to vector<2x64xf32>
    %164 = arith.mulf %163, %162 : vector<2x64xf32>
    %165 = arith.negf %164 : vector<2x64xf32>
    %166 = math.exp %165 : vector<2x64xf32>
    %cst_57 = arith.constant 1.000000e+00 : f32
    %167 = vector.broadcast %cst_57 : f32 to vector<2x64xf32>
    %168 = arith.addf %167, %166 : vector<2x64xf32>
    %169 = arith.divf %167, %168 : vector<2x64xf32>
    %cst_58 = arith.constant 2.000000e+00 : f32
    %170 = vector.broadcast %cst_58 : f32 to vector<2x64xf32>
    %171 = arith.mulf %170, %169 : vector<2x64xf32>
    %cst_59 = arith.constant 1.000000e+00 : f32
    %172 = vector.broadcast %cst_59 : f32 to vector<2x64xf32>
    %173 = arith.subf %171, %172 : vector<2x64xf32>
    %174 = arith.mulf %159, %173 : vector<2x64xf32>
    %c8_60 = arith.constant 8 : index
    %c0_61 = arith.constant 0 : index
    %175 = vector.load %arg5[%c8_60, %c0_61] : memref<16x128xf32, #tpu.memory_space<vmem>>, vector<2x64xf32>
    tpu.vector_store %arg5[%c8_60, %c0_61], %174 {strides = array<i32>} : memref<16x128xf32, #tpu.memory_space<vmem>>, vector<2x64xf32>,
    %c6_62 = arith.constant 6 : index
    %c64_63 = arith.constant 64 : index
    %176 = vector.load %arg5[%c6_62, %c64_63] : memref<16x128xf32, #tpu.memory_space<vmem>>, vector<2x64xf32>
    tpu.vector_store %arg5[%c6_62, %c64_63], %174 {strides = array<i32>} : memref<16x128xf32, #tpu.memory_space<vmem>>, vector<2x64xf32>,
    %177 = vector.extract_strided_slice %8 {offsets = [10, 0], sizes = [2, 256], strides = [1, 1]} : vector<16x256xf32> to vector<2x256xf32>
    %cst_64 = arith.constant dense<0.000000e+00> : vector<2x256xf32>
    %178 = tpu.matmul %174, %9, %cst_64 {dimension_numbers = #tpu.dot_dimension_numbers<[1], [0], [0], [1], [0, 0, 1, 1], [], []>} : vector<2x64xf32>, vector<64x256xf32>, vector<2x256xf32> -> vector<2x256xf32>
    %179 = arith.addf %177, %178 : vector<2x256xf32>
    %180 = arith.negf %179 : vector<2x256xf32>
    %181 = math.exp %180 : vector<2x256xf32>
    %cst_65 = arith.constant 1.000000e+00 : f32
    %182 = vector.broadcast %cst_65 : f32 to vector<2x256xf32>
    %183 = arith.addf %182, %181 : vector<2x256xf32>
    %184 = arith.divf %182, %183 : vector<2x256xf32>
    %185 = vector.extract_strided_slice %184 {offsets = [0, 0], sizes = [2, 64], strides = [1, 1]} : vector<2x256xf32> to vector<2x64xf32>
    %186 = vector.extract_strided_slice %184 {offsets = [0, 64], sizes = [2, 64], strides = [1, 1]} : vector<2x256xf32> to vector<2x64xf32>
    %187 = vector.extract_strided_slice %184 {offsets = [0, 128], sizes = [2, 64], strides = [1, 1]} : vector<2x256xf32> to vector<2x64xf32>
    %cst_66 = arith.constant 2.000000e+00 : f32
    %188 = vector.broadcast %cst_66 : f32 to vector<2x64xf32>
    %189 = arith.mulf %188, %187 : vector<2x64xf32>
    %cst_67 = arith.constant 1.000000e+00 : f32
    %190 = vector.broadcast %cst_67 : f32 to vector<2x64xf32>
    %191 = arith.subf %189, %190 : vector<2x64xf32>
    %192 = vector.extract_strided_slice %184 {offsets = [0, 192], sizes = [2, 64], strides = [1, 1]} : vector<2x256xf32> to vector<2x64xf32>
    %193 = arith.mulf %186, %162 : vector<2x64xf32>
    %194 = arith.mulf %185, %191 : vector<2x64xf32>
    %195 = arith.addf %193, %194 : vector<2x64xf32>
    %cst_68 = arith.constant 2.000000e+00 : f32
    %196 = vector.broadcast %cst_68 : f32 to vector<2x64xf32>
    %197 = arith.mulf %196, %195 : vector<2x64xf32>
    %198 = arith.negf %197 : vector<2x64xf32>
    %199 = math.exp %198 : vector<2x64xf32>
    %cst_69 = arith.constant 1.000000e+00 : f32
    %200 = vector.broadcast %cst_69 : f32 to vector<2x64xf32>
    %201 = arith.addf %200, %199 : vector<2x64xf32>
    %202 = arith.divf %200, %201 : vector<2x64xf32>
    %cst_70 = arith.constant 2.000000e+00 : f32
    %203 = vector.broadcast %cst_70 : f32 to vector<2x64xf32>
    %204 = arith.mulf %203, %202 : vector<2x64xf32>
    %cst_71 = arith.constant 1.000000e+00 : f32
    %205 = vector.broadcast %cst_71 : f32 to vector<2x64xf32>
    %206 = arith.subf %204, %205 : vector<2x64xf32>
    %207 = arith.mulf %192, %206 : vector<2x64xf32>
    %c10_72 = arith.constant 10 : index
    %c0_73 = arith.constant 0 : index
    %208 = vector.load %arg5[%c10_72, %c0_73] : memref<16x128xf32, #tpu.memory_space<vmem>>, vector<2x64xf32>
    tpu.vector_store %arg5[%c10_72, %c0_73], %207 {strides = array<i32>} : memref<16x128xf32, #tpu.memory_space<vmem>>, vector<2x64xf32>,
    %c4_74 = arith.constant 4 : index
    %c64_75 = arith.constant 64 : index
    %209 = vector.load %arg5[%c4_74, %c64_75] : memref<16x128xf32, #tpu.memory_space<vmem>>, vector<2x64xf32>
    tpu.vector_store %arg5[%c4_74, %c64_75], %207 {strides = array<i32>} : memref<16x128xf32, #tpu.memory_space<vmem>>, vector<2x64xf32>,
    %210 = vector.extract_strided_slice %8 {offsets = [12, 0], sizes = [2, 256], strides = [1, 1]} : vector<16x256xf32> to vector<2x256xf32>
    %cst_76 = arith.constant dense<0.000000e+00> : vector<2x256xf32>
    %211 = tpu.matmul %207, %9, %cst_76 {dimension_numbers = #tpu.dot_dimension_numbers<[1], [0], [0], [1], [0, 0, 1, 1], [], []>} : vector<2x64xf32>, vector<64x256xf32>, vector<2x256xf32> -> vector<2x256xf32>
    %212 = arith.addf %210, %211 : vector<2x256xf32>
    %213 = arith.negf %212 : vector<2x256xf32>
    %214 = math.exp %213 : vector<2x256xf32>
    %cst_77 = arith.constant 1.000000e+00 : f32
    %215 = vector.broadcast %cst_77 : f32 to vector<2x256xf32>
    %216 = arith.addf %215, %214 : vector<2x256xf32>
    %217 = arith.divf %215, %216 : vector<2x256xf32>
    %218 = vector.extract_strided_slice %217 {offsets = [0, 0], sizes = [2, 64], strides = [1, 1]} : vector<2x256xf32> to vector<2x64xf32>
    %219 = vector.extract_strided_slice %217 {offsets = [0, 64], sizes = [2, 64], strides = [1, 1]} : vector<2x256xf32> to vector<2x64xf32>
    %220 = vector.extract_strided_slice %217 {offsets = [0, 128], sizes = [2, 64], strides = [1, 1]} : vector<2x256xf32> to vector<2x64xf32>
    %cst_78 = arith.constant 2.000000e+00 : f32
    %221 = vector.broadcast %cst_78 : f32 to vector<2x64xf32>
    %222 = arith.mulf %221, %220 : vector<2x64xf32>
    %cst_79 = arith.constant 1.000000e+00 : f32
    %223 = vector.broadcast %cst_79 : f32 to vector<2x64xf32>
    %224 = arith.subf %222, %223 : vector<2x64xf32>
    %225 = vector.extract_strided_slice %217 {offsets = [0, 192], sizes = [2, 64], strides = [1, 1]} : vector<2x256xf32> to vector<2x64xf32>
    %226 = arith.mulf %219, %195 : vector<2x64xf32>
    %227 = arith.mulf %218, %224 : vector<2x64xf32>
    %228 = arith.addf %226, %227 : vector<2x64xf32>
    %cst_80 = arith.constant 2.000000e+00 : f32
    %229 = vector.broadcast %cst_80 : f32 to vector<2x64xf32>
    %230 = arith.mulf %229, %228 : vector<2x64xf32>
    %231 = arith.negf %230 : vector<2x64xf32>
    %232 = math.exp %231 : vector<2x64xf32>
    %cst_81 = arith.constant 1.000000e+00 : f32
    %233 = vector.broadcast %cst_81 : f32 to vector<2x64xf32>
    %234 = arith.addf %233, %232 : vector<2x64xf32>
    %235 = arith.divf %233, %234 : vector<2x64xf32>
    %cst_82 = arith.constant 2.000000e+00 : f32
    %236 = vector.broadcast %cst_82 : f32 to vector<2x64xf32>
    %237 = arith.mulf %236, %235 : vector<2x64xf32>
    %cst_83 = arith.constant 1.000000e+00 : f32
    %238 = vector.broadcast %cst_83 : f32 to vector<2x64xf32>
    %239 = arith.subf %237, %238 : vector<2x64xf32>
    %240 = arith.mulf %225, %239 : vector<2x64xf32>
    %c12_84 = arith.constant 12 : index
    %c0_85 = arith.constant 0 : index
    %241 = vector.load %arg5[%c12_84, %c0_85] : memref<16x128xf32, #tpu.memory_space<vmem>>, vector<2x64xf32>
    tpu.vector_store %arg5[%c12_84, %c0_85], %240 {strides = array<i32>} : memref<16x128xf32, #tpu.memory_space<vmem>>, vector<2x64xf32>,
    %c2_86 = arith.constant 2 : index
    %c64_87 = arith.constant 64 : index
    %242 = vector.load %arg5[%c2_86, %c64_87] : memref<16x128xf32, #tpu.memory_space<vmem>>, vector<2x64xf32>
    tpu.vector_store %arg5[%c2_86, %c64_87], %240 {strides = array<i32>} : memref<16x128xf32, #tpu.memory_space<vmem>>, vector<2x64xf32>,
    %243 = vector.extract_strided_slice %8 {offsets = [14, 0], sizes = [2, 256], strides = [1, 1]} : vector<16x256xf32> to vector<2x256xf32>
    %cst_88 = arith.constant dense<0.000000e+00> : vector<2x256xf32>
    %244 = tpu.matmul %240, %9, %cst_88 {dimension_numbers = #tpu.dot_dimension_numbers<[1], [0], [0], [1], [0, 0, 1, 1], [], []>} : vector<2x64xf32>, vector<64x256xf32>, vector<2x256xf32> -> vector<2x256xf32>
    %245 = arith.addf %243, %244 : vector<2x256xf32>
    %246 = arith.negf %245 : vector<2x256xf32>
    %247 = math.exp %246 : vector<2x256xf32>
    %cst_89 = arith.constant 1.000000e+00 : f32
    %248 = vector.broadcast %cst_89 : f32 to vector<2x256xf32>
    %249 = arith.addf %248, %247 : vector<2x256xf32>
    %250 = arith.divf %248, %249 : vector<2x256xf32>
    %251 = vector.extract_strided_slice %250 {offsets = [0, 0], sizes = [2, 64], strides = [1, 1]} : vector<2x256xf32> to vector<2x64xf32>
    %252 = vector.extract_strided_slice %250 {offsets = [0, 64], sizes = [2, 64], strides = [1, 1]} : vector<2x256xf32> to vector<2x64xf32>
    %253 = vector.extract_strided_slice %250 {offsets = [0, 128], sizes = [2, 64], strides = [1, 1]} : vector<2x256xf32> to vector<2x64xf32>
    %cst_90 = arith.constant 2.000000e+00 : f32
    %254 = vector.broadcast %cst_90 : f32 to vector<2x64xf32>
    %255 = arith.mulf %254, %253 : vector<2x64xf32>
    %cst_91 = arith.constant 1.000000e+00 : f32
    %256 = vector.broadcast %cst_91 : f32 to vector<2x64xf32>
    %257 = arith.subf %255, %256 : vector<2x64xf32>
    %258 = vector.extract_strided_slice %250 {offsets = [0, 192], sizes = [2, 64], strides = [1, 1]} : vector<2x256xf32> to vector<2x64xf32>
    %259 = arith.mulf %252, %228 : vector<2x64xf32>
    %260 = arith.mulf %251, %257 : vector<2x64xf32>
    %261 = arith.addf %259, %260 : vector<2x64xf32>
    %cst_92 = arith.constant 2.000000e+00 : f32
    %262 = vector.broadcast %cst_92 : f32 to vector<2x64xf32>
    %263 = arith.mulf %262, %261 : vector<2x64xf32>
    %264 = arith.negf %263 : vector<2x64xf32>
    %265 = math.exp %264 : vector<2x64xf32>
    %cst_93 = arith.constant 1.000000e+00 : f32
    %266 = vector.broadcast %cst_93 : f32 to vector<2x64xf32>
    %267 = arith.addf %266, %265 : vector<2x64xf32>
    %268 = arith.divf %266, %267 : vector<2x64xf32>
    %cst_94 = arith.constant 2.000000e+00 : f32
    %269 = vector.broadcast %cst_94 : f32 to vector<2x64xf32>
    %270 = arith.mulf %269, %268 : vector<2x64xf32>
    %cst_95 = arith.constant 1.000000e+00 : f32
    %271 = vector.broadcast %cst_95 : f32 to vector<2x64xf32>
    %272 = arith.subf %270, %271 : vector<2x64xf32>
    %273 = arith.mulf %258, %272 : vector<2x64xf32>
    %c14_96 = arith.constant 14 : index
    %c0_97 = arith.constant 0 : index
    %274 = vector.load %arg5[%c14_96, %c0_97] : memref<16x128xf32, #tpu.memory_space<vmem>>, vector<2x64xf32>
    tpu.vector_store %arg5[%c14_96, %c0_97], %273 {strides = array<i32>} : memref<16x128xf32, #tpu.memory_space<vmem>>, vector<2x64xf32>,
    %c0_98 = arith.constant 0 : index
    %c64_99 = arith.constant 64 : index
    %275 = vector.load %arg5[%c0_98, %c64_99] : memref<16x128xf32, #tpu.memory_space<vmem>>, vector<2x64xf32>
    tpu.vector_store %arg5[%c0_98, %c64_99], %273 {strides = array<i32>} : memref<16x128xf32, #tpu.memory_space<vmem>>, vector<2x64xf32>,
    %c0_100 = arith.constant 0 : index
    %c0_101 = arith.constant 0 : index
    %276 = vector.load %arg5[%c0_100, %c0_101] : memref<16x128xf32, #tpu.memory_space<vmem>>, vector<16x128xf32>
    %c192 = arith.constant 192 : index
    %c0_102 = arith.constant 0 : index
    %277 = vector.load %arg1[%c192, %c0_102] : memref<384x256xf32, #tpu.memory_space<vmem>>, vector<128x256xf32>
    %cst_103 = arith.constant dense<0.000000e+00> : vector<16x256xf32>
    %278 = tpu.matmul %276, %277, %cst_103 {dimension_numbers = #tpu.dot_dimension_numbers<[1], [0], [0], [1], [0, 0, 1, 1], [], []>} : vector<16x128xf32>, vector<128x256xf32>, vector<16x256xf32> -> vector<16x256xf32>
    %279 = vector.broadcast %1 : vector<1x256xf32> to vector<16x256xf32>
    %280 = arith.addf %278, %279 : vector<16x256xf32>
    %c320 = arith.constant 320 : index
    %c0_104 = arith.constant 0 : index
    %281 = vector.load %arg1[%c320, %c0_104] : memref<384x256xf32, #tpu.memory_space<vmem>>, vector<64x256xf32>
    %cst_105 = arith.constant 0.000000e+00 : f32
    %282 = vector.broadcast %cst_105 : f32 to vector<2x64xf32>
    %cst_106 = arith.constant 0.000000e+00 : f32
    %283 = vector.broadcast %cst_106 : f32 to vector<2x64xf32>
    %cst_107 = arith.constant 0xFF800000 : f32
    %284 = vector.broadcast %cst_107 : f32 to vector<2x64xf32>
    %285 = vector.extract_strided_slice %280 {offsets = [0, 0], sizes = [2, 256], strides = [1, 1]} : vector<16x256xf32> to vector<2x256xf32>
    %cst_108 = arith.constant dense<0.000000e+00> : vector<2x256xf32>
    %286 = tpu.matmul %282, %281, %cst_108 {dimension_numbers = #tpu.dot_dimension_numbers<[1], [0], [0], [1], [0, 0, 1, 1], [], []>} : vector<2x64xf32>, vector<64x256xf32>, vector<2x256xf32> -> vector<2x256xf32>
    %287 = arith.addf %285, %286 : vector<2x256xf32>
    %288 = arith.negf %287 : vector<2x256xf32>
    %289 = math.exp %288 : vector<2x256xf32>
    %cst_109 = arith.constant 1.000000e+00 : f32
    %290 = vector.broadcast %cst_109 : f32 to vector<2x256xf32>
    %291 = arith.addf %290, %289 : vector<2x256xf32>
    %292 = arith.divf %290, %291 : vector<2x256xf32>
    %293 = vector.extract_strided_slice %292 {offsets = [0, 0], sizes = [2, 64], strides = [1, 1]} : vector<2x256xf32> to vector<2x64xf32>
    %294 = vector.extract_strided_slice %292 {offsets = [0, 64], sizes = [2, 64], strides = [1, 1]} : vector<2x256xf32> to vector<2x64xf32>
    %295 = vector.extract_strided_slice %292 {offsets = [0, 128], sizes = [2, 64], strides = [1, 1]} : vector<2x256xf32> to vector<2x64xf32>
    %cst_110 = arith.constant 2.000000e+00 : f32
    %296 = vector.broadcast %cst_110 : f32 to vector<2x64xf32>
    %297 = arith.mulf %296, %295 : vector<2x64xf32>
    %cst_111 = arith.constant 1.000000e+00 : f32
    %298 = vector.broadcast %cst_111 : f32 to vector<2x64xf32>
    %299 = arith.subf %297, %298 : vector<2x64xf32>
    %300 = vector.extract_strided_slice %292 {offsets = [0, 192], sizes = [2, 64], strides = [1, 1]} : vector<2x256xf32> to vector<2x64xf32>
    %301 = arith.mulf %294, %283 : vector<2x64xf32>
    %302 = arith.mulf %293, %299 : vector<2x64xf32>
    %303 = arith.addf %301, %302 : vector<2x64xf32>
    %cst_112 = arith.constant 2.000000e+00 : f32
    %304 = vector.broadcast %cst_112 : f32 to vector<2x64xf32>
    %305 = arith.mulf %304, %303 : vector<2x64xf32>
    %306 = arith.negf %305 : vector<2x64xf32>
    %307 = math.exp %306 : vector<2x64xf32>
    %cst_113 = arith.constant 1.000000e+00 : f32
    %308 = vector.broadcast %cst_113 : f32 to vector<2x64xf32>
    %309 = arith.addf %308, %307 : vector<2x64xf32>
    %310 = arith.divf %308, %309 : vector<2x64xf32>
    %cst_114 = arith.constant 2.000000e+00 : f32
    %311 = vector.broadcast %cst_114 : f32 to vector<2x64xf32>
    %312 = arith.mulf %311, %310 : vector<2x64xf32>
    %cst_115 = arith.constant 1.000000e+00 : f32
    %313 = vector.broadcast %cst_115 : f32 to vector<2x64xf32>
    %314 = arith.subf %312, %313 : vector<2x64xf32>
    %315 = arith.mulf %300, %314 : vector<2x64xf32>
    %316 = arith.maximumf %284, %315 : vector<2x64xf32>
    %317 = vector.extract_strided_slice %280 {offsets = [2, 0], sizes = [2, 256], strides = [1, 1]} : vector<16x256xf32> to vector<2x256xf32>
    %cst_116 = arith.constant dense<0.000000e+00> : vector<2x256xf32>
    %318 = tpu.matmul %315, %281, %cst_116 {dimension_numbers = #tpu.dot_dimension_numbers<[1], [0], [0], [1], [0, 0, 1, 1], [], []>} : vector<2x64xf32>, vector<64x256xf32>, vector<2x256xf32> -> vector<2x256xf32>
    %319 = arith.addf %317, %318 : vector<2x256xf32>
    %320 = arith.negf %319 : vector<2x256xf32>
    %321 = math.exp %320 : vector<2x256xf32>
    %cst_117 = arith.constant 1.000000e+00 : f32
    %322 = vector.broadcast %cst_117 : f32 to vector<2x256xf32>
    %323 = arith.addf %322, %321 : vector<2x256xf32>
    %324 = arith.divf %322, %323 : vector<2x256xf32>
    %325 = vector.extract_strided_slice %324 {offsets = [0, 0], sizes = [2, 64], strides = [1, 1]} : vector<2x256xf32> to vector<2x64xf32>
    %326 = vector.extract_strided_slice %324 {offsets = [0, 64], sizes = [2, 64], strides = [1, 1]} : vector<2x256xf32> to vector<2x64xf32>
    %327 = vector.extract_strided_slice %324 {offsets = [0, 128], sizes = [2, 64], strides = [1, 1]} : vector<2x256xf32> to vector<2x64xf32>
    %cst_118 = arith.constant 2.000000e+00 : f32
    %328 = vector.broadcast %cst_118 : f32 to vector<2x64xf32>
    %329 = arith.mulf %328, %327 : vector<2x64xf32>
    %cst_119 = arith.constant 1.000000e+00 : f32
    %330 = vector.broadcast %cst_119 : f32 to vector<2x64xf32>
    %331 = arith.subf %329, %330 : vector<2x64xf32>
    %332 = vector.extract_strided_slice %324 {offsets = [0, 192], sizes = [2, 64], strides = [1, 1]} : vector<2x256xf32> to vector<2x64xf32>
    %333 = arith.mulf %326, %303 : vector<2x64xf32>
    %334 = arith.mulf %325, %331 : vector<2x64xf32>
    %335 = arith.addf %333, %334 : vector<2x64xf32>
    %cst_120 = arith.constant 2.000000e+00 : f32
    %336 = vector.broadcast %cst_120 : f32 to vector<2x64xf32>
    %337 = arith.mulf %336, %335 : vector<2x64xf32>
    %338 = arith.negf %337 : vector<2x64xf32>
    %339 = math.exp %338 : vector<2x64xf32>
    %cst_121 = arith.constant 1.000000e+00 : f32
    %340 = vector.broadcast %cst_121 : f32 to vector<2x64xf32>
    %341 = arith.addf %340, %339 : vector<2x64xf32>
    %342 = arith.divf %340, %341 : vector<2x64xf32>
    %cst_122 = arith.constant 2.000000e+00 : f32
    %343 = vector.broadcast %cst_122 : f32 to vector<2x64xf32>
    %344 = arith.mulf %343, %342 : vector<2x64xf32>
    %cst_123 = arith.constant 1.000000e+00 : f32
    %345 = vector.broadcast %cst_123 : f32 to vector<2x64xf32>
    %346 = arith.subf %344, %345 : vector<2x64xf32>
    %347 = arith.mulf %332, %346 : vector<2x64xf32>
    %348 = arith.maximumf %316, %347 : vector<2x64xf32>
    %349 = vector.extract_strided_slice %280 {offsets = [4, 0], sizes = [2, 256], strides = [1, 1]} : vector<16x256xf32> to vector<2x256xf32>
    %cst_124 = arith.constant dense<0.000000e+00> : vector<2x256xf32>
    %350 = tpu.matmul %347, %281, %cst_124 {dimension_numbers = #tpu.dot_dimension_numbers<[1], [0], [0], [1], [0, 0, 1, 1], [], []>} : vector<2x64xf32>, vector<64x256xf32>, vector<2x256xf32> -> vector<2x256xf32>
    %351 = arith.addf %349, %350 : vector<2x256xf32>
    %352 = arith.negf %351 : vector<2x256xf32>
    %353 = math.exp %352 : vector<2x256xf32>
    %cst_125 = arith.constant 1.000000e+00 : f32
    %354 = vector.broadcast %cst_125 : f32 to vector<2x256xf32>
    %355 = arith.addf %354, %353 : vector<2x256xf32>
    %356 = arith.divf %354, %355 : vector<2x256xf32>
    %357 = vector.extract_strided_slice %356 {offsets = [0, 0], sizes = [2, 64], strides = [1, 1]} : vector<2x256xf32> to vector<2x64xf32>
    %358 = vector.extract_strided_slice %356 {offsets = [0, 64], sizes = [2, 64], strides = [1, 1]} : vector<2x256xf32> to vector<2x64xf32>
    %359 = vector.extract_strided_slice %356 {offsets = [0, 128], sizes = [2, 64], strides = [1, 1]} : vector<2x256xf32> to vector<2x64xf32>
    %cst_126 = arith.constant 2.000000e+00 : f32
    %360 = vector.broadcast %cst_126 : f32 to vector<2x64xf32>
    %361 = arith.mulf %360, %359 : vector<2x64xf32>
    %cst_127 = arith.constant 1.000000e+00 : f32
    %362 = vector.broadcast %cst_127 : f32 to vector<2x64xf32>
    %363 = arith.subf %361, %362 : vector<2x64xf32>
    %364 = vector.extract_strided_slice %356 {offsets = [0, 192], sizes = [2, 64], strides = [1, 1]} : vector<2x256xf32> to vector<2x64xf32>
    %365 = arith.mulf %358, %335 : vector<2x64xf32>
    %366 = arith.mulf %357, %363 : vector<2x64xf32>
    %367 = arith.addf %365, %366 : vector<2x64xf32>
    %cst_128 = arith.constant 2.000000e+00 : f32
    %368 = vector.broadcast %cst_128 : f32 to vector<2x64xf32>
    %369 = arith.mulf %368, %367 : vector<2x64xf32>
    %370 = arith.negf %369 : vector<2x64xf32>
    %371 = math.exp %370 : vector<2x64xf32>
    %cst_129 = arith.constant 1.000000e+00 : f32
    %372 = vector.broadcast %cst_129 : f32 to vector<2x64xf32>
    %373 = arith.addf %372, %371 : vector<2x64xf32>
    %374 = arith.divf %372, %373 : vector<2x64xf32>
    %cst_130 = arith.constant 2.000000e+00 : f32
    %375 = vector.broadcast %cst_130 : f32 to vector<2x64xf32>
    %376 = arith.mulf %375, %374 : vector<2x64xf32>
    %cst_131 = arith.constant 1.000000e+00 : f32
    %377 = vector.broadcast %cst_131 : f32 to vector<2x64xf32>
    %378 = arith.subf %376, %377 : vector<2x64xf32>
    %379 = arith.mulf %364, %378 : vector<2x64xf32>
    %380 = arith.maximumf %348, %379 : vector<2x64xf32>
    %381 = vector.extract_strided_slice %280 {offsets = [6, 0], sizes = [2, 256], strides = [1, 1]} : vector<16x256xf32> to vector<2x256xf32>
    %cst_132 = arith.constant dense<0.000000e+00> : vector<2x256xf32>
    %382 = tpu.matmul %379, %281, %cst_132 {dimension_numbers = #tpu.dot_dimension_numbers<[1], [0], [0], [1], [0, 0, 1, 1], [], []>} : vector<2x64xf32>, vector<64x256xf32>, vector<2x256xf32> -> vector<2x256xf32>
    %383 = arith.addf %381, %382 : vector<2x256xf32>
    %384 = arith.negf %383 : vector<2x256xf32>
    %385 = math.exp %384 : vector<2x256xf32>
    %cst_133 = arith.constant 1.000000e+00 : f32
    %386 = vector.broadcast %cst_133 : f32 to vector<2x256xf32>
    %387 = arith.addf %386, %385 : vector<2x256xf32>
    %388 = arith.divf %386, %387 : vector<2x256xf32>
    %389 = vector.extract_strided_slice %388 {offsets = [0, 0], sizes = [2, 64], strides = [1, 1]} : vector<2x256xf32> to vector<2x64xf32>
    %390 = vector.extract_strided_slice %388 {offsets = [0, 64], sizes = [2, 64], strides = [1, 1]} : vector<2x256xf32> to vector<2x64xf32>
    %391 = vector.extract_strided_slice %388 {offsets = [0, 128], sizes = [2, 64], strides = [1, 1]} : vector<2x256xf32> to vector<2x64xf32>
    %cst_134 = arith.constant 2.000000e+00 : f32
    %392 = vector.broadcast %cst_134 : f32 to vector<2x64xf32>
    %393 = arith.mulf %392, %391 : vector<2x64xf32>
    %cst_135 = arith.constant 1.000000e+00 : f32
    %394 = vector.broadcast %cst_135 : f32 to vector<2x64xf32>
    %395 = arith.subf %393, %394 : vector<2x64xf32>
    %396 = vector.extract_strided_slice %388 {offsets = [0, 192], sizes = [2, 64], strides = [1, 1]} : vector<2x256xf32> to vector<2x64xf32>
    %397 = arith.mulf %390, %367 : vector<2x64xf32>
    %398 = arith.mulf %389, %395 : vector<2x64xf32>
    %399 = arith.addf %397, %398 : vector<2x64xf32>
    %cst_136 = arith.constant 2.000000e+00 : f32
    %400 = vector.broadcast %cst_136 : f32 to vector<2x64xf32>
    %401 = arith.mulf %400, %399 : vector<2x64xf32>
    %402 = arith.negf %401 : vector<2x64xf32>
    %403 = math.exp %402 : vector<2x64xf32>
    %cst_137 = arith.constant 1.000000e+00 : f32
    %404 = vector.broadcast %cst_137 : f32 to vector<2x64xf32>
    %405 = arith.addf %404, %403 : vector<2x64xf32>
    %406 = arith.divf %404, %405 : vector<2x64xf32>
    %cst_138 = arith.constant 2.000000e+00 : f32
    %407 = vector.broadcast %cst_138 : f32 to vector<2x64xf32>
    %408 = arith.mulf %407, %406 : vector<2x64xf32>
    %cst_139 = arith.constant 1.000000e+00 : f32
    %409 = vector.broadcast %cst_139 : f32 to vector<2x64xf32>
    %410 = arith.subf %408, %409 : vector<2x64xf32>
    %411 = arith.mulf %396, %410 : vector<2x64xf32>
    %412 = arith.maximumf %380, %411 : vector<2x64xf32>
    %413 = vector.extract_strided_slice %280 {offsets = [8, 0], sizes = [2, 256], strides = [1, 1]} : vector<16x256xf32> to vector<2x256xf32>
    %cst_140 = arith.constant dense<0.000000e+00> : vector<2x256xf32>
    %414 = tpu.matmul %411, %281, %cst_140 {dimension_numbers = #tpu.dot_dimension_numbers<[1], [0], [0], [1], [0, 0, 1, 1], [], []>} : vector<2x64xf32>, vector<64x256xf32>, vector<2x256xf32> -> vector<2x256xf32>
    %415 = arith.addf %413, %414 : vector<2x256xf32>
    %416 = arith.negf %415 : vector<2x256xf32>
    %417 = math.exp %416 : vector<2x256xf32>
    %cst_141 = arith.constant 1.000000e+00 : f32
    %418 = vector.broadcast %cst_141 : f32 to vector<2x256xf32>
    %419 = arith.addf %418, %417 : vector<2x256xf32>
    %420 = arith.divf %418, %419 : vector<2x256xf32>
    %421 = vector.extract_strided_slice %420 {offsets = [0, 0], sizes = [2, 64], strides = [1, 1]} : vector<2x256xf32> to vector<2x64xf32>
    %422 = vector.extract_strided_slice %420 {offsets = [0, 64], sizes = [2, 64], strides = [1, 1]} : vector<2x256xf32> to vector<2x64xf32>
    %423 = vector.extract_strided_slice %420 {offsets = [0, 128], sizes = [2, 64], strides = [1, 1]} : vector<2x256xf32> to vector<2x64xf32>
    %cst_142 = arith.constant 2.000000e+00 : f32
    %424 = vector.broadcast %cst_142 : f32 to vector<2x64xf32>
    %425 = arith.mulf %424, %423 : vector<2x64xf32>
    %cst_143 = arith.constant 1.000000e+00 : f32
    %426 = vector.broadcast %cst_143 : f32 to vector<2x64xf32>
    %427 = arith.subf %425, %426 : vector<2x64xf32>
    %428 = vector.extract_strided_slice %420 {offsets = [0, 192], sizes = [2, 64], strides = [1, 1]} : vector<2x256xf32> to vector<2x64xf32>
    %429 = arith.mulf %422, %399 : vector<2x64xf32>
    %430 = arith.mulf %421, %427 : vector<2x64xf32>
    %431 = arith.addf %429, %430 : vector<2x64xf32>
    %cst_144 = arith.constant 2.000000e+00 : f32
    %432 = vector.broadcast %cst_144 : f32 to vector<2x64xf32>
    %433 = arith.mulf %432, %431 : vector<2x64xf32>
    %434 = arith.negf %433 : vector<2x64xf32>
    %435 = math.exp %434 : vector<2x64xf32>
    %cst_145 = arith.constant 1.000000e+00 : f32
    %436 = vector.broadcast %cst_145 : f32 to vector<2x64xf32>
    %437 = arith.addf %436, %435 : vector<2x64xf32>
    %438 = arith.divf %436, %437 : vector<2x64xf32>
    %cst_146 = arith.constant 2.000000e+00 : f32
    %439 = vector.broadcast %cst_146 : f32 to vector<2x64xf32>
    %440 = arith.mulf %439, %438 : vector<2x64xf32>
    %cst_147 = arith.constant 1.000000e+00 : f32
    %441 = vector.broadcast %cst_147 : f32 to vector<2x64xf32>
    %442 = arith.subf %440, %441 : vector<2x64xf32>
    %443 = arith.mulf %428, %442 : vector<2x64xf32>
    %444 = arith.maximumf %412, %443 : vector<2x64xf32>
    %445 = vector.extract_strided_slice %280 {offsets = [10, 0], sizes = [2, 256], strides = [1, 1]} : vector<16x256xf32> to vector<2x256xf32>
    %cst_148 = arith.constant dense<0.000000e+00> : vector<2x256xf32>
    %446 = tpu.matmul %443, %281, %cst_148 {dimension_numbers = #tpu.dot_dimension_numbers<[1], [0], [0], [1], [0, 0, 1, 1], [], []>} : vector<2x64xf32>, vector<64x256xf32>, vector<2x256xf32> -> vector<2x256xf32>
    %447 = arith.addf %445, %446 : vector<2x256xf32>
    %448 = arith.negf %447 : vector<2x256xf32>
    %449 = math.exp %448 : vector<2x256xf32>
    %cst_149 = arith.constant 1.000000e+00 : f32
    %450 = vector.broadcast %cst_149 : f32 to vector<2x256xf32>
    %451 = arith.addf %450, %449 : vector<2x256xf32>
    %452 = arith.divf %450, %451 : vector<2x256xf32>
    %453 = vector.extract_strided_slice %452 {offsets = [0, 0], sizes = [2, 64], strides = [1, 1]} : vector<2x256xf32> to vector<2x64xf32>
    %454 = vector.extract_strided_slice %452 {offsets = [0, 64], sizes = [2, 64], strides = [1, 1]} : vector<2x256xf32> to vector<2x64xf32>
    %455 = vector.extract_strided_slice %452 {offsets = [0, 128], sizes = [2, 64], strides = [1, 1]} : vector<2x256xf32> to vector<2x64xf32>
    %cst_150 = arith.constant 2.000000e+00 : f32
    %456 = vector.broadcast %cst_150 : f32 to vector<2x64xf32>
    %457 = arith.mulf %456, %455 : vector<2x64xf32>
    %cst_151 = arith.constant 1.000000e+00 : f32
    %458 = vector.broadcast %cst_151 : f32 to vector<2x64xf32>
    %459 = arith.subf %457, %458 : vector<2x64xf32>
    %460 = vector.extract_strided_slice %452 {offsets = [0, 192], sizes = [2, 64], strides = [1, 1]} : vector<2x256xf32> to vector<2x64xf32>
    %461 = arith.mulf %454, %431 : vector<2x64xf32>
    %462 = arith.mulf %453, %459 : vector<2x64xf32>
    %463 = arith.addf %461, %462 : vector<2x64xf32>
    %cst_152 = arith.constant 2.000000e+00 : f32
    %464 = vector.broadcast %cst_152 : f32 to vector<2x64xf32>
    %465 = arith.mulf %464, %463 : vector<2x64xf32>
    %466 = arith.negf %465 : vector<2x64xf32>
    %467 = math.exp %466 : vector<2x64xf32>
    %cst_153 = arith.constant 1.000000e+00 : f32
    %468 = vector.broadcast %cst_153 : f32 to vector<2x64xf32>
    %469 = arith.addf %468, %467 : vector<2x64xf32>
    %470 = arith.divf %468, %469 : vector<2x64xf32>
    %cst_154 = arith.constant 2.000000e+00 : f32
    %471 = vector.broadcast %cst_154 : f32 to vector<2x64xf32>
    %472 = arith.mulf %471, %470 : vector<2x64xf32>
    %cst_155 = arith.constant 1.000000e+00 : f32
    %473 = vector.broadcast %cst_155 : f32 to vector<2x64xf32>
    %474 = arith.subf %472, %473 : vector<2x64xf32>
    %475 = arith.mulf %460, %474 : vector<2x64xf32>
    %476 = arith.maximumf %444, %475 : vector<2x64xf32>
    %477 = vector.extract_strided_slice %280 {offsets = [12, 0], sizes = [2, 256], strides = [1, 1]} : vector<16x256xf32> to vector<2x256xf32>
    %cst_156 = arith.constant dense<0.000000e+00> : vector<2x256xf32>
    %478 = tpu.matmul %475, %281, %cst_156 {dimension_numbers = #tpu.dot_dimension_numbers<[1], [0], [0], [1], [0, 0, 1, 1], [], []>} : vector<2x64xf32>, vector<64x256xf32>, vector<2x256xf32> -> vector<2x256xf32>
    %479 = arith.addf %477, %478 : vector<2x256xf32>
    %480 = arith.negf %479 : vector<2x256xf32>
    %481 = math.exp %480 : vector<2x256xf32>
    %cst_157 = arith.constant 1.000000e+00 : f32
    %482 = vector.broadcast %cst_157 : f32 to vector<2x256xf32>
    %483 = arith.addf %482, %481 : vector<2x256xf32>
    %484 = arith.divf %482, %483 : vector<2x256xf32>
    %485 = vector.extract_strided_slice %484 {offsets = [0, 0], sizes = [2, 64], strides = [1, 1]} : vector<2x256xf32> to vector<2x64xf32>
    %486 = vector.extract_strided_slice %484 {offsets = [0, 64], sizes = [2, 64], strides = [1, 1]} : vector<2x256xf32> to vector<2x64xf32>
    %487 = vector.extract_strided_slice %484 {offsets = [0, 128], sizes = [2, 64], strides = [1, 1]} : vector<2x256xf32> to vector<2x64xf32>
    %cst_158 = arith.constant 2.000000e+00 : f32
    %488 = vector.broadcast %cst_158 : f32 to vector<2x64xf32>
    %489 = arith.mulf %488, %487 : vector<2x64xf32>
    %cst_159 = arith.constant 1.000000e+00 : f32
    %490 = vector.broadcast %cst_159 : f32 to vector<2x64xf32>
    %491 = arith.subf %489, %490 : vector<2x64xf32>
    %492 = vector.extract_strided_slice %484 {offsets = [0, 192], sizes = [2, 64], strides = [1, 1]} : vector<2x256xf32> to vector<2x64xf32>
    %493 = arith.mulf %486, %463 : vector<2x64xf32>
    %494 = arith.mulf %485, %491 : vector<2x64xf32>
    %495 = arith.addf %493, %494 : vector<2x64xf32>
    %cst_160 = arith.constant 2.000000e+00 : f32
    %496 = vector.broadcast %cst_160 : f32 to vector<2x64xf32>
    %497 = arith.mulf %496, %495 : vector<2x64xf32>
    %498 = arith.negf %497 : vector<2x64xf32>
    %499 = math.exp %498 : vector<2x64xf32>
    %cst_161 = arith.constant 1.000000e+00 : f32
    %500 = vector.broadcast %cst_161 : f32 to vector<2x64xf32>
    %501 = arith.addf %500, %499 : vector<2x64xf32>
    %502 = arith.divf %500, %501 : vector<2x64xf32>
    %cst_162 = arith.constant 2.000000e+00 : f32
    %503 = vector.broadcast %cst_162 : f32 to vector<2x64xf32>
    %504 = arith.mulf %503, %502 : vector<2x64xf32>
    %cst_163 = arith.constant 1.000000e+00 : f32
    %505 = vector.broadcast %cst_163 : f32 to vector<2x64xf32>
    %506 = arith.subf %504, %505 : vector<2x64xf32>
    %507 = arith.mulf %492, %506 : vector<2x64xf32>
    %508 = arith.maximumf %476, %507 : vector<2x64xf32>
    %509 = vector.extract_strided_slice %280 {offsets = [14, 0], sizes = [2, 256], strides = [1, 1]} : vector<16x256xf32> to vector<2x256xf32>
    %cst_164 = arith.constant dense<0.000000e+00> : vector<2x256xf32>
    %510 = tpu.matmul %507, %281, %cst_164 {dimension_numbers = #tpu.dot_dimension_numbers<[1], [0], [0], [1], [0, 0, 1, 1], [], []>} : vector<2x64xf32>, vector<64x256xf32>, vector<2x256xf32> -> vector<2x256xf32>
    %511 = arith.addf %509, %510 : vector<2x256xf32>
    %512 = arith.negf %511 : vector<2x256xf32>
    %513 = math.exp %512 : vector<2x256xf32>
    %cst_165 = arith.constant 1.000000e+00 : f32
    %514 = vector.broadcast %cst_165 : f32 to vector<2x256xf32>
    %515 = arith.addf %514, %513 : vector<2x256xf32>
    %516 = arith.divf %514, %515 : vector<2x256xf32>
    %517 = vector.extract_strided_slice %516 {offsets = [0, 0], sizes = [2, 64], strides = [1, 1]} : vector<2x256xf32> to vector<2x64xf32>
    %518 = vector.extract_strided_slice %516 {offsets = [0, 64], sizes = [2, 64], strides = [1, 1]} : vector<2x256xf32> to vector<2x64xf32>
    %519 = vector.extract_strided_slice %516 {offsets = [0, 128], sizes = [2, 64], strides = [1, 1]} : vector<2x256xf32> to vector<2x64xf32>
    %cst_166 = arith.constant 2.000000e+00 : f32
    %520 = vector.broadcast %cst_166 : f32 to vector<2x64xf32>
    %521 = arith.mulf %520, %519 : vector<2x64xf32>
    %cst_167 = arith.constant 1.000000e+00 : f32
    %522 = vector.broadcast %cst_167 : f32 to vector<2x64xf32>
    %523 = arith.subf %521, %522 : vector<2x64xf32>
    %524 = vector.extract_strided_slice %516 {offsets = [0, 192], sizes = [2, 64], strides = [1, 1]} : vector<2x256xf32> to vector<2x64xf32>
    %525 = arith.mulf %518, %495 : vector<2x64xf32>
    %526 = arith.mulf %517, %523 : vector<2x64xf32>
    %527 = arith.addf %525, %526 : vector<2x64xf32>
    %cst_168 = arith.constant 2.000000e+00 : f32
    %528 = vector.broadcast %cst_168 : f32 to vector<2x64xf32>
    %529 = arith.mulf %528, %527 : vector<2x64xf32>
    %530 = arith.negf %529 : vector<2x64xf32>
    %531 = math.exp %530 : vector<2x64xf32>
    %cst_169 = arith.constant 1.000000e+00 : f32
    %532 = vector.broadcast %cst_169 : f32 to vector<2x64xf32>
    %533 = arith.addf %532, %531 : vector<2x64xf32>
    %534 = arith.divf %532, %533 : vector<2x64xf32>
    %cst_170 = arith.constant 2.000000e+00 : f32
    %535 = vector.broadcast %cst_170 : f32 to vector<2x64xf32>
    %536 = arith.mulf %535, %534 : vector<2x64xf32>
    %cst_171 = arith.constant 1.000000e+00 : f32
    %537 = vector.broadcast %cst_171 : f32 to vector<2x64xf32>
    %538 = arith.subf %536, %537 : vector<2x64xf32>
    %539 = arith.mulf %524, %538 : vector<2x64xf32>
    %540 = arith.maximumf %508, %539 : vector<2x64xf32>
    %c0_172 = arith.constant 0 : index
    %c0_173 = arith.constant 0 : index
    %541 = vector.load %arg2[%c0_172, %c0_173] : memref<192x128xf32, #tpu.memory_space<vmem>>, vector<64x128xf32>
    %cst_174 = arith.constant dense<0.000000e+00> : vector<2x128xf32>
    %542 = tpu.matmul %540, %541, %cst_174 {dimension_numbers = #tpu.dot_dimension_numbers<[1], [0], [0], [1], [0, 0, 1, 1], [], []>} : vector<2x64xf32>, vector<64x128xf32>, vector<2x128xf32> -> vector<2x128xf32>
    %543 = vector.broadcast %2 : vector<1x128xf32> to vector<2x128xf32>
    %544 = arith.addf %542, %543 : vector<2x128xf32>
    %cst_175 = arith.constant 0.000000e+00 : f32
    %545 = vector.broadcast %cst_175 : f32 to vector<2x128xf32>
    %546 = arith.maximumf %544, %545 : vector<2x128xf32>
    %c64_176 = arith.constant 64 : index
    %c0_177 = arith.constant 0 : index
    %547 = vector.load %arg2[%c64_176, %c0_177] : memref<192x128xf32, #tpu.memory_space<vmem>>, vector<128x128xf32>
    %cst_178 = arith.constant dense<0.000000e+00> : vector<2x128xf32>
    %548 = tpu.matmul %546, %547, %cst_178 {dimension_numbers = #tpu.dot_dimension_numbers<[1], [0], [0], [1], [0, 0, 1, 1], [], []>} : vector<2x128xf32>, vector<128x128xf32>, vector<2x128xf32> -> vector<2x128xf32>
    %549 = vector.broadcast %3 : vector<1x128xf32> to vector<2x128xf32>
    %550 = arith.addf %548, %549 : vector<2x128xf32>
    %551 = arith.negf %550 : vector<2x128xf32>
    %552 = math.exp %551 : vector<2x128xf32>
    %cst_179 = arith.constant 1.000000e+00 : f32
    %553 = vector.broadcast %cst_179 : f32 to vector<2x128xf32>
    %554 = arith.addf %553, %552 : vector<2x128xf32>
    %555 = arith.divf %553, %554 : vector<2x128xf32>
    %c0_180 = arith.constant 0 : index
    %c0_181 = arith.constant 0 : index
    %556 = vector.load %arg4[%c0_180, %c0_181] : memref<2x128xf32, #tpu.memory_space<vmem>>, vector<2x128xf32>
    tpu.vector_store %arg4[%c0_180, %c0_181], %555 {strides = array<i32>} : memref<2x128xf32, #tpu.memory_space<vmem>>, vector<2x128xf32>,
    return
  }
}

</mosaic_0001>

<llo_original>
// kernel: lstm_model_forward.1
$region0: #{lstm_model_forward.1}
  #allocation0 [shape = 'u32[]', space=smem, size = 0x4, offset = 0x4, fixed_abs, tag = 'smem constant byte address 0x4 - core index']
  #allocation1 [shape = 'u32[144,128]{1,0:T(1,128)}', space=vmem, size = 0x12000, scoped, tag = 'internal scratch']
  #allocation2 [shape = 'f32[16,128]{1,0:T(8,128)}', space=vmem, size = 0x2000, scoped, tag = 'scratch operand']
  %s0 = inlined_call_operand.vmem [shape: f32[16,128], index: 0, kind: input, shape index: {}]
  %s1 = inlined_call_operand.hbm [shape: f32[384,256], index: 1, kind: input, shape index: {}]
  %s2 = inlined_call_operand.vmem [shape: f32[192,128], index: 2, kind: input, shape index: {}]
  %s3 = inlined_call_operand.vmem [shape: f32[4,256], index: 3, kind: input, shape index: {}]
  %s4 = inlined_call_operand.hbm [shape: f32[2,128], index: 4, kind: output, shape index: {}]
  %s5 = sld [smem:[#allocation0]]
  $region30: #{lstm_model_forward.1} parent=0
    _
  %s7 = ssub.s32 1, %s5
  %s8 = scalar_select 0, %s7, %s5
  $region1: #{lstm_model_forward.1} parent=0
    #allocation3 [shape = 'u8[393216]{0}', space=vmem, size = 0x60000, scoped, tag = 'input window, operand 1, single buffered']
    #allocation4 [shape = 's32[1]{0}', space=sflag, size = 0x4, scoped, tag = 'scoped memory for lstm_model_forward.1']
    #allocation5 [shape = 's32[1]{0}', space=sflag, size = 0x4, scoped, tag = 'scoped memory for lstm_model_forward.1']
    #allocation6 [shape = 'u8[1024]{0}', space=vmem, size = 0x400, scoped, tag = 'output window, operand 0, single buffered']
    %9 = vsyncpa [#allocation4], 0
    %10 = vsyncpa [#allocation5], 0
    // Predicated region
    $region2: #{lstm_model_forward.1} parent=1 // pred_check
      _
    $region3: #{lstm_model_forward.1} parent=1 // pred_check_branch
      %12 = sbr.rel (0) target = $region5
    $region4: #{lstm_model_forward.1} parent=1 // pred_region
      _
    $region5: #{lstm_model_forward.1} parent=1 // pred_fallthru
      _
    // Predicated region
    $region6: #{lstm_model_forward.1} parent=1 // pred_check
      _
    $region7: #{lstm_model_forward.1} parent=1 // pred_check_branch
      %14 = sbr.rel (0) target = $region9
    $region8: #{lstm_model_forward.1} parent=1 // pred_region
      %s16 = ssub.s32 12288, 12288
      %17 = vsyncadd [#allocation4], %s16
      %s18 = sshll.u32 [#allocation3], 4
      %s19 = int_to_ptr.vmem [resolvable:$true] %s18
      %24 = dma.hbm_to_vmem [thread:$0]  %s1, 12288, %s19, [#allocation4], 256, 256, 16
    $region9: #{lstm_model_forward.1} parent=1 // pred_fallthru
      _
    // Predicated region
    $region10: #{lstm_model_forward.1} parent=1 // pred_check
      _
    $region11: #{lstm_model_forward.1} parent=1 // pred_check_branch
      %26 = sbr.rel (0) target = $region13
    $region12: #{lstm_model_forward.1} parent=1 // pred_region
      _
    $region13: #{lstm_model_forward.1} parent=1 // pred_fallthru
      _
    // Predicated region
    $region14: #{lstm_model_forward.1} parent=1 // pred_check
      _
    $region15: #{lstm_model_forward.1} parent=1 // pred_check_branch
      %28 = sbr.rel (0) target = $region17
    $region16: #{lstm_model_forward.1} parent=1 // pred_region
      _
    $region17: #{lstm_model_forward.1} parent=1 // pred_fallthru
      _
    // Predicated region
    $region18: #{lstm_model_forward.1} parent=1 // pred_check
      _
    $region19: #{lstm_model_forward.1} parent=1 // pred_check_branch
      %30 = sbr.rel (0) target = $region21
    $region20: #{lstm_model_forward.1} parent=1 // pred_region
      %31 = dma.done [#allocation4], 12288
    $region21: #{lstm_model_forward.1} parent=1 // pred_fallthru
      _
    %v32 = vld [vmem:[%s3] ss:$4 sm:$0x3]
    %s33 = scalar_lea.vmem %s3, 1
    %v34 = vld [vmem:[%s33] ss:$4 sm:$0x3]
    %v35 = vld [vmem:[%s3 + $0x2] sm:$0x1]
    %v36 = vld [vmem:[%s3 + $0x3] sm:$0x1]
    %v37 = vld [vmem:[%s0] sm:$0xff]
    %v38 = vld [vmem:[%s0 + $0x8] sm:$0xff]
    %v39 = vld [vmem:[#allocation3] sm:$0xff]
    %v40 = vld [vmem:[#allocation3 + $0x8] sm:$0xff]
    %v41 = vld [vmem:[#allocation3 + $0x10] sm:$0xff]
    %v42 = vld [vmem:[#allocation3 + $0x18] sm:$0xff]
    %v43 = vld [vmem:[#allocation3 + $0x20] sm:$0xff]
    %v44 = vld [vmem:[#allocation3 + $0x28] sm:$0xff]
    %v45 = vld [vmem:[#allocation3 + $0x30] sm:$0xff]
    %v46 = vld [vmem:[#allocation3 + $0x38] sm:$0xff]
    %v47 = vld [vmem:[#allocation3 + $0x40] sm:$0xff]
    %v48 = vld [vmem:[#allocation3 + $0x48] sm:$0xff]
    %v49 = vld [vmem:[#allocation3 + $0x50] sm:$0xff]
    %v50 = vld [vmem:[#allocation3 + $0x58] sm:$0xff]
    %v51 = vld [vmem:[#allocation3 + $0x60] sm:$0xff]
    %v52 = vld [vmem:[#allocation3 + $0x68] sm:$0xff]
    %v53 = vld [vmem:[#allocation3 + $0x70] sm:$0xff]
    %v54 = vld [vmem:[#allocation3 + $0x78] sm:$0xff]
    %v55 = vld [vmem:[#allocation3 + $0x80] sm:$0xff]
    %v56 = vld [vmem:[#allocation3 + $0x88] sm:$0xff]
    %v57 = vld [vmem:[#allocation3 + $0x90] sm:$0xff]
    %v58 = vld [vmem:[#allocation3 + $0x98] sm:$0xff]
    %v59 = vld [vmem:[#allocation3 + $0xa0] sm:$0xff]
    %v60 = vld [vmem:[#allocation3 + $0xa8] sm:$0xff]
    %v61 = vld [vmem:[#allocation3 + $0xb0] sm:$0xff]
    %v62 = vld [vmem:[#allocation3 + $0xb8] sm:$0xff]
    %v63 = vld [vmem:[#allocation3 + $0xc0] sm:$0xff]
    %v64 = vld [vmem:[#allocation3 + $0xc8] sm:$0xff]
    %v65 = vld [vmem:[#allocation3 + $0xd0] sm:$0xff]
    %v66 = vld [vmem:[#allocation3 + $0xd8] sm:$0xff]
    %v67 = vld [vmem:[#allocation3 + $0xe0] sm:$0xff]
    %v68 = vld [vmem:[#allocation3 + $0xe8] sm:$0xff]
    %v69 = vld [vmem:[#allocation3 + $0xf0] sm:$0xff]
    %v70 = vld [vmem:[#allocation3 + $0xf8] sm:$0xff]
    %v72 = vlaneseq
    %v73 = vshrl.u32 %v72, 7
    %v74 = vsub.s32 0, %v73
    %v75 = vrot.slane %v32, %v74
    %v76 = vlaneseq
    %v77 = vshrl.u32 %v76, 7
    %v78 = vsub.s32 1, %v77
    %v79 = vrot.slane %v32, %v78
    %82 = vmatprep.subr.mxu0 %v40
    %83 = vmatpush1.msra.mxu0 %v39
    %84 = vmatprep.subr.mxu0 %v42
    %85 = vmatpush1.msra.mxu0 %v41
    %86 = vmatprep.subr.mxu0 %v44
    %87 = vmatpush1.msra.mxu0 %v43
    %88 = vmatprep.subr.mxu0 %v46
    %89 = vmatpush1.msra.mxu0 %v45
    %90 = vmatprep.subr.mxu0 %v48
    %91 = vmatpush1.msra.mxu0 %v47
    %92 = vmatprep.subr.mxu0 %v50
    %93 = vmatpush1.msra.mxu0 %v49
    %94 = vmatprep.subr.mxu0 %v52
    %95 = vmatpush1.msra.mxu0 %v51
    %96 = vmatprep.subr.mxu0 %v54
    %97 = vmatpush1.msra.mxu0 %v53
    %98 = vmatprep.subr.mxu0 %v56
    %99 = vmatpush1.msra.mxu0 %v55
    %100 = vmatprep.subr.mxu0 %v58
    %101 = vmatpush1.msra.mxu0 %v57
    %102 = vmatprep.subr.mxu0 %v60
    %103 = vmatpush1.msra.mxu0 %v59
    %104 = vmatprep.subr.mxu0 %v62
    %105 = vmatpush1.msra.mxu0 %v61
    %106 = vmatprep.subr.mxu0 %v64
    %107 = vmatpush1.msra.mxu0 %v63
    %108 = vmatprep.subr.mxu0 %v66
    %109 = vmatpush1.msra.mxu0 %v65
    %110 = vmatprep.subr.mxu0 %v68
    %111 = vmatpush1.msra.mxu0 %v67
    %112 = vmatprep.subr.mxu0 %v70
    %113 = vmatpush1.msra.mxu0 %v69
    %114 = vmatprep.subr.mxu0 0.0
    %115 = vmatpush1.msra.mxu0 0.0
    %116 = vmatprep.subr.mxu0 0.0
    %117 = vmatpush1.msra.mxu0 0.0
    %118 = vmatprep.subr.mxu0 0.0
    %119 = vmatpush1.msra.mxu0 0.0
    %120 = vmatprep.subr.mxu0 0.0
    %121 = vmatpush1.msra.mxu0 0.0
    %122 = vmatprep.subr.mxu0 0.0
    %123 = vmatpush1.msra.mxu0 0.0
    %124 = vmatprep.subr.mxu0 0.0
    %125 = vmatpush1.msra.mxu0 0.0
    %126 = vmatprep.subr.mxu0 0.0
    %127 = vmatpush1.msra.mxu0 0.0
    %128 = vmatprep.subr.mxu0 0.0
    %129 = vmatpush1.msra.mxu0 0.0
    %130 = vmatprep.subr.mxu0 0.0
    %131 = vmatpush1.msra.mxu0 0.0
    %132 = vmatprep.subr.mxu0 0.0
    %133 = vmatpush1.msra.mxu0 0.0
    %134 = vmatprep.subr.mxu0 0.0
    %135 = vmatpush1.msra.mxu0 0.0
    %136 = vmatprep.subr.mxu0 0.0
    %137 = vmatpush1.msra.mxu0 0.0
    %138 = vmatprep.subr.mxu0 0.0
    %139 = vmatpush1.msra.mxu0 0.0
    %140 = vmatprep.subr.mxu0 0.0
    %141 = vmatpush1.msra.mxu0 0.0
    %142 = vmatprep.subr.mxu0 0.0
    %143 = vmatpush1.msra.mxu0 0.0
    %144 = vmatprep.subr.mxu0 0.0
    %145 = vmatpush1.msra.mxu0 0.0
    %146 = vmatprep.mubr.f32.mxu0 0.0
    %147 = vmatmul.mubr.f32.gmra.mrb[0].mxu0 %v37
    %v148 = vpop.f32.mrb[0].mxu0
    %v149 = vadd.f32 %v75, %v148
    %v150 = vpop.f32.mrb[0].mxu0
    %v151 = vadd.f32 %v79, %v150
    %152 = vmatprep.mubr.f32.mxu0 0.0
    %153 = vmatmul.mubr.f32.gmra.mrb[0].mxu0 %v38
    %v154 = vpop.f32.mrb[0].mxu0
    %v155 = vadd.f32 %v75, %v154
    %v156 = vpop.f32.mrb[0].mxu0
    %v157 = vadd.f32 %v79, %v156
    %158 = vdwg.mxu0
    %v159 = vld [vmem:[#allocation3 + $0x100] sm:$0xff]
    %v160 = vld [vmem:[#allocation3 + $0x108] sm:$0xff]
    %v161 = vld [vmem:[#allocation3 + $0x110] sm:$0xff]
    %v162 = vld [vmem:[#allocation3 + $0x118] sm:$0xff]
    %v163 = vld [vmem:[#allocation3 + $0x120] sm:$0xff]
    %v164 = vld [vmem:[#allocation3 + $0x128] sm:$0xff]
    %v165 = vld [vmem:[#allocation3 + $0x130] sm:$0xff]
    %v166 = vld [vmem:[#allocation3 + $0x138] sm:$0xff]
    %v167 = vld [vmem:[#allocation3 + $0x140] sm:$0xff]
    %v168 = vld [vmem:[#allocation3 + $0x148] sm:$0xff]
    %v169 = vld [vmem:[#allocation3 + $0x150] sm:$0xff]
    %v170 = vld [vmem:[#allocation3 + $0x158] sm:$0xff]
    %v171 = vld [vmem:[#allocation3 + $0x160] sm:$0xff]
    %v172 = vld [vmem:[#allocation3 + $0x168] sm:$0xff]
    %v173 = vld [vmem:[#allocation3 + $0x170] sm:$0xff]
    %v174 = vld [vmem:[#allocation3 + $0x178] sm:$0xff]
    %vm175 = vcmask 523264
    %v177 = vsel %vm175, 0.0, 0
    %179 = vmatprep.subr.mxu0 %v160
    %180 = vmatpush1.msra.mxu0 %v159
    %181 = vmatprep.subr.mxu0 %v162
    %182 = vmatpush1.msra.mxu0 %v161
    %183 = vmatprep.subr.mxu0 %v164
    %184 = vmatpush1.msra.mxu0 %v163
    %185 = vmatprep.subr.mxu0 %v166
    %186 = vmatpush1.msra.mxu0 %v165
    %187 = vmatprep.subr.mxu0 %v168
    %188 = vmatpush1.msra.mxu0 %v167
    %189 = vmatprep.subr.mxu0 %v170
    %190 = vmatpush1.msra.mxu0 %v169
    %191 = vmatprep.subr.mxu0 %v172
    %192 = vmatpush1.msra.mxu0 %v171
    %193 = vmatprep.subr.mxu0 %v174
    %194 = vmatpush1.msra.mxu0 %v173
    %195 = vmatprep.subr.mxu0 0.0
    %196 = vmatpush1.msra.mxu0 0.0
    %197 = vmatprep.subr.mxu0 0.0
    %198 = vmatpush1.msra.mxu0 0.0
    %199 = vmatprep.subr.mxu0 0.0
    %200 = vmatpush1.msra.mxu0 0.0
    %201 = vmatprep.subr.mxu0 0.0
    %202 = vmatpush1.msra.mxu0 0.0
    %203 = vmatprep.subr.mxu0 0.0
    %204 = vmatpush1.msra.mxu0 0.0
    %205 = vmatprep.subr.mxu0 0.0
    %206 = vmatpush1.msra.mxu0 0.0
    %207 = vmatprep.subr.mxu0 0.0
    %208 = vmatpush1.msra.mxu0 0.0
    %209 = vmatprep.subr.mxu0 0.0
    %210 = vmatpush1.msra.mxu0 0.0
    %211 = vmatprep.subr.mxu0 0.0
    %212 = vmatpush1.msra.mxu0 0.0
    %213 = vmatprep.subr.mxu0 0.0
    %214 = vmatpush1.msra.mxu0 0.0
    %215 = vmatprep.subr.mxu0 0.0
    %216 = vmatpush1.msra.mxu0 0.0
    %217 = vmatprep.subr.mxu0 0.0
    %218 = vmatpush1.msra.mxu0 0.0
    %219 = vmatprep.subr.mxu0 0.0
    %220 = vmatpush1.msra.mxu0 0.0
    %221 = vmatprep.subr.mxu0 0.0
    %222 = vmatpush1.msra.mxu0 0.0
    %223 = vmatprep.subr.mxu0 0.0
    %224 = vmatpush1.msra.mxu0 0.0
    %225 = vmatprep.subr.mxu0 0.0
    %226 = vmatpush1.msra.mxu0 0.0
    %227 = vmatprep.subr.mxu0 0.0
    %228 = vmatpush1.msra.mxu0 0.0
    %229 = vmatprep.subr.mxu0 0.0
    %230 = vmatpush1.msra.mxu0 0.0
    %231 = vmatprep.subr.mxu0 0.0
    %232 = vmatpush1.msra.mxu0 0.0
    %233 = vmatprep.subr.mxu0 0.0
    %234 = vmatpush1.msra.mxu0 0.0
    %235 = vmatprep.subr.mxu0 0.0
    %236 = vmatpush1.msra.mxu0 0.0
    %237 = vmatprep.subr.mxu0 0.0
    %238 = vmatpush1.msra.mxu0 0.0
    %239 = vmatprep.subr.mxu0 0.0
    %240 = vmatpush1.msra.mxu0 0.0
    %241 = vmatprep.subr.mxu0 0.0
    %242 = vmatpush1.msra.mxu0 0.0
    %243 = vmatprep.mubr.f32.mxu0 0.0
    %244 = vmatmul.mubr.f32.gmra.mrb[0].mxu0 %v177
    %v245 = vpop.f32.mrb[0].mxu0
    %v246 = vadd.f32 0.0, %v245
    %v247 = vpop.f32.mrb[0].mxu0
    %v248 = vadd.f32 0.0, %v247
    %249 = vdwg.mxu0
    %v250 = vadd.f32 %v149, %v246
    %v251 = vadd.f32 %v151, %v248
    %v252 = vxor.u32 %v250, 2147483648
    %v253 = vxor.u32 %v251, 2147483648
    %v254 = vmul.f32 %v252, 1.442695
    %v255 = vpow.pop %v254
    %v256 = vmul.f32 %v253, 1.442695
    %v257 = vpow.pop %v256
    %v258 = vadd.f32 %v255, 1.0
    %v259 = vadd.f32 %v257, 1.0
    %v260 = vrcp.pop %v258
    %v261 = vmul.f32 1.0, %v260
    %v262 = vrcp.pop %v259
    %v263 = vmul.f32 1.0, %v262
    %v264 = vmul.f32 %v263, 2.0
    %v265 = vsub.f32 %v264, 1.0
    %v266 = vmul.f32 %v261, 0.0
    %v267 = vmul.f32 %v261, %v265
    %269 = vrot.lane.b32.xlu0 %v267, 64
    %v270 = vpop.permute.xlu0 %269
    %v272 = vadd.f32 %v266, %v270
    %v273 = vmul.f32 %v272, 2.0
    %v274 = vxor.u32 %v273, 2147483648
    %v275 = vmul.f32 %v274, 1.442695
    %v276 = vpow.pop %v275
    %v277 = vadd.f32 %v276, 1.0
    %v278 = vrcp.pop %v277
    %v279 = vmul.f32 1.0, %v278
    %v280 = vmul.f32 %v279, 2.0
    %v281 = vsub.f32 %v280, 1.0
    %v282 = vmul.f32 %v263, %v281
    %284 = vrot.lane.b32.xlu0 %v282, 64
    %v285 = vpop.permute.xlu0 %284
    %vm287 = vcmask 517120
    %288 = vst.msk [vmem:[#allocation2] sm:$0x3] %vm287, %v285
    %vm289 = vcmask 1041920
    %290 = vst.msk [vmem:[#allocation2 + $0xe] sm:$0x3] %vm289, %v282
    %v291 = vsel %vm175, %v285, 0
    %293 = vmatprep.subr.mxu0 %v160
    %294 = vmatpush1.msra.mxu0 %v159
    %295 = vmatprep.subr.mxu0 %v162
    %296 = vmatpush1.msra.mxu0 %v161
    %297 = vmatprep.subr.mxu0 %v164
    %298 = vmatpush1.msra.mxu0 %v163
    %299 = vmatprep.subr.mxu0 %v166
    %300 = vmatpush1.msra.mxu0 %v165
    %301 = vmatprep.subr.mxu0 %v168
    %302 = vmatpush1.msra.mxu0 %v167
    %303 = vmatprep.subr.mxu0 %v170
    %304 = vmatpush1.msra.mxu0 %v169
    %305 = vmatprep.subr.mxu0 %v172
    %306 = vmatpush1.msra.mxu0 %v171
    %307 = vmatprep.subr.mxu0 %v174
    %308 = vmatpush1.msra.mxu0 %v173
    %309 = vmatprep.subr.mxu0 0.0
    %310 = vmatpush1.msra.mxu0 0.0
    %311 = vmatprep.subr.mxu0 0.0
    %312 = vmatpush1.msra.mxu0 0.0
    %313 = vmatprep.subr.mxu0 0.0
    %314 = vmatpush1.msra.mxu0 0.0
    %315 = vmatprep.subr.mxu0 0.0
    %316 = vmatpush1.msra.mxu0 0.0
    %317 = vmatprep.subr.mxu0 0.0
    %318 = vmatpush1.msra.mxu0 0.0
    %319 = vmatprep.subr.mxu0 0.0
    %320 = vmatpush1.msra.mxu0 0.0
    %321 = vmatprep.subr.mxu0 0.0
    %322 = vmatpush1.msra.mxu0 0.0
    %323 = vmatprep.subr.mxu0 0.0
    %324 = vmatpush1.msra.mxu0 0.0
    %325 = vmatprep.subr.mxu0 0.0
    %326 = vmatpush1.msra.mxu0 0.0
    %327 = vmatprep.subr.mxu0 0.0
    %328 = vmatpush1.msra.mxu0 0.0
    %329 = vmatprep.subr.mxu0 0.0
    %330 = vmatpush1.msra.mxu0 0.0
    %331 = vmatprep.subr.mxu0 0.0
    %332 = vmatpush1.msra.mxu0 0.0
    %333 = vmatprep.subr.mxu0 0.0
    %334 = vmatpush1.msra.mxu0 0.0
    %335 = vmatprep.subr.mxu0 0.0
    %336 = vmatpush1.msra.mxu0 0.0
    %337 = vmatprep.subr.mxu0 0.0
    %338 = vmatpush1.msra.mxu0 0.0
    %339 = vmatprep.subr.mxu0 0.0
    %340 = vmatpush1.msra.mxu0 0.0
    %341 = vmatprep.subr.mxu0 0.0
    %342 = vmatpush1.msra.mxu0 0.0
    %343 = vmatprep.subr.mxu0 0.0
    %344 = vmatpush1.msra.mxu0 0.0
    %345 = vmatprep.subr.mxu0 0.0
    %346 = vmatpush1.msra.mxu0 0.0
    %347 = vmatprep.subr.mxu0 0.0
    %348 = vmatpush1.msra.mxu0 0.0
    %349 = vmatprep.subr.mxu0 0.0
    %350 = vmatpush1.msra.mxu0 0.0
    %351 = vmatprep.subr.mxu0 0.0
    %352 = vmatpush1.msra.mxu0 0.0
    %353 = vmatprep.subr.mxu0 0.0
    %354 = vmatpush1.msra.mxu0 0.0
    %355 = vmatprep.subr.mxu0 0.0
    %356 = vmatpush1.msra.mxu0 0.0
    %357 = vmatprep.mubr.f32.mxu0 0.0
    %358 = vmatmul.mubr.f32.gmra.mrb[0].mxu0 %v291
    %v359 = vpop.f32.mrb[0].mxu0
    %v360 = vadd.f32 0.0, %v359
    %v361 = vpop.f32.mrb[0].mxu0
    %v362 = vadd.f32 0.0, %v361
    %363 = vdwg.mxu0
    %v366 = vrot.slane %v360, 6
    %v367 = vrot.slane %v362, 6
    %v370 = vadd.f32 %v149, %v366
    %v371 = vadd.f32 %v151, %v367
    %v372 = vxor.u32 %v370, 2147483648
    %v373 = vxor.u32 %v371, 2147483648
    %v374 = vmul.f32 %v372, 1.442695
    %v375 = vpow.pop %v374
    %v376 = vmul.f32 %v373, 1.442695
    %v377 = vpow.pop %v376
    %v378 = vadd.f32 %v375, 1.0
    %v379 = vadd.f32 %v377, 1.0
    %v380 = vrcp.pop %v378
    %v381 = vmul.f32 1.0, %v380
    %v382 = vrcp.pop %v379
    %v383 = vmul.f32 1.0, %v382
    %v384 = vmul.f32 %v383, 2.0
    %v385 = vsub.f32 %v384, 1.0
    %v387 = vrot.slane %v272, 6
    %v389 = vmul.f32 %v381, %v387
    %v390 = vmul.f32 %v381, %v385
    %392 = vrot.lane.b32.xlu0 %v390, 64
    %v393 = vpop.permute.xlu0 %392
    %v395 = vadd.f32 %v389, %v393
    %v396 = vmul.f32 %v395, 2.0
    %v397 = vxor.u32 %v396, 2147483648
    %v398 = vmul.f32 %v397, 1.442695
    %v399 = vpow.pop %v398
    %v400 = vadd.f32 %v399, 1.0
    %v401 = vrcp.pop %v400
    %v402 = vmul.f32 1.0, %v401
    %v403 = vmul.f32 %v402, 2.0
    %v404 = vsub.f32 %v403, 1.0
    %v405 = vmul.f32 %v383, %v404
    %407 = vrot.lane.b32.xlu0 %v405, 64
    %v408 = vpop.permute.xlu0 %407
    %vm410 = vcmask 519170
    %411 = vst.msk [vmem:[#allocation2] sm:$0xc] %vm410, %v408
    %vm412 = vcmask 1043970
    %413 = vst.msk [vmem:[#allocation2 + $0xa] sm:$0xc] %vm412, %v405
    %v414 = vrot.slane %v405, 2
    %415 = vrot.lane.b32.xlu0 %v414, 64
    %v416 = vpop.permute.xlu0 %415
    %v417 = vsel %vm175, %v416, 0
    %419 = vmatprep.subr.mxu0 %v160
    %420 = vmatpush1.msra.mxu0 %v159
    %421 = vmatprep.subr.mxu0 %v162
    %422 = vmatpush1.msra.mxu0 %v161
    %423 = vmatprep.subr.mxu0 %v164
    %424 = vmatpush1.msra.mxu0 %v163
    %425 = vmatprep.subr.mxu0 %v166
    %426 = vmatpush1.msra.mxu0 %v165
    %427 = vmatprep.subr.mxu0 %v168
    %428 = vmatpush1.msra.mxu0 %v167
    %429 = vmatprep.subr.mxu0 %v170
    %430 = vmatpush1.msra.mxu0 %v169
    %431 = vmatprep.subr.mxu0 %v172
    %432 = vmatpush1.msra.mxu0 %v171
    %433 = vmatprep.subr.mxu0 %v174
    %434 = vmatpush1.msra.mxu0 %v173
    %435 = vmatprep.subr.mxu0 0.0
    %436 = vmatpush1.msra.mxu0 0.0
    %437 = vmatprep.subr.mxu0 0.0
    %438 = vmatpush1.msra.mxu0 0.0
    %439 = vmatprep.subr.mxu0 0.0
    %440 = vmatpush1.msra.mxu0 0.0
    %441 = vmatprep.subr.mxu0 0.0
    %442 = vmatpush1.msra.mxu0 0.0
    %443 = vmatprep.subr.mxu0 0.0
    %444 = vmatpush1.msra.mxu0 0.0
    %445 = vmatprep.subr.mxu0 0.0
    %446 = vmatpush1.msra.mxu0 0.0
    %447 = vmatprep.subr.mxu0 0.0
    %448 = vmatpush1.msra.mxu0 0.0
    %449 = vmatprep.subr.mxu0 0.0
    %450 = vmatpush1.msra.mxu0 0.0
    %451 = vmatprep.subr.mxu0 0.0
    %452 = vmatpush1.msra.mxu0 0.0
    %453 = vmatprep.subr.mxu0 0.0
    %454 = vmatpush1.msra.mxu0 0.0
    %455 = vmatprep.subr.mxu0 0.0
    %456 = vmatpush1.msra.mxu0 0.0
    %457 = vmatprep.subr.mxu0 0.0
    %458 = vmatpush1.msra.mxu0 0.0
    %459 = vmatprep.subr.mxu0 0.0
    %460 = vmatpush1.msra.mxu0 0.0
    %461 = vmatprep.subr.mxu0 0.0
    %462 = vmatpush1.msra.mxu0 0.0
    %463 = vmatprep.subr.mxu0 0.0
    %464 = vmatpush1.msra.mxu0 0.0
    %465 = vmatprep.subr.mxu0 0.0
    %466 = vmatpush1.msra.mxu0 0.0
    %467 = vmatprep.subr.mxu0 0.0
    %468 = vmatpush1.msra.mxu0 0.0
    %469 = vmatprep.subr.mxu0 0.0
    %470 = vmatpush1.msra.mxu0 0.0
    %471 = vmatprep.subr.mxu0 0.0
    %472 = vmatpush1.msra.mxu0 0.0
    %473 = vmatprep.subr.mxu0 0.0
    %474 = vmatpush1.msra.mxu0 0.0
    %475 = vmatprep.subr.mxu0 0.0
    %476 = vmatpush1.msra.mxu0 0.0
    %477 = vmatprep.subr.mxu0 0.0
    %478 = vmatpush1.msra.mxu0 0.0
    %479 = vmatprep.subr.mxu0 0.0
    %480 = vmatpush1.msra.mxu0 0.0
    %481 = vmatprep.subr.mxu0 0.0
    %482 = vmatpush1.msra.mxu0 0.0
    %483 = vmatprep.mubr.f32.mxu0 0.0
    %484 = vmatmul.mubr.f32.gmra.mrb[0].mxu0 %v417
    %v485 = vpop.f32.mrb[0].mxu0
    %v486 = vadd.f32 0.0, %v485
    %v487 = vpop.f32.mrb[0].mxu0
    %v488 = vadd.f32 0.0, %v487
    %489 = vdwg.mxu0
    %v492 = vrot.slane %v486, 4
    %v493 = vrot.slane %v488, 4
    %v496 = vadd.f32 %v149, %v492
    %v497 = vadd.f32 %v151, %v493
    %v498 = vxor.u32 %v496, 2147483648
    %v499 = vxor.u32 %v497, 2147483648
    %v500 = vmul.f32 %v498, 1.442695
    %v501 = vpow.pop %v500
    %v502 = vmul.f32 %v499, 1.442695
    %v503 = vpow.pop %v502
    %v504 = vadd.f32 %v501, 1.0
    %v505 = vadd.f32 %v503, 1.0
    %v506 = vrcp.pop %v504
    %v507 = vmul.f32 1.0, %v506
    %v508 = vrcp.pop %v505
    %v509 = vmul.f32 1.0, %v508
    %v510 = vmul.f32 %v509, 2.0
    %v511 = vsub.f32 %v510, 1.0
    %v513 = vrot.slane %v395, 6
    %v515 = vmul.f32 %v507, %v513
    %v516 = vmul.f32 %v507, %v511
    %518 = vrot.lane.b32.xlu0 %v516, 64
    %v519 = vpop.permute.xlu0 %518
    %v521 = vadd.f32 %v515, %v519
    %v522 = vmul.f32 %v521, 2.0
    %v523 = vxor.u32 %v522, 2147483648
    %v524 = vmul.f32 %v523, 1.442695
    %v525 = vpow.pop %v524
    %v526 = vadd.f32 %v525, 1.0
    %v527 = vrcp.pop %v526
    %v528 = vmul.f32 1.0, %v527
    %v529 = vmul.f32 %v528, 2.0
    %v530 = vsub.f32 %v529, 1.0
    %v531 = vmul.f32 %v509, %v530
    %533 = vrot.lane.b32.xlu0 %v531, 64
    %v534 = vpop.permute.xlu0 %533
    %vm536 = vcmask 521220
    %537 = vst.msk [vmem:[#allocation2] sm:$0x30] %vm536, %v534
    %vm538 = vcmask 1046020
    %539 = vst.msk [vmem:[#allocation2 + $0x6] sm:$0x30] %vm538, %v531
    %v540 = vrot.slane %v531, 4
    %541 = vrot.lane.b32.xlu0 %v540, 64
    %v542 = vpop.permute.xlu0 %541
    %v543 = vsel %vm175, %v542, 0
    %545 = vmatprep.subr.mxu0 %v160
    %546 = vmatpush1.msra.mxu0 %v159
    %547 = vmatprep.subr.mxu0 %v162
    %548 = vmatpush1.msra.mxu0 %v161
    %549 = vmatprep.subr.mxu0 %v164
    %550 = vmatpush1.msra.mxu0 %v163
    %551 = vmatprep.subr.mxu0 %v166
    %552 = vmatpush1.msra.mxu0 %v165
    %553 = vmatprep.subr.mxu0 %v168
    %554 = vmatpush1.msra.mxu0 %v167
    %555 = vmatprep.subr.mxu0 %v170
    %556 = vmatpush1.msra.mxu0 %v169
    %557 = vmatprep.subr.mxu0 %v172
    %558 = vmatpush1.msra.mxu0 %v171
    %559 = vmatprep.subr.mxu0 %v174
    %560 = vmatpush1.msra.mxu0 %v173
    %561 = vmatprep.subr.mxu0 0.0
    %562 = vmatpush1.msra.mxu0 0.0
    %563 = vmatprep.subr.mxu0 0.0
    %564 = vmatpush1.msra.mxu0 0.0
    %565 = vmatprep.subr.mxu0 0.0
    %566 = vmatpush1.msra.mxu0 0.0
    %567 = vmatprep.subr.mxu0 0.0
    %568 = vmatpush1.msra.mxu0 0.0
    %569 = vmatprep.subr.mxu0 0.0
    %570 = vmatpush1.msra.mxu0 0.0
    %571 = vmatprep.subr.mxu0 0.0
    %572 = vmatpush1.msra.mxu0 0.0
    %573 = vmatprep.subr.mxu0 0.0
    %574 = vmatpush1.msra.mxu0 0.0
    %575 = vmatprep.subr.mxu0 0.0
    %576 = vmatpush1.msra.mxu0 0.0
    %577 = vmatprep.subr.mxu0 0.0
    %578 = vmatpush1.msra.mxu0 0.0
    %579 = vmatprep.subr.mxu0 0.0
    %580 = vmatpush1.msra.mxu0 0.0
    %581 = vmatprep.subr.mxu0 0.0
    %582 = vmatpush1.msra.mxu0 0.0
    %583 = vmatprep.subr.mxu0 0.0
    %584 = vmatpush1.msra.mxu0 0.0
    %585 = vmatprep.subr.mxu0 0.0
    %586 = vmatpush1.msra.mxu0 0.0
    %587 = vmatprep.subr.mxu0 0.0
    %588 = vmatpush1.msra.mxu0 0.0
    %589 = vmatprep.subr.mxu0 0.0
    %590 = vmatpush1.msra.mxu0 0.0
    %591 = vmatprep.subr.mxu0 0.0
    %592 = vmatpush1.msra.mxu0 0.0
    %593 = vmatprep.subr.mxu0 0.0
    %594 = vmatpush1.msra.mxu0 0.0
    %595 = vmatprep.subr.mxu0 0.0
    %596 = vmatpush1.msra.mxu0 0.0
    %597 = vmatprep.subr.mxu0 0.0
    %598 = vmatpush1.msra.mxu0 0.0
    %599 = vmatprep.subr.mxu0 0.0
    %600 = vmatpush1.msra.mxu0 0.0
    %601 = vmatprep.subr.mxu0 0.0
    %602 = vmatpush1.msra.mxu0 0.0
    %603 = vmatprep.subr.mxu0 0.0
    %604 = vmatpush1.msra.mxu0 0.0
    %605 = vmatprep.subr.mxu0 0.0
    %606 = vmatpush1.msra.mxu0 0.0
    %607 = vmatprep.subr.mxu0 0.0
    %608 = vmatpush1.msra.mxu0 0.0
    %609 = vmatprep.mubr.f32.mxu0 0.0
    %610 = vmatmul.mubr.f32.gmra.mrb[0].mxu0 %v543
    %v611 = vpop.f32.mrb[0].mxu0
    %v612 = vadd.f32 0.0, %v611
    %v613 = vpop.f32.mrb[0].mxu0
    %v614 = vadd.f32 0.0, %v613
    %615 = vdwg.mxu0
    %v618 = vrot.slane %v612, 2
    %v619 = vrot.slane %v614, 2
    %v622 = vadd.f32 %v149, %v618
    %v623 = vadd.f32 %v151, %v619
    %v624 = vxor.u32 %v622, 2147483648
    %v625 = vxor.u32 %v623, 2147483648
    %v626 = vmul.f32 %v624, 1.442695
    %v627 = vpow.pop %v626
    %v628 = vmul.f32 %v625, 1.442695
    %v629 = vpow.pop %v628
    %v630 = vadd.f32 %v627, 1.0
    %v631 = vadd.f32 %v629, 1.0
    %v632 = vrcp.pop %v630
    %v633 = vmul.f32 1.0, %v632
    %v634 = vrcp.pop %v631
    %v635 = vmul.f32 1.0, %v634
    %v636 = vmul.f32 %v635, 2.0
    %v637 = vsub.f32 %v636, 1.0
    %v639 = vrot.slane %v521, 6
    %v641 = vmul.f32 %v633, %v639
    %v642 = vmul.f32 %v633, %v637
    %644 = vrot.lane.b32.xlu0 %v642, 64
    %v645 = vpop.permute.xlu0 %644
    %v647 = vadd.f32 %v641, %v645
    %v648 = vmul.f32 %v647, 2.0
    %v649 = vxor.u32 %v648, 2147483648
    %v650 = vmul.f32 %v649, 1.442695
    %v651 = vpow.pop %v650
    %v652 = vadd.f32 %v651, 1.0
    %v653 = vrcp.pop %v652
    %v654 = vmul.f32 1.0, %v653
    %v655 = vmul.f32 %v654, 2.0
    %v656 = vsub.f32 %v655, 1.0
    %v657 = vmul.f32 %v635, %v656
    %659 = vrot.lane.b32.xlu0 %v657, 64
    %v660 = vpop.permute.xlu0 %659
    %vm662 = vcmask 523270
    %663 = vst.msk [vmem:[#allocation2] sm:$0xc0] %vm662, %v660
    %vm664 = vcmask 1048070
    %665 = vst.msk [vmem:[#allocation2 + $0x2] sm:$0xc0] %vm664, %v657
    %v666 = vrot.slane %v657, 6
    %667 = vrot.lane.b32.xlu0 %v666, 64
    %v668 = vpop.permute.xlu0 %667
    %v669 = vsel %vm175, %v668, 0
    %671 = vmatprep.subr.mxu0 %v160
    %672 = vmatpush1.msra.mxu0 %v159
    %673 = vmatprep.subr.mxu0 %v162
    %674 = vmatpush1.msra.mxu0 %v161
    %675 = vmatprep.subr.mxu0 %v164
    %676 = vmatpush1.msra.mxu0 %v163
    %677 = vmatprep.subr.mxu0 %v166
    %678 = vmatpush1.msra.mxu0 %v165
    %679 = vmatprep.subr.mxu0 %v168
    %680 = vmatpush1.msra.mxu0 %v167
    %681 = vmatprep.subr.mxu0 %v170
    %682 = vmatpush1.msra.mxu0 %v169
    %683 = vmatprep.subr.mxu0 %v172
    %684 = vmatpush1.msra.mxu0 %v171
    %685 = vmatprep.subr.mxu0 %v174
    %686 = vmatpush1.msra.mxu0 %v173
    %687 = vmatprep.subr.mxu0 0.0
    %688 = vmatpush1.msra.mxu0 0.0
    %689 = vmatprep.subr.mxu0 0.0
    %690 = vmatpush1.msra.mxu0 0.0
    %691 = vmatprep.subr.mxu0 0.0
    %692 = vmatpush1.msra.mxu0 0.0
    %693 = vmatprep.subr.mxu0 0.0
    %694 = vmatpush1.msra.mxu0 0.0
    %695 = vmatprep.subr.mxu0 0.0
    %696 = vmatpush1.msra.mxu0 0.0
    %697 = vmatprep.subr.mxu0 0.0
    %698 = vmatpush1.msra.mxu0 0.0
    %699 = vmatprep.subr.mxu0 0.0
    %700 = vmatpush1.msra.mxu0 0.0
    %701 = vmatprep.subr.mxu0 0.0
    %702 = vmatpush1.msra.mxu0 0.0
    %703 = vmatprep.subr.mxu0 0.0
    %704 = vmatpush1.msra.mxu0 0.0
    %705 = vmatprep.subr.mxu0 0.0
    %706 = vmatpush1.msra.mxu0 0.0
    %707 = vmatprep.subr.mxu0 0.0
    %708 = vmatpush1.msra.mxu0 0.0
    %709 = vmatprep.subr.mxu0 0.0
    %710 = vmatpush1.msra.mxu0 0.0
    %711 = vmatprep.subr.mxu0 0.0
    %712 = vmatpush1.msra.mxu0 0.0
    %713 = vmatprep.subr.mxu0 0.0
    %714 = vmatpush1.msra.mxu0 0.0
    %715 = vmatprep.subr.mxu0 0.0
    %716 = vmatpush1.msra.mxu0 0.0
    %717 = vmatprep.subr.mxu0 0.0
    %718 = vmatpush1.msra.mxu0 0.0
    %719 = vmatprep.subr.mxu0 0.0
    %720 = vmatpush1.msra.mxu0 0.0
    %721 = vmatprep.subr.mxu0 0.0
    %722 = vmatpush1.msra.mxu0 0.0
    %723 = vmatprep.subr.mxu0 0.0
    %724 = vmatpush1.msra.mxu0 0.0
    %725 = vmatprep.subr.mxu0 0.0
    %726 = vmatpush1.msra.mxu0 0.0
    %727 = vmatprep.subr.mxu0 0.0
    %728 = vmatpush1.msra.mxu0 0.0
    %729 = vmatprep.subr.mxu0 0.0
    %730 = vmatpush1.msra.mxu0 0.0
    %731 = vmatprep.subr.mxu0 0.0
    %732 = vmatpush1.msra.mxu0 0.0
    %733 = vmatprep.subr.mxu0 0.0
    %734 = vmatpush1.msra.mxu0 0.0
    %735 = vmatprep.mubr.f32.mxu0 0.0
    %736 = vmatmul.mubr.f32.gmra.mrb[0].mxu0 %v669
    %v737 = vpop.f32.mrb[0].mxu0
    %v738 = vadd.f32 0.0, %v737
    %v739 = vpop.f32.mrb[0].mxu0
    %v740 = vadd.f32 0.0, %v739
    %741 = vdwg.mxu0
    %v742 = vadd.f32 %v155, %v738
    %v743 = vadd.f32 %v157, %v740
    %v744 = vxor.u32 %v742, 2147483648
    %v745 = vxor.u32 %v743, 2147483648
    %v746 = vmul.f32 %v744, 1.442695
    %v747 = vpow.pop %v746
    %v748 = vmul.f32 %v745, 1.442695
    %v749 = vpow.pop %v748
    %v750 = vadd.f32 %v747, 1.0
    %v751 = vadd.f32 %v749, 1.0
    %v752 = vrcp.pop %v750
    %v753 = vmul.f32 1.0, %v752
    %v754 = vrcp.pop %v751
    %v755 = vmul.f32 1.0, %v754
    %v756 = vmul.f32 %v755, 2.0
    %v757 = vsub.f32 %v756, 1.0
    %v759 = vrot.slane %v647, 6
    %v761 = vmul.f32 %v753, %v759
    %v762 = vmul.f32 %v753, %v757
    %764 = vrot.lane.b32.xlu0 %v762, 64
    %v765 = vpop.permute.xlu0 %764
    %v767 = vadd.f32 %v761, %v765
    %v768 = vmul.f32 %v767, 2.0
    %v769 = vxor.u32 %v768, 2147483648
    %v770 = vmul.f32 %v769, 1.442695
    %v771 = vpow.pop %v770
    %v772 = vadd.f32 %v771, 1.0
    %v773 = vrcp.pop %v772
    %v774 = vmul.f32 1.0, %v773
    %v775 = vmul.f32 %v774, 2.0
    %v776 = vsub.f32 %v775, 1.0
    %v777 = vmul.f32 %v755, %v776
    %779 = vrot.lane.b32.xlu0 %v777, 64
    %v780 = vpop.permute.xlu0 %779
    %782 = vst.msk [vmem:[#allocation2 + $0x8] sm:$0x3] %vm287, %v780
    %783 = vst.msk [vmem:[#allocation2 + $0x6] sm:$0x3] %vm289, %v777
    %v784 = vsel %vm175, %v780, 0
    %786 = vmatprep.subr.mxu0 %v160
    %787 = vmatpush1.msra.mxu0 %v159
    %788 = vmatprep.subr.mxu0 %v162
    %789 = vmatpush1.msra.mxu0 %v161
    %790 = vmatprep.subr.mxu0 %v164
    %791 = vmatpush1.msra.mxu0 %v163
    %792 = vmatprep.subr.mxu0 %v166
    %793 = vmatpush1.msra.mxu0 %v165
    %794 = vmatprep.subr.mxu0 %v168
    %795 = vmatpush1.msra.mxu0 %v167
    %796 = vmatprep.subr.mxu0 %v170
    %797 = vmatpush1.msra.mxu0 %v169
    %798 = vmatprep.subr.mxu0 %v172
    %799 = vmatpush1.msra.mxu0 %v171
    %800 = vmatprep.subr.mxu0 %v174
    %801 = vmatpush1.msra.mxu0 %v173
    %802 = vmatprep.subr.mxu0 0.0
    %803 = vmatpush1.msra.mxu0 0.0
    %804 = vmatprep.subr.mxu0 0.0
    %805 = vmatpush1.msra.mxu0 0.0
    %806 = vmatprep.subr.mxu0 0.0
    %807 = vmatpush1.msra.mxu0 0.0
    %808 = vmatprep.subr.mxu0 0.0
    %809 = vmatpush1.msra.mxu0 0.0
    %810 = vmatprep.subr.mxu0 0.0
    %811 = vmatpush1.msra.mxu0 0.0
    %812 = vmatprep.subr.mxu0 0.0
    %813 = vmatpush1.msra.mxu0 0.0
    %814 = vmatprep.subr.mxu0 0.0
    %815 = vmatpush1.msra.mxu0 0.0
    %816 = vmatprep.subr.mxu0 0.0
    %817 = vmatpush1.msra.mxu0 0.0
    %818 = vmatprep.subr.mxu0 0.0
    %819 = vmatpush1.msra.mxu0 0.0
    %820 = vmatprep.subr.mxu0 0.0
    %821 = vmatpush1.msra.mxu0 0.0
    %822 = vmatprep.subr.mxu0 0.0
    %823 = vmatpush1.msra.mxu0 0.0
    %824 = vmatprep.subr.mxu0 0.0
    %825 = vmatpush1.msra.mxu0 0.0
    %826 = vmatprep.subr.mxu0 0.0
    %827 = vmatpush1.msra.mxu0 0.0
    %828 = vmatprep.subr.mxu0 0.0
    %829 = vmatpush1.msra.mxu0 0.0
    %830 = vmatprep.subr.mxu0 0.0
    %831 = vmatpush1.msra.mxu0 0.0
    %832 = vmatprep.subr.mxu0 0.0
    %833 = vmatpush1.msra.mxu0 0.0
    %834 = vmatprep.subr.mxu0 0.0
    %835 = vmatpush1.msra.mxu0 0.0
    %836 = vmatprep.subr.mxu0 0.0
    %837 = vmatpush1.msra.mxu0 0.0
    %838 = vmatprep.subr.mxu0 0.0
    %839 = vmatpush1.msra.mxu0 0.0
    %840 = vmatprep.subr.mxu0 0.0
    %841 = vmatpush1.msra.mxu0 0.0
    %842 = vmatprep.subr.mxu0 0.0
    %843 = vmatpush1.msra.mxu0 0.0
    %844 = vmatprep.subr.mxu0 0.0
    %845 = vmatpush1.msra.mxu0 0.0
    %846 = vmatprep.subr.mxu0 0.0
    %847 = vmatpush1.msra.mxu0 0.0
    %848 = vmatprep.subr.mxu0 0.0
    %849 = vmatpush1.msra.mxu0 0.0
    %850 = vmatprep.mubr.f32.mxu0 0.0
    %851 = vmatmul.mubr.f32.gmra.mrb[0].mxu0 %v784
    %v852 = vpop.f32.mrb[0].mxu0
    %v853 = vadd.f32 0.0, %v852
    %v854 = vpop.f32.mrb[0].mxu0
    %v855 = vadd.f32 0.0, %v854
    %856 = vdwg.mxu0
    %v859 = vrot.slane %v853, 6
    %v860 = vrot.slane %v855, 6
    %v863 = vadd.f32 %v155, %v859
    %v864 = vadd.f32 %v157, %v860
    %v865 = vxor.u32 %v863, 2147483648
    %v866 = vxor.u32 %v864, 2147483648
    %v867 = vmul.f32 %v865, 1.442695
    %v868 = vpow.pop %v867
    %v869 = vmul.f32 %v866, 1.442695
    %v870 = vpow.pop %v869
    %v871 = vadd.f32 %v868, 1.0
    %v872 = vadd.f32 %v870, 1.0
    %v873 = vrcp.pop %v871
    %v874 = vmul.f32 1.0, %v873
    %v875 = vrcp.pop %v872
    %v876 = vmul.f32 1.0, %v875
    %v877 = vmul.f32 %v876, 2.0
    %v878 = vsub.f32 %v877, 1.0
    %v880 = vrot.slane %v767, 6
    %v882 = vmul.f32 %v874, %v880
    %v883 = vmul.f32 %v874, %v878
    %885 = vrot.lane.b32.xlu0 %v883, 64
    %v886 = vpop.permute.xlu0 %885
    %v888 = vadd.f32 %v882, %v886
    %v889 = vmul.f32 %v888, 2.0
    %v890 = vxor.u32 %v889, 2147483648
    %v891 = vmul.f32 %v890, 1.442695
    %v892 = vpow.pop %v891
    %v893 = vadd.f32 %v892, 1.0
    %v894 = vrcp.pop %v893
    %v895 = vmul.f32 1.0, %v894
    %v896 = vmul.f32 %v895, 2.0
    %v897 = vsub.f32 %v896, 1.0
    %v898 = vmul.f32 %v876, %v897
    %900 = vrot.lane.b32.xlu0 %v898, 64
    %v901 = vpop.permute.xlu0 %900
    %903 = vst.msk [vmem:[#allocation2 + $0x8] sm:$0xc] %vm410, %v901
    %904 = vst.msk [vmem:[#allocation2 + $0x2] sm:$0xc] %vm412, %v898
    %v905 = vrot.slane %v898, 2
    %906 = vrot.lane.b32.xlu0 %v905, 64
    %v907 = vpop.permute.xlu0 %906
    %v908 = vsel %vm175, %v907, 0
    %910 = vmatprep.subr.mxu0 %v160
    %911 = vmatpush1.msra.mxu0 %v159
    %912 = vmatprep.subr.mxu0 %v162
    %913 = vmatpush1.msra.mxu0 %v161
    %914 = vmatprep.subr.mxu0 %v164
    %915 = vmatpush1.msra.mxu0 %v163
    %916 = vmatprep.subr.mxu0 %v166
    %917 = vmatpush1.msra.mxu0 %v165
    %918 = vmatprep.subr.mxu0 %v168
    %919 = vmatpush1.msra.mxu0 %v167
    %920 = vmatprep.subr.mxu0 %v170
    %921 = vmatpush1.msra.mxu0 %v169
    %922 = vmatprep.subr.mxu0 %v172
    %923 = vmatpush1.msra.mxu0 %v171
    %924 = vmatprep.subr.mxu0 %v174
    %925 = vmatpush1.msra.mxu0 %v173
    %926 = vmatprep.subr.mxu0 0.0
    %927 = vmatpush1.msra.mxu0 0.0
    %928 = vmatprep.subr.mxu0 0.0
    %929 = vmatpush1.msra.mxu0 0.0
    %930 = vmatprep.subr.mxu0 0.0
    %931 = vmatpush1.msra.mxu0 0.0
    %932 = vmatprep.subr.mxu0 0.0
    %933 = vmatpush1.msra.mxu0 0.0
    %934 = vmatprep.subr.mxu0 0.0
    %935 = vmatpush1.msra.mxu0 0.0
    %936 = vmatprep.subr.mxu0 0.0
    %937 = vmatpush1.msra.mxu0 0.0
    %938 = vmatprep.subr.mxu0 0.0
    %939 = vmatpush1.msra.mxu0 0.0
    %940 = vmatprep.subr.mxu0 0.0
    %941 = vmatpush1.msra.mxu0 0.0
    %942 = vmatprep.subr.mxu0 0.0
    %943 = vmatpush1.msra.mxu0 0.0
    %944 = vmatprep.subr.mxu0 0.0
    %945 = vmatpush1.msra.mxu0 0.0
    %946 = vmatprep.subr.mxu0 0.0
    %947 = vmatpush1.msra.mxu0 0.0
    %948 = vmatprep.subr.mxu0 0.0
    %949 = vmatpush1.msra.mxu0 0.0
    %950 = vmatprep.subr.mxu0 0.0
    %951 = vmatpush1.msra.mxu0 0.0
    %952 = vmatprep.subr.mxu0 0.0
    %953 = vmatpush1.msra.mxu0 0.0
    %954 = vmatprep.subr.mxu0 0.0
    %955 = vmatpush1.msra.mxu0 0.0
    %956 = vmatprep.subr.mxu0 0.0
    %957 = vmatpush1.msra.mxu0 0.0
    %958 = vmatprep.subr.mxu0 0.0
    %959 = vmatpush1.msra.mxu0 0.0
    %960 = vmatprep.subr.mxu0 0.0
    %961 = vmatpush1.msra.mxu0 0.0
    %962 = vmatprep.subr.mxu0 0.0
    %963 = vmatpush1.msra.mxu0 0.0
    %964 = vmatprep.subr.mxu0 0.0
    %965 = vmatpush1.msra.mxu0 0.0
    %966 = vmatprep.subr.mxu0 0.0
    %967 = vmatpush1.msra.mxu0 0.0
    %968 = vmatprep.subr.mxu0 0.0
    %969 = vmatpush1.msra.mxu0 0.0
    %970 = vmatprep.subr.mxu0 0.0
    %971 = vmatpush1.msra.mxu0 0.0
    %972 = vmatprep.subr.mxu0 0.0
    %973 = vmatpush1.msra.mxu0 0.0
    %974 = vmatprep.mubr.f32.mxu0 0.0
    %975 = vmatmul.mubr.f32.gmra.mrb[0].mxu0 %v908
    %v976 = vpop.f32.mrb[0].mxu0
    %v977 = vadd.f32 0.0, %v976
    %v978 = vpop.f32.mrb[0].mxu0
    %v979 = vadd.f32 0.0, %v978
    %980 = vdwg.mxu0
    %v983 = vrot.slane %v977, 4
    %v984 = vrot.slane %v979, 4
    %v987 = vadd.f32 %v155, %v983
    %v988 = vadd.f32 %v157, %v984
    %v989 = vxor.u32 %v987, 2147483648
    %v990 = vxor.u32 %v988, 2147483648
    %v991 = vmul.f32 %v989, 1.442695
    %v992 = vpow.pop %v991
    %v993 = vmul.f32 %v990, 1.442695
    %v994 = vpow.pop %v993
    %v995 = vadd.f32 %v992, 1.0
    %v996 = vadd.f32 %v994, 1.0
    %v997 = vrcp.pop %v995
    %v998 = vmul.f32 1.0, %v997
    %v999 = vrcp.pop %v996
    %v1000 = vmul.f32 1.0, %v999
    %v1001 = vmul.f32 %v1000, 2.0
    %v1002 = vsub.f32 %v1001, 1.0
    %v1004 = vrot.slane %v888, 6
    %v1006 = vmul.f32 %v998, %v1004
    %v1007 = vmul.f32 %v998, %v1002
    %1009 = vrot.lane.b32.xlu0 %v1007, 64
    %v1010 = vpop.permute.xlu0 %1009
    %v1012 = vadd.f32 %v1006, %v1010
    %v1013 = vmul.f32 %v1012, 2.0
    %v1014 = vxor.u32 %v1013, 2147483648
    %v1015 = vmul.f32 %v1014, 1.442695
    %v1016 = vpow.pop %v1015
    %v1017 = vadd.f32 %v1016, 1.0
    %v1018 = vrcp.pop %v1017
    %v1019 = vmul.f32 1.0, %v1018
    %v1020 = vmul.f32 %v1019, 2.0
    %v1021 = vsub.f32 %v1020, 1.0
    %v1022 = vmul.f32 %v1000, %v1021
    %1024 = vrot.lane.b32.xlu0 %v1022, 64
    %v1025 = vpop.permute.xlu0 %1024
    %1027 = vst.msk [vmem:[#allocation2 + $0x8] sm:$0x30] %vm536, %v1025
    %1028 = vst.msk [vmem:[#allocation2 - $0x2] sm:$0x30] %vm538, %v1022
    %v1029 = vrot.slane %v1022, 4
    %1030 = vrot.lane.b32.xlu0 %v1029, 64
    %v1031 = vpop.permute.xlu0 %1030
    %v1032 = vsel %vm175, %v1031, 0
    %1034 = vmatprep.subr.mxu0 %v160
    %1035 = vmatpush1.msra.mxu0 %v159
    %1036 = vmatprep.subr.mxu0 %v162
    %1037 = vmatpush1.msra.mxu0 %v161
    %1038 = vmatprep.subr.mxu0 %v164
    %1039 = vmatpush1.msra.mxu0 %v163
    %1040 = vmatprep.subr.mxu0 %v166
    %1041 = vmatpush1.msra.mxu0 %v165
    %1042 = vmatprep.subr.mxu0 %v168
    %1043 = vmatpush1.msra.mxu0 %v167
    %1044 = vmatprep.subr.mxu0 %v170
    %1045 = vmatpush1.msra.mxu0 %v169
    %1046 = vmatprep.subr.mxu0 %v172
    %1047 = vmatpush1.msra.mxu0 %v171
    %1048 = vmatprep.subr.mxu0 %v174
    %1049 = vmatpush1.msra.mxu0 %v173
    %1050 = vmatprep.subr.mxu0 0.0
    %1051 = vmatpush1.msra.mxu0 0.0
    %1052 = vmatprep.subr.mxu0 0.0
    %1053 = vmatpush1.msra.mxu0 0.0
    %1054 = vmatprep.subr.mxu0 0.0
    %1055 = vmatpush1.msra.mxu0 0.0
    %1056 = vmatprep.subr.mxu0 0.0
    %1057 = vmatpush1.msra.mxu0 0.0
    %1058 = vmatprep.subr.mxu0 0.0
    %1059 = vmatpush1.msra.mxu0 0.0
    %1060 = vmatprep.subr.mxu0 0.0
    %1061 = vmatpush1.msra.mxu0 0.0
    %1062 = vmatprep.subr.mxu0 0.0
    %1063 = vmatpush1.msra.mxu0 0.0
    %1064 = vmatprep.subr.mxu0 0.0
    %1065 = vmatpush1.msra.mxu0 0.0
    %1066 = vmatprep.subr.mxu0 0.0
    %1067 = vmatpush1.msra.mxu0 0.0
    %1068 = vmatprep.subr.mxu0 0.0
    %1069 = vmatpush1.msra.mxu0 0.0
    %1070 = vmatprep.subr.mxu0 0.0
    %1071 = vmatpush1.msra.mxu0 0.0
    %1072 = vmatprep.subr.mxu0 0.0
    %1073 = vmatpush1.msra.mxu0 0.0
    %1074 = vmatprep.subr.mxu0 0.0
    %1075 = vmatpush1.msra.mxu0 0.0
    %1076 = vmatprep.subr.mxu0 0.0
    %1077 = vmatpush1.msra.mxu0 0.0
    %1078 = vmatprep.subr.mxu0 0.0
    %1079 = vmatpush1.msra.mxu0 0.0
    %1080 = vmatprep.subr.mxu0 0.0
    %1081 = vmatpush1.msra.mxu0 0.0
    %1082 = vmatprep.subr.mxu0 0.0
    %1083 = vmatpush1.msra.mxu0 0.0
    %1084 = vmatprep.subr.mxu0 0.0
    %1085 = vmatpush1.msra.mxu0 0.0
    %1086 = vmatprep.subr.mxu0 0.0
    %1087 = vmatpush1.msra.mxu0 0.0
    %1088 = vmatprep.subr.mxu0 0.0
    %1089 = vmatpush1.msra.mxu0 0.0
    %1090 = vmatprep.subr.mxu0 0.0
    %1091 = vmatpush1.msra.mxu0 0.0
    %1092 = vmatprep.subr.mxu0 0.0
    %1093 = vmatpush1.msra.mxu0 0.0
    %1094 = vmatprep.subr.mxu0 0.0
    %1095 = vmatpush1.msra.mxu0 0.0
    %1096 = vmatprep.subr.mxu0 0.0
    %1097 = vmatpush1.msra.mxu0 0.0
    %1098 = vmatprep.mubr.f32.mxu0 0.0
    %1099 = vmatmul.mubr.f32.gmra.mrb[0].mxu0 %v1032
    %v1100 = vpop.f32.mrb[0].mxu0
    %v1101 = vadd.f32 0.0, %v1100
    %v1102 = vpop.f32.mrb[0].mxu0
    %v1103 = vadd.f32 0.0, %v1102
    %1104 = vdwg.mxu0
    %v1107 = vrot.slane %v1101, 2
    %v1108 = vrot.slane %v1103, 2
    %v1111 = vadd.f32 %v155, %v1107
    %v1112 = vadd.f32 %v157, %v1108
    %v1113 = vxor.u32 %v1111, 2147483648
    %v1114 = vxor.u32 %v1112, 2147483648
    %v1115 = vmul.f32 %v1113, 1.442695
    %v1116 = vpow.pop %v1115
    %v1117 = vmul.f32 %v1114, 1.442695
    %v1118 = vpow.pop %v1117
    %v1119 = vadd.f32 %v1116, 1.0
    %v1120 = vadd.f32 %v1118, 1.0
    %v1121 = vrcp.pop %v1119
    %v1122 = vmul.f32 1.0, %v1121
    %v1123 = vrcp.pop %v1120
    %v1124 = vmul.f32 1.0, %v1123
    %v1125 = vmul.f32 %v1124, 2.0
    %v1126 = vsub.f32 %v1125, 1.0
    %v1128 = vrot.slane %v1012, 6
    %v1130 = vmul.f32 %v1122, %v1128
    %v1131 = vmul.f32 %v1122, %v1126
    %1133 = vrot.lane.b32.xlu0 %v1131, 64
    %v1134 = vpop.permute.xlu0 %1133
    %v1136 = vadd.f32 %v1130, %v1134
    %v1137 = vmul.f32 %v1136, 2.0
    %v1138 = vxor.u32 %v1137, 2147483648
    %v1139 = vmul.f32 %v1138, 1.442695
    %v1140 = vpow.pop %v1139
    %v1141 = vadd.f32 %v1140, 1.0
    %v1142 = vrcp.pop %v1141
    %v1143 = vmul.f32 1.0, %v1142
    %v1144 = vmul.f32 %v1143, 2.0
    %v1145 = vsub.f32 %v1144, 1.0
    %v1146 = vmul.f32 %v1124, %v1145
    %1148 = vrot.lane.b32.xlu0 %v1146, 64
    %v1149 = vpop.permute.xlu0 %1148
    %1151 = vst.msk [vmem:[#allocation2 + $0x8] sm:$0xc0] %vm662, %v1149
    %1152 = vst.msk [vmem:[#allocation2 - $0x6] sm:$0xc0] %vm664, %v1146
    %v1153 = vld [vmem:[#allocation2] sm:$0xff]
    %v1154 = vld [vmem:[#allocation2 + $0x8] sm:$0xff]
    %v1155 = vld [vmem:[#allocation3 + $0x180] sm:$0xff]
    %v1156 = vld [vmem:[#allocation3 + $0x188] sm:$0xff]
    %v1157 = vld [vmem:[#allocation3 + $0x190] sm:$0xff]
    %v1158 = vld [vmem:[#allocation3 + $0x198] sm:$0xff]
    %v1159 = vld [vmem:[#allocation3 + $0x1a0] sm:$0xff]
    %v1160 = vld [vmem:[#allocation3 + $0x1a8] sm:$0xff]
    %v1161 = vld [vmem:[#allocation3 + $0x1b0] sm:$0xff]
    %v1162 = vld [vmem:[#allocation3 + $0x1b8] sm:$0xff]
    %v1163 = vld [vmem:[#allocation3 + $0x1c0] sm:$0xff]
    %v1164 = vld [vmem:[#allocation3 + $0x1c8] sm:$0xff]
    %v1165 = vld [vmem:[#allocation3 + $0x1d0] sm:$0xff]
    %v1166 = vld [vmem:[#allocation3 + $0x1d8] sm:$0xff]
    %v1167 = vld [vmem:[#allocation3 + $0x1e0] sm:$0xff]
    %v1168 = vld [vmem:[#allocation3 + $0x1e8] sm:$0xff]
    %v1169 = vld [vmem:[#allocation3 + $0x1f0] sm:$0xff]
    %v1170 = vld [vmem:[#allocation3 + $0x1f8] sm:$0xff]
    %v1171 = vld [vmem:[#allocation3 + $0x200] sm:$0xff]
    %v1172 = vld [vmem:[#allocation3 + $0x208] sm:$0xff]
    %v1173 = vld [vmem:[#allocation3 + $0x210] sm:$0xff]
    %v1174 = vld [vmem:[#allocation3 + $0x218] sm:$0xff]
    %v1175 = vld [vmem:[#allocation3 + $0x220] sm:$0xff]
    %v1176 = vld [vmem:[#allocation3 + $0x228] sm:$0xff]
    %v1177 = vld [vmem:[#allocation3 + $0x230] sm:$0xff]
    %v1178 = vld [vmem:[#allocation3 + $0x238] sm:$0xff]
    %v1179 = vld [vmem:[#allocation3 + $0x240] sm:$0xff]
    %v1180 = vld [vmem:[#allocation3 + $0x248] sm:$0xff]
    %v1181 = vld [vmem:[#allocation3 + $0x250] sm:$0xff]
    %v1182 = vld [vmem:[#allocation3 + $0x258] sm:$0xff]
    %v1183 = vld [vmem:[#allocation3 + $0x260] sm:$0xff]
    %v1184 = vld [vmem:[#allocation3 + $0x268] sm:$0xff]
    %v1185 = vld [vmem:[#allocation3 + $0x270] sm:$0xff]
    %v1186 = vld [vmem:[#allocation3 + $0x278] sm:$0xff]
    %v1188 = vlaneseq
    %v1189 = vshrl.u32 %v1188, 7
    %v1190 = vsub.s32 0, %v1189
    %v1191 = vrot.slane %v34, %v1190
    %v1192 = vlaneseq
    %v1193 = vshrl.u32 %v1192, 7
    %v1194 = vsub.s32 1, %v1193
    %v1195 = vrot.slane %v34, %v1194
    %1198 = vmatprep.subr.mxu0 %v1156
    %1199 = vmatpush1.msra.mxu0 %v1155
    %1200 = vmatprep.subr.mxu0 %v1158
    %1201 = vmatpush1.msra.mxu0 %v1157
    %1202 = vmatprep.subr.mxu0 %v1160
    %1203 = vmatpush1.msra.mxu0 %v1159
    %1204 = vmatprep.subr.mxu0 %v1162
    %1205 = vmatpush1.msra.mxu0 %v1161
    %1206 = vmatprep.subr.mxu0 %v1164
    %1207 = vmatpush1.msra.mxu0 %v1163
    %1208 = vmatprep.subr.mxu0 %v1166
    %1209 = vmatpush1.msra.mxu0 %v1165
    %1210 = vmatprep.subr.mxu0 %v1168
    %1211 = vmatpush1.msra.mxu0 %v1167
    %1212 = vmatprep.subr.mxu0 %v1170
    %1213 = vmatpush1.msra.mxu0 %v1169
    %1214 = vmatprep.subr.mxu0 %v1172
    %1215 = vmatpush1.msra.mxu0 %v1171
    %1216 = vmatprep.subr.mxu0 %v1174
    %1217 = vmatpush1.msra.mxu0 %v1173
    %1218 = vmatprep.subr.mxu0 %v1176
    %1219 = vmatpush1.msra.mxu0 %v1175
    %1220 = vmatprep.subr.mxu0 %v1178
    %1221 = vmatpush1.msra.mxu0 %v1177
    %1222 = vmatprep.subr.mxu0 %v1180
    %1223 = vmatpush1.msra.mxu0 %v1179
    %1224 = vmatprep.subr.mxu0 %v1182
    %1225 = vmatpush1.msra.mxu0 %v1181
    %1226 = vmatprep.subr.mxu0 %v1184
    %1227 = vmatpush1.msra.mxu0 %v1183
    %1228 = vmatprep.subr.mxu0 %v1186
    %1229 = vmatpush1.msra.mxu0 %v1185
    %1230 = vmatprep.subr.mxu0 0.0
    %1231 = vmatpush1.msra.mxu0 0.0
    %1232 = vmatprep.subr.mxu0 0.0
    %1233 = vmatpush1.msra.mxu0 0.0
    %1234 = vmatprep.subr.mxu0 0.0
    %1235 = vmatpush1.msra.mxu0 0.0
    %1236 = vmatprep.subr.mxu0 0.0
    %1237 = vmatpush1.msra.mxu0 0.0
    %1238 = vmatprep.subr.mxu0 0.0
    %1239 = vmatpush1.msra.mxu0 0.0
    %1240 = vmatprep.subr.mxu0 0.0
    %1241 = vmatpush1.msra.mxu0 0.0
    %1242 = vmatprep.subr.mxu0 0.0
    %1243 = vmatpush1.msra.mxu0 0.0
    %1244 = vmatprep.subr.mxu0 0.0
    %1245 = vmatpush1.msra.mxu0 0.0
    %1246 = vmatprep.subr.mxu0 0.0
    %1247 = vmatpush1.msra.mxu0 0.0
    %1248 = vmatprep.subr.mxu0 0.0
    %1249 = vmatpush1.msra.mxu0 0.0
    %1250 = vmatprep.subr.mxu0 0.0
    %1251 = vmatpush1.msra.mxu0 0.0
    %1252 = vmatprep.subr.mxu0 0.0
    %1253 = vmatpush1.msra.mxu0 0.0
    %1254 = vmatprep.subr.mxu0 0.0
    %1255 = vmatpush1.msra.mxu0 0.0
    %1256 = vmatprep.subr.mxu0 0.0
    %1257 = vmatpush1.msra.mxu0 0.0
    %1258 = vmatprep.subr.mxu0 0.0
    %1259 = vmatpush1.msra.mxu0 0.0
    %1260 = vmatprep.subr.mxu0 0.0
    %1261 = vmatpush1.msra.mxu0 0.0
    %1262 = vmatprep.mubr.f32.mxu0 0.0
    %1263 = vmatmul.mubr.f32.gmra.mrb[0].mxu0 %v1153
    %v1264 = vpop.f32.mrb[0].mxu0
    %v1265 = vadd.f32 %v1191, %v1264
    %v1266 = vpop.f32.mrb[0].mxu0
    %v1267 = vadd.f32 %v1195, %v1266
    %1268 = vmatprep.mubr.f32.mxu0 0.0
    %1269 = vmatmul.mubr.f32.gmra.mrb[0].mxu0 %v1154
    %v1270 = vpop.f32.mrb[0].mxu0
    %v1271 = vadd.f32 %v1191, %v1270
    %v1272 = vpop.f32.mrb[0].mxu0
    %v1273 = vadd.f32 %v1195, %v1272
    %1274 = vdwg.mxu0
    %v1275 = vld [vmem:[#allocation3 + $0x280] sm:$0xff]
    %v1276 = vld [vmem:[#allocation3 + $0x288] sm:$0xff]
    %v1277 = vld [vmem:[#allocation3 + $0x290] sm:$0xff]
    %v1278 = vld [vmem:[#allocation3 + $0x298] sm:$0xff]
    %v1279 = vld [vmem:[#allocation3 + $0x2a0] sm:$0xff]
    %v1280 = vld [vmem:[#allocation3 + $0x2a8] sm:$0xff]
    %v1281 = vld [vmem:[#allocation3 + $0x2b0] sm:$0xff]
    %v1282 = vld [vmem:[#allocation3 + $0x2b8] sm:$0xff]
    %v1283 = vld [vmem:[#allocation3 + $0x2c0] sm:$0xff]
    %v1284 = vld [vmem:[#allocation3 + $0x2c8] sm:$0xff]
    %v1285 = vld [vmem:[#allocation3 + $0x2d0] sm:$0xff]
    %v1286 = vld [vmem:[#allocation3 + $0x2d8] sm:$0xff]
    %v1287 = vld [vmem:[#allocation3 + $0x2e0] sm:$0xff]
    %v1288 = vld [vmem:[#allocation3 + $0x2e8] sm:$0xff]
    %v1289 = vld [vmem:[#allocation3 + $0x2f0] sm:$0xff]
    %v1290 = vld [vmem:[#allocation3 + $0x2f8] sm:$0xff]
    %1291 = vmatprep.subr.mxu0 %v1276
    %1292 = vmatpush1.msra.mxu0 %v1275
    %1293 = vmatprep.subr.mxu0 %v1278
    %1294 = vmatpush1.msra.mxu0 %v1277
    %1295 = vmatprep.subr.mxu0 %v1280
    %1296 = vmatpush1.msra.mxu0 %v1279
    %1297 = vmatprep.subr.mxu0 %v1282
    %1298 = vmatpush1.msra.mxu0 %v1281
    %1299 = vmatprep.subr.mxu0 %v1284
    %1300 = vmatpush1.msra.mxu0 %v1283
    %1301 = vmatprep.subr.mxu0 %v1286
    %1302 = vmatpush1.msra.mxu0 %v1285
    %1303 = vmatprep.subr.mxu0 %v1288
    %1304 = vmatpush1.msra.mxu0 %v1287
    %1305 = vmatprep.subr.mxu0 %v1290
    %1306 = vmatpush1.msra.mxu0 %v1289
    %1307 = vmatprep.subr.mxu0 0.0
    %1308 = vmatpush1.msra.mxu0 0.0
    %1309 = vmatprep.subr.mxu0 0.0
    %1310 = vmatpush1.msra.mxu0 0.0
    %1311 = vmatprep.subr.mxu0 0.0
    %1312 = vmatpush1.msra.mxu0 0.0
    %1313 = vmatprep.subr.mxu0 0.0
    %1314 = vmatpush1.msra.mxu0 0.0
    %1315 = vmatprep.subr.mxu0 0.0
    %1316 = vmatpush1.msra.mxu0 0.0
    %1317 = vmatprep.subr.mxu0 0.0
    %1318 = vmatpush1.msra.mxu0 0.0
    %1319 = vmatprep.subr.mxu0 0.0
    %1320 = vmatpush1.msra.mxu0 0.0
    %1321 = vmatprep.subr.mxu0 0.0
    %1322 = vmatpush1.msra.mxu0 0.0
    %1323 = vmatprep.subr.mxu0 0.0
    %1324 = vmatpush1.msra.mxu0 0.0
    %1325 = vmatprep.subr.mxu0 0.0
    %1326 = vmatpush1.msra.mxu0 0.0
    %1327 = vmatprep.subr.mxu0 0.0
    %1328 = vmatpush1.msra.mxu0 0.0
    %1329 = vmatprep.subr.mxu0 0.0
    %1330 = vmatpush1.msra.mxu0 0.0
    %1331 = vmatprep.subr.mxu0 0.0
    %1332 = vmatpush1.msra.mxu0 0.0
    %1333 = vmatprep.subr.mxu0 0.0
    %1334 = vmatpush1.msra.mxu0 0.0
    %1335 = vmatprep.subr.mxu0 0.0
    %1336 = vmatpush1.msra.mxu0 0.0
    %1337 = vmatprep.subr.mxu0 0.0
    %1338 = vmatpush1.msra.mxu0 0.0
    %1339 = vmatprep.subr.mxu0 0.0
    %1340 = vmatpush1.msra.mxu0 0.0
    %1341 = vmatprep.subr.mxu0 0.0
    %1342 = vmatpush1.msra.mxu0 0.0
    %1343 = vmatprep.subr.mxu0 0.0
    %1344 = vmatpush1.msra.mxu0 0.0
    %1345 = vmatprep.subr.mxu0 0.0
    %1346 = vmatpush1.msra.mxu0 0.0
    %1347 = vmatprep.subr.mxu0 0.0
    %1348 = vmatpush1.msra.mxu0 0.0
    %1349 = vmatprep.subr.mxu0 0.0
    %1350 = vmatpush1.msra.mxu0 0.0
    %1351 = vmatprep.subr.mxu0 0.0
    %1352 = vmatpush1.msra.mxu0 0.0
    %1353 = vmatprep.subr.mxu0 0.0
    %1354 = vmatpush1.msra.mxu0 0.0
    %1355 = vmatprep.mubr.f32.mxu0 0.0
    %1356 = vmatmul.mubr.f32.gmra.mrb[0].mxu0 %v177
    %v1357 = vpop.f32.mrb[0].mxu0
    %v1358 = vadd.f32 0.0, %v1357
    %v1359 = vpop.f32.mrb[0].mxu0
    %v1360 = vadd.f32 0.0, %v1359
    %1361 = vdwg.mxu0
    %v1362 = vadd.f32 %v1265, %v1358
    %v1363 = vadd.f32 %v1267, %v1360
    %v1364 = vxor.u32 %v1362, 2147483648
    %v1365 = vxor.u32 %v1363, 2147483648
    %v1366 = vmul.f32 %v1364, 1.442695
    %v1367 = vpow.pop %v1366
    %v1368 = vmul.f32 %v1365, 1.442695
    %v1369 = vpow.pop %v1368
    %v1370 = vadd.f32 %v1367, 1.0
    %v1371 = vadd.f32 %v1369, 1.0
    %v1372 = vrcp.pop %v1370
    %v1373 = vmul.f32 1.0, %v1372
    %v1374 = vrcp.pop %v1371
    %v1375 = vmul.f32 1.0, %v1374
    %v1376 = vmul.f32 %v1375, 2.0
    %v1377 = vsub.f32 %v1376, 1.0
    %v1378 = vmul.f32 %v1373, 0.0
    %v1379 = vmul.f32 %v1373, %v1377
    %1381 = vrot.lane.b32.xlu0 %v1379, 64
    %v1382 = vpop.permute.xlu0 %1381
    %v1384 = vadd.f32 %v1378, %v1382
    %v1385 = vmul.f32 %v1384, 2.0
    %v1386 = vxor.u32 %v1385, 2147483648
    %v1387 = vmul.f32 %v1386, 1.442695
    %v1388 = vpow.pop %v1387
    %v1389 = vadd.f32 %v1388, 1.0
    %v1390 = vrcp.pop %v1389
    %v1391 = vmul.f32 1.0, %v1390
    %v1392 = vmul.f32 %v1391, 2.0
    %v1393 = vsub.f32 %v1392, 1.0
    %v1394 = vmul.f32 %v1375, %v1393
    %1396 = vrot.lane.b32.xlu0 %v1394, 64
    %v1397 = vpop.permute.xlu0 %1396
    %v1398 = vsel %vm175, %v1397, 0
    %1400 = vmatprep.subr.mxu0 %v1276
    %1401 = vmatpush1.msra.mxu0 %v1275
    %1402 = vmatprep.subr.mxu0 %v1278
    %1403 = vmatpush1.msra.mxu0 %v1277
    %1404 = vmatprep.subr.mxu0 %v1280
    %1405 = vmatpush1.msra.mxu0 %v1279
    %1406 = vmatprep.subr.mxu0 %v1282
    %1407 = vmatpush1.msra.mxu0 %v1281
    %1408 = vmatprep.subr.mxu0 %v1284
    %1409 = vmatpush1.msra.mxu0 %v1283
    %1410 = vmatprep.subr.mxu0 %v1286
    %1411 = vmatpush1.msra.mxu0 %v1285
    %1412 = vmatprep.subr.mxu0 %v1288
    %1413 = vmatpush1.msra.mxu0 %v1287
    %1414 = vmatprep.subr.mxu0 %v1290
    %1415 = vmatpush1.msra.mxu0 %v1289
    %1416 = vmatprep.subr.mxu0 0.0
    %1417 = vmatpush1.msra.mxu0 0.0
    %1418 = vmatprep.subr.mxu0 0.0
    %1419 = vmatpush1.msra.mxu0 0.0
    %1420 = vmatprep.subr.mxu0 0.0
    %1421 = vmatpush1.msra.mxu0 0.0
    %1422 = vmatprep.subr.mxu0 0.0
    %1423 = vmatpush1.msra.mxu0 0.0
    %1424 = vmatprep.subr.mxu0 0.0
    %1425 = vmatpush1.msra.mxu0 0.0
    %1426 = vmatprep.subr.mxu0 0.0
    %1427 = vmatpush1.msra.mxu0 0.0
    %1428 = vmatprep.subr.mxu0 0.0
    %1429 = vmatpush1.msra.mxu0 0.0
    %1430 = vmatprep.subr.mxu0 0.0
    %1431 = vmatpush1.msra.mxu0 0.0
    %1432 = vmatprep.subr.mxu0 0.0
    %1433 = vmatpush1.msra.mxu0 0.0
    %1434 = vmatprep.subr.mxu0 0.0
    %1435 = vmatpush1.msra.mxu0 0.0
    %1436 = vmatprep.subr.mxu0 0.0
    %1437 = vmatpush1.msra.mxu0 0.0
    %1438 = vmatprep.subr.mxu0 0.0
    %1439 = vmatpush1.msra.mxu0 0.0
    %1440 = vmatprep.subr.mxu0 0.0
    %1441 = vmatpush1.msra.mxu0 0.0
    %1442 = vmatprep.subr.mxu0 0.0
    %1443 = vmatpush1.msra.mxu0 0.0
    %1444 = vmatprep.subr.mxu0 0.0
    %1445 = vmatpush1.msra.mxu0 0.0
    %1446 = vmatprep.subr.mxu0 0.0
    %1447 = vmatpush1.msra.mxu0 0.0
    %1448 = vmatprep.subr.mxu0 0.0
    %1449 = vmatpush1.msra.mxu0 0.0
    %1450 = vmatprep.subr.mxu0 0.0
    %1451 = vmatpush1.msra.mxu0 0.0
    %1452 = vmatprep.subr.mxu0 0.0
    %1453 = vmatpush1.msra.mxu0 0.0
    %1454 = vmatprep.subr.mxu0 0.0
    %1455 = vmatpush1.msra.mxu0 0.0
    %1456 = vmatprep.subr.mxu0 0.0
    %1457 = vmatpush1.msra.mxu0 0.0
    %1458 = vmatprep.subr.mxu0 0.0
    %1459 = vmatpush1.msra.mxu0 0.0
    %1460 = vmatprep.subr.mxu0 0.0
    %1461 = vmatpush1.msra.mxu0 0.0
    %1462 = vmatprep.subr.mxu0 0.0
    %1463 = vmatpush1.msra.mxu0 0.0
    %1464 = vmatprep.mubr.f32.mxu0 0.0
    %1465 = vmatmul.mubr.f32.gmra.mrb[0].mxu0 %v1398
    %v1466 = vpop.f32.mrb[0].mxu0
    %v1467 = vadd.f32 0.0, %v1466
    %v1468 = vpop.f32.mrb[0].mxu0
    %v1469 = vadd.f32 0.0, %v1468
    %1470 = vdwg.mxu0
    %v1473 = vrot.slane %v1467, 6
    %v1474 = vrot.slane %v1469, 6
    %v1477 = vadd.f32 %v1265, %v1473
    %v1478 = vadd.f32 %v1267, %v1474
    %v1479 = vxor.u32 %v1477, 2147483648
    %v1480 = vxor.u32 %v1478, 2147483648
    %v1481 = vmul.f32 %v1479, 1.442695
    %v1482 = vpow.pop %v1481
    %v1483 = vmul.f32 %v1480, 1.442695
    %v1484 = vpow.pop %v1483
    %v1485 = vadd.f32 %v1482, 1.0
    %v1486 = vadd.f32 %v1484, 1.0
    %v1487 = vrcp.pop %v1485
    %v1488 = vmul.f32 1.0, %v1487
    %v1489 = vrcp.pop %v1486
    %v1490 = vmul.f32 1.0, %v1489
    %v1491 = vmul.f32 %v1490, 2.0
    %v1492 = vsub.f32 %v1491, 1.0
    %v1494 = vrot.slane %v1384, 6
    %v1496 = vmul.f32 %v1488, %v1494
    %v1497 = vmul.f32 %v1488, %v1492
    %1499 = vrot.lane.b32.xlu0 %v1497, 64
    %v1500 = vpop.permute.xlu0 %1499
    %v1502 = vadd.f32 %v1496, %v1500
    %v1503 = vmul.f32 %v1502, 2.0
    %v1504 = vxor.u32 %v1503, 2147483648
    %v1505 = vmul.f32 %v1504, 1.442695
    %v1506 = vpow.pop %v1505
    %v1507 = vadd.f32 %v1506, 1.0
    %v1508 = vrcp.pop %v1507
    %v1509 = vmul.f32 1.0, %v1508
    %v1510 = vmul.f32 %v1509, 2.0
    %v1511 = vsub.f32 %v1510, 1.0
    %v1512 = vmul.f32 %v1490, %v1511
    %v1514 = vrot.slane %v1512, 2
    %v1516 = vmax.f32 %v1394, %v1514
    %1517 = vrot.lane.b32.xlu0 %v1514, 64
    %v1518 = vpop.permute.xlu0 %1517
    %v1519 = vsel %vm175, %v1518, 0
    %1521 = vmatprep.subr.mxu0 %v1276
    %1522 = vmatpush1.msra.mxu0 %v1275
    %1523 = vmatprep.subr.mxu0 %v1278
    %1524 = vmatpush1.msra.mxu0 %v1277
    %1525 = vmatprep.subr.mxu0 %v1280
    %1526 = vmatpush1.msra.mxu0 %v1279
    %1527 = vmatprep.subr.mxu0 %v1282
    %1528 = vmatpush1.msra.mxu0 %v1281
    %1529 = vmatprep.subr.mxu0 %v1284
    %1530 = vmatpush1.msra.mxu0 %v1283
    %1531 = vmatprep.subr.mxu0 %v1286
    %1532 = vmatpush1.msra.mxu0 %v1285
    %1533 = vmatprep.subr.mxu0 %v1288
    %1534 = vmatpush1.msra.mxu0 %v1287
    %1535 = vmatprep.subr.mxu0 %v1290
    %1536 = vmatpush1.msra.mxu0 %v1289
    %1537 = vmatprep.subr.mxu0 0.0
    %1538 = vmatpush1.msra.mxu0 0.0
    %1539 = vmatprep.subr.mxu0 0.0
    %1540 = vmatpush1.msra.mxu0 0.0
    %1541 = vmatprep.subr.mxu0 0.0
    %1542 = vmatpush1.msra.mxu0 0.0
    %1543 = vmatprep.subr.mxu0 0.0
    %1544 = vmatpush1.msra.mxu0 0.0
    %1545 = vmatprep.subr.mxu0 0.0
    %1546 = vmatpush1.msra.mxu0 0.0
    %1547 = vmatprep.subr.mxu0 0.0
    %1548 = vmatpush1.msra.mxu0 0.0
    %1549 = vmatprep.subr.mxu0 0.0
    %1550 = vmatpush1.msra.mxu0 0.0
    %1551 = vmatprep.subr.mxu0 0.0
    %1552 = vmatpush1.msra.mxu0 0.0
    %1553 = vmatprep.subr.mxu0 0.0
    %1554 = vmatpush1.msra.mxu0 0.0
    %1555 = vmatprep.subr.mxu0 0.0
    %1556 = vmatpush1.msra.mxu0 0.0
    %1557 = vmatprep.subr.mxu0 0.0
    %1558 = vmatpush1.msra.mxu0 0.0
    %1559 = vmatprep.subr.mxu0 0.0
    %1560 = vmatpush1.msra.mxu0 0.0
    %1561 = vmatprep.subr.mxu0 0.0
    %1562 = vmatpush1.msra.mxu0 0.0
    %1563 = vmatprep.subr.mxu0 0.0
    %1564 = vmatpush1.msra.mxu0 0.0
    %1565 = vmatprep.subr.mxu0 0.0
    %1566 = vmatpush1.msra.mxu0 0.0
    %1567 = vmatprep.subr.mxu0 0.0
    %1568 = vmatpush1.msra.mxu0 0.0
    %1569 = vmatprep.subr.mxu0 0.0
    %1570 = vmatpush1.msra.mxu0 0.0
    %1571 = vmatprep.subr.mxu0 0.0
    %1572 = vmatpush1.msra.mxu0 0.0
    %1573 = vmatprep.subr.mxu0 0.0
    %1574 = vmatpush1.msra.mxu0 0.0
    %1575 = vmatprep.subr.mxu0 0.0
    %1576 = vmatpush1.msra.mxu0 0.0
    %1577 = vmatprep.subr.mxu0 0.0
    %1578 = vmatpush1.msra.mxu0 0.0
    %1579 = vmatprep.subr.mxu0 0.0
    %1580 = vmatpush1.msra.mxu0 0.0
    %1581 = vmatprep.subr.mxu0 0.0
    %1582 = vmatpush1.msra.mxu0 0.0
    %1583 = vmatprep.subr.mxu0 0.0
    %1584 = vmatpush1.msra.mxu0 0.0
    %1585 = vmatprep.mubr.f32.mxu0 0.0
    %1586 = vmatmul.mubr.f32.gmra.mrb[0].mxu0 %v1519
    %v1587 = vpop.f32.mrb[0].mxu0
    %v1588 = vadd.f32 0.0, %v1587
    %v1589 = vpop.f32.mrb[0].mxu0
    %v1590 = vadd.f32 0.0, %v1589
    %1591 = vdwg.mxu0
    %v1594 = vrot.slane %v1588, 4
    %v1595 = vrot.slane %v1590, 4
    %v1598 = vadd.f32 %v1265, %v1594
    %v1599 = vadd.f32 %v1267, %v1595
    %v1600 = vxor.u32 %v1598, 2147483648
    %v1601 = vxor.u32 %v1599, 2147483648
    %v1602 = vmul.f32 %v1600, 1.442695
    %v1603 = vpow.pop %v1602
    %v1604 = vmul.f32 %v1601, 1.442695
    %v1605 = vpow.pop %v1604
    %v1606 = vadd.f32 %v1603, 1.0
    %v1607 = vadd.f32 %v1605, 1.0
    %v1608 = vrcp.pop %v1606
    %v1609 = vmul.f32 1.0, %v1608
    %v1610 = vrcp.pop %v1607
    %v1611 = vmul.f32 1.0, %v1610
    %v1612 = vmul.f32 %v1611, 2.0
    %v1613 = vsub.f32 %v1612, 1.0
    %v1615 = vrot.slane %v1502, 6
    %v1617 = vmul.f32 %v1609, %v1615
    %v1618 = vmul.f32 %v1609, %v1613
    %1620 = vrot.lane.b32.xlu0 %v1618, 64
    %v1621 = vpop.permute.xlu0 %1620
    %v1623 = vadd.f32 %v1617, %v1621
    %v1624 = vmul.f32 %v1623, 2.0
    %v1625 = vxor.u32 %v1624, 2147483648
    %v1626 = vmul.f32 %v1625, 1.442695
    %v1627 = vpow.pop %v1626
    %v1628 = vadd.f32 %v1627, 1.0
    %v1629 = vrcp.pop %v1628
    %v1630 = vmul.f32 1.0, %v1629
    %v1631 = vmul.f32 %v1630, 2.0
    %v1632 = vsub.f32 %v1631, 1.0
    %v1633 = vmul.f32 %v1611, %v1632
    %v1635 = vrot.slane %v1633, 4
    %v1637 = vmax.f32 %v1516, %v1635
    %1638 = vrot.lane.b32.xlu0 %v1635, 64
    %v1639 = vpop.permute.xlu0 %1638
    %v1640 = vsel %vm175, %v1639, 0
    %1642 = vmatprep.subr.mxu0 %v1276
    %1643 = vmatpush1.msra.mxu0 %v1275
    %1644 = vmatprep.subr.mxu0 %v1278
    %1645 = vmatpush1.msra.mxu0 %v1277
    %1646 = vmatprep.subr.mxu0 %v1280
    %1647 = vmatpush1.msra.mxu0 %v1279
    %1648 = vmatprep.subr.mxu0 %v1282
    %1649 = vmatpush1.msra.mxu0 %v1281
    %1650 = vmatprep.subr.mxu0 %v1284
    %1651 = vmatpush1.msra.mxu0 %v1283
    %1652 = vmatprep.subr.mxu0 %v1286
    %1653 = vmatpush1.msra.mxu0 %v1285
    %1654 = vmatprep.subr.mxu0 %v1288
    %1655 = vmatpush1.msra.mxu0 %v1287
    %1656 = vmatprep.subr.mxu0 %v1290
    %1657 = vmatpush1.msra.mxu0 %v1289
    %1658 = vmatprep.subr.mxu0 0.0
    %1659 = vmatpush1.msra.mxu0 0.0
    %1660 = vmatprep.subr.mxu0 0.0
    %1661 = vmatpush1.msra.mxu0 0.0
    %1662 = vmatprep.subr.mxu0 0.0
    %1663 = vmatpush1.msra.mxu0 0.0
    %1664 = vmatprep.subr.mxu0 0.0
    %1665 = vmatpush1.msra.mxu0 0.0
    %1666 = vmatprep.subr.mxu0 0.0
    %1667 = vmatpush1.msra.mxu0 0.0
    %1668 = vmatprep.subr.mxu0 0.0
    %1669 = vmatpush1.msra.mxu0 0.0
    %1670 = vmatprep.subr.mxu0 0.0
    %1671 = vmatpush1.msra.mxu0 0.0
    %1672 = vmatprep.subr.mxu0 0.0
    %1673 = vmatpush1.msra.mxu0 0.0
    %1674 = vmatprep.subr.mxu0 0.0
    %1675 = vmatpush1.msra.mxu0 0.0
    %1676 = vmatprep.subr.mxu0 0.0
    %1677 = vmatpush1.msra.mxu0 0.0
    %1678 = vmatprep.subr.mxu0 0.0
    %1679 = vmatpush1.msra.mxu0 0.0
    %1680 = vmatprep.subr.mxu0 0.0
    %1681 = vmatpush1.msra.mxu0 0.0
    %1682 = vmatprep.subr.mxu0 0.0
    %1683 = vmatpush1.msra.mxu0 0.0
    %1684 = vmatprep.subr.mxu0 0.0
    %1685 = vmatpush1.msra.mxu0 0.0
    %1686 = vmatprep.subr.mxu0 0.0
    %1687 = vmatpush1.msra.mxu0 0.0
    %1688 = vmatprep.subr.mxu0 0.0
    %1689 = vmatpush1.msra.mxu0 0.0
    %1690 = vmatprep.subr.mxu0 0.0
    %1691 = vmatpush1.msra.mxu0 0.0
    %1692 = vmatprep.subr.mxu0 0.0
    %1693 = vmatpush1.msra.mxu0 0.0
    %1694 = vmatprep.subr.mxu0 0.0
    %1695 = vmatpush1.msra.mxu0 0.0
    %1696 = vmatprep.subr.mxu0 0.0
    %1697 = vmatpush1.msra.mxu0 0.0
    %1698 = vmatprep.subr.mxu0 0.0
    %1699 = vmatpush1.msra.mxu0 0.0
    %1700 = vmatprep.subr.mxu0 0.0
    %1701 = vmatpush1.msra.mxu0 0.0
    %1702 = vmatprep.subr.mxu0 0.0
    %1703 = vmatpush1.msra.mxu0 0.0
    %1704 = vmatprep.subr.mxu0 0.0
    %1705 = vmatpush1.msra.mxu0 0.0
    %1706 = vmatprep.mubr.f32.mxu0 0.0
    %1707 = vmatmul.mubr.f32.gmra.mrb[0].mxu0 %v1640
    %v1708 = vpop.f32.mrb[0].mxu0
    %v1709 = vadd.f32 0.0, %v1708
    %v1710 = vpop.f32.mrb[0].mxu0
    %v1711 = vadd.f32 0.0, %v1710
    %1712 = vdwg.mxu0
    %v1715 = vrot.slane %v1709, 2
    %v1716 = vrot.slane %v1711, 2
    %v1719 = vadd.f32 %v1265, %v1715
    %v1720 = vadd.f32 %v1267, %v1716
    %v1721 = vxor.u32 %v1719, 2147483648
    %v1722 = vxor.u32 %v1720, 2147483648
    %v1723 = vmul.f32 %v1721, 1.442695
    %v1724 = vpow.pop %v1723
    %v1725 = vmul.f32 %v1722, 1.442695
    %v1726 = vpow.pop %v1725
    %v1727 = vadd.f32 %v1724, 1.0
    %v1728 = vadd.f32 %v1726, 1.0
    %v1729 = vrcp.pop %v1727
    %v1730 = vmul.f32 1.0, %v1729
    %v1731 = vrcp.pop %v1728
    %v1732 = vmul.f32 1.0, %v1731
    %v1733 = vmul.f32 %v1732, 2.0
    %v1734 = vsub.f32 %v1733, 1.0
    %v1736 = vrot.slane %v1623, 6
    %v1738 = vmul.f32 %v1730, %v1736
    %v1739 = vmul.f32 %v1730, %v1734
    %1741 = vrot.lane.b32.xlu0 %v1739, 64
    %v1742 = vpop.permute.xlu0 %1741
    %v1744 = vadd.f32 %v1738, %v1742
    %v1745 = vmul.f32 %v1744, 2.0
    %v1746 = vxor.u32 %v1745, 2147483648
    %v1747 = vmul.f32 %v1746, 1.442695
    %v1748 = vpow.pop %v1747
    %v1749 = vadd.f32 %v1748, 1.0
    %v1750 = vrcp.pop %v1749
    %v1751 = vmul.f32 1.0, %v1750
    %v1752 = vmul.f32 %v1751, 2.0
    %v1753 = vsub.f32 %v1752, 1.0
    %v1754 = vmul.f32 %v1732, %v1753
    %v1756 = vrot.slane %v1754, 6
    %v1758 = vmax.f32 %v1637, %v1756
    %1759 = vrot.lane.b32.xlu0 %v1756, 64
    %v1760 = vpop.permute.xlu0 %1759
    %v1761 = vsel %vm175, %v1760, 0
    %1763 = vmatprep.subr.mxu0 %v1276
    %1764 = vmatpush1.msra.mxu0 %v1275
    %1765 = vmatprep.subr.mxu0 %v1278
    %1766 = vmatpush1.msra.mxu0 %v1277
    %1767 = vmatprep.subr.mxu0 %v1280
    %1768 = vmatpush1.msra.mxu0 %v1279
    %1769 = vmatprep.subr.mxu0 %v1282
    %1770 = vmatpush1.msra.mxu0 %v1281
    %1771 = vmatprep.subr.mxu0 %v1284
    %1772 = vmatpush1.msra.mxu0 %v1283
    %1773 = vmatprep.subr.mxu0 %v1286
    %1774 = vmatpush1.msra.mxu0 %v1285
    %1775 = vmatprep.subr.mxu0 %v1288
    %1776 = vmatpush1.msra.mxu0 %v1287
    %1777 = vmatprep.subr.mxu0 %v1290
    %1778 = vmatpush1.msra.mxu0 %v1289
    %1779 = vmatprep.subr.mxu0 0.0
    %1780 = vmatpush1.msra.mxu0 0.0
    %1781 = vmatprep.subr.mxu0 0.0
    %1782 = vmatpush1.msra.mxu0 0.0
    %1783 = vmatprep.subr.mxu0 0.0
    %1784 = vmatpush1.msra.mxu0 0.0
    %1785 = vmatprep.subr.mxu0 0.0
    %1786 = vmatpush1.msra.mxu0 0.0
    %1787 = vmatprep.subr.mxu0 0.0
    %1788 = vmatpush1.msra.mxu0 0.0
    %1789 = vmatprep.subr.mxu0 0.0
    %1790 = vmatpush1.msra.mxu0 0.0
    %1791 = vmatprep.subr.mxu0 0.0
    %1792 = vmatpush1.msra.mxu0 0.0
    %1793 = vmatprep.subr.mxu0 0.0
    %1794 = vmatpush1.msra.mxu0 0.0
    %1795 = vmatprep.subr.mxu0 0.0
    %1796 = vmatpush1.msra.mxu0 0.0
    %1797 = vmatprep.subr.mxu0 0.0
    %1798 = vmatpush1.msra.mxu0 0.0
    %1799 = vmatprep.subr.mxu0 0.0
    %1800 = vmatpush1.msra.mxu0 0.0
    %1801 = vmatprep.subr.mxu0 0.0
    %1802 = vmatpush1.msra.mxu0 0.0
    %1803 = vmatprep.subr.mxu0 0.0
    %1804 = vmatpush1.msra.mxu0 0.0
    %1805 = vmatprep.subr.mxu0 0.0
    %1806 = vmatpush1.msra.mxu0 0.0
    %1807 = vmatprep.subr.mxu0 0.0
    %1808 = vmatpush1.msra.mxu0 0.0
    %1809 = vmatprep.subr.mxu0 0.0
    %1810 = vmatpush1.msra.mxu0 0.0
    %1811 = vmatprep.subr.mxu0 0.0
    %1812 = vmatpush1.msra.mxu0 0.0
    %1813 = vmatprep.subr.mxu0 0.0
    %1814 = vmatpush1.msra.mxu0 0.0
    %1815 = vmatprep.subr.mxu0 0.0
    %1816 = vmatpush1.msra.mxu0 0.0
    %1817 = vmatprep.subr.mxu0 0.0
    %1818 = vmatpush1.msra.mxu0 0.0
    %1819 = vmatprep.subr.mxu0 0.0
    %1820 = vmatpush1.msra.mxu0 0.0
    %1821 = vmatprep.subr.mxu0 0.0
    %1822 = vmatpush1.msra.mxu0 0.0
    %1823 = vmatprep.subr.mxu0 0.0
    %1824 = vmatpush1.msra.mxu0 0.0
    %1825 = vmatprep.subr.mxu0 0.0
    %1826 = vmatpush1.msra.mxu0 0.0
    %1827 = vmatprep.mubr.f32.mxu0 0.0
    %1828 = vmatmul.mubr.f32.gmra.mrb[0].mxu0 %v1761
    %v1829 = vpop.f32.mrb[0].mxu0
    %v1830 = vadd.f32 0.0, %v1829
    %v1831 = vpop.f32.mrb[0].mxu0
    %v1832 = vadd.f32 0.0, %v1831
    %1833 = vdwg.mxu0
    %v1834 = vadd.f32 %v1271, %v1830
    %v1835 = vadd.f32 %v1273, %v1832
    %v1836 = vxor.u32 %v1834, 2147483648
    %v1837 = vxor.u32 %v1835, 2147483648
    %v1838 = vmul.f32 %v1836, 1.442695
    %v1839 = vpow.pop %v1838
    %v1840 = vmul.f32 %v1837, 1.442695
    %v1841 = vpow.pop %v1840
    %v1842 = vadd.f32 %v1839, 1.0
    %v1843 = vadd.f32 %v1841, 1.0
    %v1844 = vrcp.pop %v1842
    %v1845 = vmul.f32 1.0, %v1844
    %v1846 = vrcp.pop %v1843
    %v1847 = vmul.f32 1.0, %v1846
    %v1848 = vmul.f32 %v1847, 2.0
    %v1849 = vsub.f32 %v1848, 1.0
    %v1851 = vrot.slane %v1744, 6
    %v1853 = vmul.f32 %v1845, %v1851
    %v1854 = vmul.f32 %v1845, %v1849
    %1856 = vrot.lane.b32.xlu0 %v1854, 64
    %v1857 = vpop.permute.xlu0 %1856
    %v1859 = vadd.f32 %v1853, %v1857
    %v1860 = vmul.f32 %v1859, 2.0
    %v1861 = vxor.u32 %v1860, 2147483648
    %v1862 = vmul.f32 %v1861, 1.442695
    %v1863 = vpow.pop %v1862
    %v1864 = vadd.f32 %v1863, 1.0
    %v1865 = vrcp.pop %v1864
    %v1866 = vmul.f32 1.0, %v1865
    %v1867 = vmul.f32 %v1866, 2.0
    %v1868 = vsub.f32 %v1867, 1.0
    %v1869 = vmul.f32 %v1847, %v1868
    %v1870 = vmax.f32 %v1758, %v1869
    %1872 = vrot.lane.b32.xlu0 %v1869, 64
    %v1873 = vpop.permute.xlu0 %1872
    %v1874 = vsel %vm175, %v1873, 0
    %1876 = vmatprep.subr.mxu0 %v1276
    %1877 = vmatpush1.msra.mxu0 %v1275
    %1878 = vmatprep.subr.mxu0 %v1278
    %1879 = vmatpush1.msra.mxu0 %v1277
    %1880 = vmatprep.subr.mxu0 %v1280
    %1881 = vmatpush1.msra.mxu0 %v1279
    %1882 = vmatprep.subr.mxu0 %v1282
    %1883 = vmatpush1.msra.mxu0 %v1281
    %1884 = vmatprep.subr.mxu0 %v1284
    %1885 = vmatpush1.msra.mxu0 %v1283
    %1886 = vmatprep.subr.mxu0 %v1286
    %1887 = vmatpush1.msra.mxu0 %v1285
    %1888 = vmatprep.subr.mxu0 %v1288
    %1889 = vmatpush1.msra.mxu0 %v1287
    %1890 = vmatprep.subr.mxu0 %v1290
    %1891 = vmatpush1.msra.mxu0 %v1289
    %1892 = vmatprep.subr.mxu0 0.0
    %1893 = vmatpush1.msra.mxu0 0.0
    %1894 = vmatprep.subr.mxu0 0.0
    %1895 = vmatpush1.msra.mxu0 0.0
    %1896 = vmatprep.subr.mxu0 0.0
    %1897 = vmatpush1.msra.mxu0 0.0
    %1898 = vmatprep.subr.mxu0 0.0
    %1899 = vmatpush1.msra.mxu0 0.0
    %1900 = vmatprep.subr.mxu0 0.0
    %1901 = vmatpush1.msra.mxu0 0.0
    %1902 = vmatprep.subr.mxu0 0.0
    %1903 = vmatpush1.msra.mxu0 0.0
    %1904 = vmatprep.subr.mxu0 0.0
    %1905 = vmatpush1.msra.mxu0 0.0
    %1906 = vmatprep.subr.mxu0 0.0
    %1907 = vmatpush1.msra.mxu0 0.0
    %1908 = vmatprep.subr.mxu0 0.0
    %1909 = vmatpush1.msra.mxu0 0.0
    %1910 = vmatprep.subr.mxu0 0.0
    %1911 = vmatpush1.msra.mxu0 0.0
    %1912 = vmatprep.subr.mxu0 0.0
    %1913 = vmatpush1.msra.mxu0 0.0
    %1914 = vmatprep.subr.mxu0 0.0
    %1915 = vmatpush1.msra.mxu0 0.0
    %1916 = vmatprep.subr.mxu0 0.0
    %1917 = vmatpush1.msra.mxu0 0.0
    %1918 = vmatprep.subr.mxu0 0.0
    %1919 = vmatpush1.msra.mxu0 0.0
    %1920 = vmatprep.subr.mxu0 0.0
    %1921 = vmatpush1.msra.mxu0 0.0
    %1922 = vmatprep.subr.mxu0 0.0
    %1923 = vmatpush1.msra.mxu0 0.0
    %1924 = vmatprep.subr.mxu0 0.0
    %1925 = vmatpush1.msra.mxu0 0.0
    %1926 = vmatprep.subr.mxu0 0.0
    %1927 = vmatpush1.msra.mxu0 0.0
    %1928 = vmatprep.subr.mxu0 0.0
    %1929 = vmatpush1.msra.mxu0 0.0
    %1930 = vmatprep.subr.mxu0 0.0
    %1931 = vmatpush1.msra.mxu0 0.0
    %1932 = vmatprep.subr.mxu0 0.0
    %1933 = vmatpush1.msra.mxu0 0.0
    %1934 = vmatprep.subr.mxu0 0.0
    %1935 = vmatpush1.msra.mxu0 0.0
    %1936 = vmatprep.subr.mxu0 0.0
    %1937 = vmatpush1.msra.mxu0 0.0
    %1938 = vmatprep.subr.mxu0 0.0
    %1939 = vmatpush1.msra.mxu0 0.0
    %1940 = vmatprep.mubr.f32.mxu0 0.0
    %1941 = vmatmul.mubr.f32.gmra.mrb[0].mxu0 %v1874
    %v1942 = vpop.f32.mrb[0].mxu0
    %v1943 = vadd.f32 0.0, %v1942
    %v1944 = vpop.f32.mrb[0].mxu0
    %v1945 = vadd.f32 0.0, %v1944
    %1946 = vdwg.mxu0
    %v1949 = vrot.slane %v1943, 6
    %v1950 = vrot.slane %v1945, 6
    %v1953 = vadd.f32 %v1271, %v1949
    %v1954 = vadd.f32 %v1273, %v1950
    %v1955 = vxor.u32 %v1953, 2147483648
    %v1956 = vxor.u32 %v1954, 2147483648
    %v1957 = vmul.f32 %v1955, 1.442695
    %v1958 = vpow.pop %v1957
    %v1959 = vmul.f32 %v1956, 1.442695
    %v1960 = vpow.pop %v1959
    %v1961 = vadd.f32 %v1958, 1.0
    %v1962 = vadd.f32 %v1960, 1.0
    %v1963 = vrcp.pop %v1961
    %v1964 = vmul.f32 1.0, %v1963
    %v1965 = vrcp.pop %v1962
    %v1966 = vmul.f32 1.0, %v1965
    %v1967 = vmul.f32 %v1966, 2.0
    %v1968 = vsub.f32 %v1967, 1.0
    %v1970 = vrot.slane %v1859, 6
    %v1972 = vmul.f32 %v1964, %v1970
    %v1973 = vmul.f32 %v1964, %v1968
    %1975 = vrot.lane.b32.xlu0 %v1973, 64
    %v1976 = vpop.permute.xlu0 %1975
    %v1978 = vadd.f32 %v1972, %v1976
    %v1979 = vmul.f32 %v1978, 2.0
    %v1980 = vxor.u32 %v1979, 2147483648
    %v1981 = vmul.f32 %v1980, 1.442695
    %v1982 = vpow.pop %v1981
    %v1983 = vadd.f32 %v1982, 1.0
    %v1984 = vrcp.pop %v1983
    %v1985 = vmul.f32 1.0, %v1984
    %v1986 = vmul.f32 %v1985, 2.0
    %v1987 = vsub.f32 %v1986, 1.0
    %v1988 = vmul.f32 %v1966, %v1987
    %v1990 = vrot.slane %v1988, 2
    %v1992 = vmax.f32 %v1870, %v1990
    %1993 = vrot.lane.b32.xlu0 %v1990, 64
    %v1994 = vpop.permute.xlu0 %1993
    %v1995 = vsel %vm175, %v1994, 0
    %1997 = vmatprep.subr.mxu0 %v1276
    %1998 = vmatpush1.msra.mxu0 %v1275
    %1999 = vmatprep.subr.mxu0 %v1278
    %2000 = vmatpush1.msra.mxu0 %v1277
    %2001 = vmatprep.subr.mxu0 %v1280
    %2002 = vmatpush1.msra.mxu0 %v1279
    %2003 = vmatprep.subr.mxu0 %v1282
    %2004 = vmatpush1.msra.mxu0 %v1281
    %2005 = vmatprep.subr.mxu0 %v1284
    %2006 = vmatpush1.msra.mxu0 %v1283
    %2007 = vmatprep.subr.mxu0 %v1286
    %2008 = vmatpush1.msra.mxu0 %v1285
    %2009 = vmatprep.subr.mxu0 %v1288
    %2010 = vmatpush1.msra.mxu0 %v1287
    %2011 = vmatprep.subr.mxu0 %v1290
    %2012 = vmatpush1.msra.mxu0 %v1289
    %2013 = vmatprep.subr.mxu0 0.0
    %2014 = vmatpush1.msra.mxu0 0.0
    %2015 = vmatprep.subr.mxu0 0.0
    %2016 = vmatpush1.msra.mxu0 0.0
    %2017 = vmatprep.subr.mxu0 0.0
    %2018 = vmatpush1.msra.mxu0 0.0
    %2019 = vmatprep.subr.mxu0 0.0
    %2020 = vmatpush1.msra.mxu0 0.0
    %2021 = vmatprep.subr.mxu0 0.0
    %2022 = vmatpush1.msra.mxu0 0.0
    %2023 = vmatprep.subr.mxu0 0.0
    %2024 = vmatpush1.msra.mxu0 0.0
    %2025 = vmatprep.subr.mxu0 0.0
    %2026 = vmatpush1.msra.mxu0 0.0
    %2027 = vmatprep.subr.mxu0 0.0
    %2028 = vmatpush1.msra.mxu0 0.0
    %2029 = vmatprep.subr.mxu0 0.0
    %2030 = vmatpush1.msra.mxu0 0.0
    %2031 = vmatprep.subr.mxu0 0.0
    %2032 = vmatpush1.msra.mxu0 0.0
    %2033 = vmatprep.subr.mxu0 0.0
    %2034 = vmatpush1.msra.mxu0 0.0
    %2035 = vmatprep.subr.mxu0 0.0
    %2036 = vmatpush1.msra.mxu0 0.0
    %2037 = vmatprep.subr.mxu0 0.0
    %2038 = vmatpush1.msra.mxu0 0.0
    %2039 = vmatprep.subr.mxu0 0.0
    %2040 = vmatpush1.msra.mxu0 0.0
    %2041 = vmatprep.subr.mxu0 0.0
    %2042 = vmatpush1.msra.mxu0 0.0
    %2043 = vmatprep.subr.mxu0 0.0
    %2044 = vmatpush1.msra.mxu0 0.0
    %2045 = vmatprep.subr.mxu0 0.0
    %2046 = vmatpush1.msra.mxu0 0.0
    %2047 = vmatprep.subr.mxu0 0.0
    %2048 = vmatpush1.msra.mxu0 0.0
    %2049 = vmatprep.subr.mxu0 0.0
    %2050 = vmatpush1.msra.mxu0 0.0
    %2051 = vmatprep.subr.mxu0 0.0
    %2052 = vmatpush1.msra.mxu0 0.0
    %2053 = vmatprep.subr.mxu0 0.0
    %2054 = vmatpush1.msra.mxu0 0.0
    %2055 = vmatprep.subr.mxu0 0.0
    %2056 = vmatpush1.msra.mxu0 0.0
    %2057 = vmatprep.subr.mxu0 0.0
    %2058 = vmatpush1.msra.mxu0 0.0
    %2059 = vmatprep.subr.mxu0 0.0
    %2060 = vmatpush1.msra.mxu0 0.0
    %2061 = vmatprep.mubr.f32.mxu0 0.0
    %2062 = vmatmul.mubr.f32.gmra.mrb[0].mxu0 %v1995
    %v2063 = vpop.f32.mrb[0].mxu0
    %v2064 = vadd.f32 0.0, %v2063
    %v2065 = vpop.f32.mrb[0].mxu0
    %v2066 = vadd.f32 0.0, %v2065
    %2067 = vdwg.mxu0
    %v2070 = vrot.slane %v2064, 4
    %v2071 = vrot.slane %v2066, 4
    %v2074 = vadd.f32 %v1271, %v2070
    %v2075 = vadd.f32 %v1273, %v2071
    %v2076 = vxor.u32 %v2074, 2147483648
    %v2077 = vxor.u32 %v2075, 2147483648
    %v2078 = vmul.f32 %v2076, 1.442695
    %v2079 = vpow.pop %v2078
    %v2080 = vmul.f32 %v2077, 1.442695
    %v2081 = vpow.pop %v2080
    %v2082 = vadd.f32 %v2079, 1.0
    %v2083 = vadd.f32 %v2081, 1.0
    %v2084 = vrcp.pop %v2082
    %v2085 = vmul.f32 1.0, %v2084
    %v2086 = vrcp.pop %v2083
    %v2087 = vmul.f32 1.0, %v2086
    %v2088 = vmul.f32 %v2087, 2.0
    %v2089 = vsub.f32 %v2088, 1.0
    %v2091 = vrot.slane %v1978, 6
    %v2093 = vmul.f32 %v2085, %v2091
    %v2094 = vmul.f32 %v2085, %v2089
    %2096 = vrot.lane.b32.xlu0 %v2094, 64
    %v2097 = vpop.permute.xlu0 %2096
    %v2099 = vadd.f32 %v2093, %v2097
    %v2100 = vmul.f32 %v2099, 2.0
    %v2101 = vxor.u32 %v2100, 2147483648
    %v2102 = vmul.f32 %v2101, 1.442695
    %v2103 = vpow.pop %v2102
    %v2104 = vadd.f32 %v2103, 1.0
    %v2105 = vrcp.pop %v2104
    %v2106 = vmul.f32 1.0, %v2105
    %v2107 = vmul.f32 %v2106, 2.0
    %v2108 = vsub.f32 %v2107, 1.0
    %v2109 = vmul.f32 %v2087, %v2108
    %v2111 = vrot.slane %v2109, 4
    %v2113 = vmax.f32 %v1992, %v2111
    %2114 = vrot.lane.b32.xlu0 %v2111, 64
    %v2115 = vpop.permute.xlu0 %2114
    %v2116 = vsel %vm175, %v2115, 0
    %2118 = vmatprep.subr.mxu0 %v1276
    %2119 = vmatpush1.msra.mxu0 %v1275
    %2120 = vmatprep.subr.mxu0 %v1278
    %2121 = vmatpush1.msra.mxu0 %v1277
    %2122 = vmatprep.subr.mxu0 %v1280
    %2123 = vmatpush1.msra.mxu0 %v1279
    %2124 = vmatprep.subr.mxu0 %v1282
    %2125 = vmatpush1.msra.mxu0 %v1281
    %2126 = vmatprep.subr.mxu0 %v1284
    %2127 = vmatpush1.msra.mxu0 %v1283
    %2128 = vmatprep.subr.mxu0 %v1286
    %2129 = vmatpush1.msra.mxu0 %v1285
    %2130 = vmatprep.subr.mxu0 %v1288
    %2131 = vmatpush1.msra.mxu0 %v1287
    %2132 = vmatprep.subr.mxu0 %v1290
    %2133 = vmatpush1.msra.mxu0 %v1289
    %2134 = vmatprep.subr.mxu0 0.0
    %2135 = vmatpush1.msra.mxu0 0.0
    %2136 = vmatprep.subr.mxu0 0.0
    %2137 = vmatpush1.msra.mxu0 0.0
    %2138 = vmatprep.subr.mxu0 0.0
    %2139 = vmatpush1.msra.mxu0 0.0
    %2140 = vmatprep.subr.mxu0 0.0
    %2141 = vmatpush1.msra.mxu0 0.0
    %2142 = vmatprep.subr.mxu0 0.0
    %2143 = vmatpush1.msra.mxu0 0.0
    %2144 = vmatprep.subr.mxu0 0.0
    %2145 = vmatpush1.msra.mxu0 0.0
    %2146 = vmatprep.subr.mxu0 0.0
    %2147 = vmatpush1.msra.mxu0 0.0
    %2148 = vmatprep.subr.mxu0 0.0
    %2149 = vmatpush1.msra.mxu0 0.0
    %2150 = vmatprep.subr.mxu0 0.0
    %2151 = vmatpush1.msra.mxu0 0.0
    %2152 = vmatprep.subr.mxu0 0.0
    %2153 = vmatpush1.msra.mxu0 0.0
    %2154 = vmatprep.subr.mxu0 0.0
    %2155 = vmatpush1.msra.mxu0 0.0
    %2156 = vmatprep.subr.mxu0 0.0
    %2157 = vmatpush1.msra.mxu0 0.0
    %2158 = vmatprep.subr.mxu0 0.0
    %2159 = vmatpush1.msra.mxu0 0.0
    %2160 = vmatprep.subr.mxu0 0.0
    %2161 = vmatpush1.msra.mxu0 0.0
    %2162 = vmatprep.subr.mxu0 0.0
    %2163 = vmatpush1.msra.mxu0 0.0
    %2164 = vmatprep.subr.mxu0 0.0
    %2165 = vmatpush1.msra.mxu0 0.0
    %2166 = vmatprep.subr.mxu0 0.0
    %2167 = vmatpush1.msra.mxu0 0.0
    %2168 = vmatprep.subr.mxu0 0.0
    %2169 = vmatpush1.msra.mxu0 0.0
    %2170 = vmatprep.subr.mxu0 0.0
    %2171 = vmatpush1.msra.mxu0 0.0
    %2172 = vmatprep.subr.mxu0 0.0
    %2173 = vmatpush1.msra.mxu0 0.0
    %2174 = vmatprep.subr.mxu0 0.0
    %2175 = vmatpush1.msra.mxu0 0.0
    %2176 = vmatprep.subr.mxu0 0.0
    %2177 = vmatpush1.msra.mxu0 0.0
    %2178 = vmatprep.subr.mxu0 0.0
    %2179 = vmatpush1.msra.mxu0 0.0
    %2180 = vmatprep.subr.mxu0 0.0
    %2181 = vmatpush1.msra.mxu0 0.0
    %2182 = vmatprep.mubr.f32.mxu0 0.0
    %2183 = vmatmul.mubr.f32.gmra.mrb[0].mxu0 %v2116
    %v2184 = vpop.f32.mrb[0].mxu0
    %v2185 = vadd.f32 0.0, %v2184
    %v2186 = vpop.f32.mrb[0].mxu0
    %v2187 = vadd.f32 0.0, %v2186
    %2188 = vdwg.mxu0
    %v2191 = vrot.slane %v2185, 2
    %v2192 = vrot.slane %v2187, 2
    %v2195 = vadd.f32 %v1271, %v2191
    %v2196 = vadd.f32 %v1273, %v2192
    %v2197 = vxor.u32 %v2195, 2147483648
    %v2198 = vxor.u32 %v2196, 2147483648
    %v2199 = vmul.f32 %v2197, 1.442695
    %v2200 = vpow.pop %v2199
    %v2201 = vmul.f32 %v2198, 1.442695
    %v2202 = vpow.pop %v2201
    %v2203 = vadd.f32 %v2200, 1.0
    %v2204 = vadd.f32 %v2202, 1.0
    %v2205 = vrcp.pop %v2203
    %v2206 = vmul.f32 1.0, %v2205
    %v2207 = vrcp.pop %v2204
    %v2208 = vmul.f32 1.0, %v2207
    %v2209 = vmul.f32 %v2208, 2.0
    %v2210 = vsub.f32 %v2209, 1.0
    %v2212 = vrot.slane %v2099, 6
    %v2214 = vmul.f32 %v2206, %v2212
    %v2215 = vmul.f32 %v2206, %v2210
    %2217 = vrot.lane.b32.xlu0 %v2215, 64
    %v2218 = vpop.permute.xlu0 %2217
    %v2220 = vadd.f32 %v2214, %v2218
    %v2221 = vmul.f32 %v2220, 2.0
    %v2222 = vxor.u32 %v2221, 2147483648
    %v2223 = vmul.f32 %v2222, 1.442695
    %v2224 = vpow.pop %v2223
    %v2225 = vadd.f32 %v2224, 1.0
    %v2226 = vrcp.pop %v2225
    %v2227 = vmul.f32 1.0, %v2226
    %v2228 = vmul.f32 %v2227, 2.0
    %v2229 = vsub.f32 %v2228, 1.0
    %v2230 = vmul.f32 %v2208, %v2229
    %v2232 = vrot.slane %v2230, 6
    %v2234 = vmax.f32 %v2113, %v2232
    %v2235 = vld [vmem:[%s2] sm:$0xff]
    %v2236 = vld [vmem:[%s2 + $0x8] sm:$0xff]
    %v2237 = vld [vmem:[%s2 + $0x10] sm:$0xff]
    %v2238 = vld [vmem:[%s2 + $0x18] sm:$0xff]
    %v2239 = vld [vmem:[%s2 + $0x20] sm:$0xff]
    %v2240 = vld [vmem:[%s2 + $0x28] sm:$0xff]
    %v2241 = vld [vmem:[%s2 + $0x30] sm:$0xff]
    %v2242 = vld [vmem:[%s2 + $0x38] sm:$0xff]
    %v2243 = vlaneseq
    %v2244 = vshrl.u32 %v2243, 7
    %v2245 = vsub.s32 0, %v2244
    %v2246 = vrot.slane %v35, %v2245
    %2248 = vrot.lane.b32.xlu0 %v2234, 64
    %v2249 = vpop.permute.xlu0 %2248
    %v2250 = vsel %vm175, %v2249, 0
    %2252 = vmatprep.subr.mxu0 0.0
    %2253 = vmatpush1.msra.mxu0 %v2235
    %2254 = vmatprep.subr.mxu0 0.0
    %2255 = vmatpush1.msra.mxu0 %v2236
    %2256 = vmatprep.subr.mxu0 0.0
    %2257 = vmatpush1.msra.mxu0 %v2237
    %2258 = vmatprep.subr.mxu0 0.0
    %2259 = vmatpush1.msra.mxu0 %v2238
    %2260 = vmatprep.subr.mxu0 0.0
    %2261 = vmatpush1.msra.mxu0 %v2239
    %2262 = vmatprep.subr.mxu0 0.0
    %2263 = vmatpush1.msra.mxu0 %v2240
    %2264 = vmatprep.subr.mxu0 0.0
    %2265 = vmatpush1.msra.mxu0 %v2241
    %2266 = vmatprep.subr.mxu0 0.0
    %2267 = vmatpush1.msra.mxu0 %v2242
    %2268 = vmatprep.subr.mxu0 0.0
    %2269 = vmatpush1.msra.mxu0 0.0
    %2270 = vmatprep.subr.mxu0 0.0
    %2271 = vmatpush1.msra.mxu0 0.0
    %2272 = vmatprep.subr.mxu0 0.0
    %2273 = vmatpush1.msra.mxu0 0.0
    %2274 = vmatprep.subr.mxu0 0.0
    %2275 = vmatpush1.msra.mxu0 0.0
    %2276 = vmatprep.subr.mxu0 0.0
    %2277 = vmatpush1.msra.mxu0 0.0
    %2278 = vmatprep.subr.mxu0 0.0
    %2279 = vmatpush1.msra.mxu0 0.0
    %2280 = vmatprep.subr.mxu0 0.0
    %2281 = vmatpush1.msra.mxu0 0.0
    %2282 = vmatprep.subr.mxu0 0.0
    %2283 = vmatpush1.msra.mxu0 0.0
    %2284 = vmatprep.subr.mxu0 0.0
    %2285 = vmatpush1.msra.mxu0 0.0
    %2286 = vmatprep.subr.mxu0 0.0
    %2287 = vmatpush1.msra.mxu0 0.0
    %2288 = vmatprep.subr.mxu0 0.0
    %2289 = vmatpush1.msra.mxu0 0.0
    %2290 = vmatprep.subr.mxu0 0.0
    %2291 = vmatpush1.msra.mxu0 0.0
    %2292 = vmatprep.subr.mxu0 0.0
    %2293 = vmatpush1.msra.mxu0 0.0
    %2294 = vmatprep.subr.mxu0 0.0
    %2295 = vmatpush1.msra.mxu0 0.0
    %2296 = vmatprep.subr.mxu0 0.0
    %2297 = vmatpush1.msra.mxu0 0.0
    %2298 = vmatprep.subr.mxu0 0.0
    %2299 = vmatpush1.msra.mxu0 0.0
    %2300 = vmatprep.subr.mxu0 0.0
    %2301 = vmatpush1.msra.mxu0 0.0
    %2302 = vmatprep.subr.mxu0 0.0
    %2303 = vmatpush1.msra.mxu0 0.0
    %2304 = vmatprep.subr.mxu0 0.0
    %2305 = vmatpush1.msra.mxu0 0.0
    %2306 = vmatprep.subr.mxu0 0.0
    %2307 = vmatpush1.msra.mxu0 0.0
    %2308 = vmatprep.subr.mxu0 0.0
    %2309 = vmatpush1.msra.mxu0 0.0
    %2310 = vmatprep.subr.mxu0 0.0
    %2311 = vmatpush1.msra.mxu0 0.0
    %2312 = vmatprep.subr.mxu0 0.0
    %2313 = vmatpush1.msra.mxu0 0.0
    %2314 = vmatprep.subr.mxu0 0.0
    %2315 = vmatpush1.msra.mxu0 0.0
    %2316 = vmatprep.mubr.f32.mxu0 0.0
    %2317 = vmatmul.mubr.f32.gmra.mrb[0].mxu0 %v2250
    %v2318 = vpop.f32.mrb[0].mxu0
    %v2319 = vadd.f32 %v2246, %v2318
    %v2320 = vpop.f32.mrb[0].mxu0
    %2321 = vdwg.mxu0
    %v2322 = vmax.f32 %v2319, 0.0
    %v2323 = vld [vmem:[%s2 + $0x40] sm:$0xff]
    %v2324 = vld [vmem:[%s2 + $0x48] sm:$0xff]
    %v2325 = vld [vmem:[%s2 + $0x50] sm:$0xff]
    %v2326 = vld [vmem:[%s2 + $0x58] sm:$0xff]
    %v2327 = vld [vmem:[%s2 + $0x60] sm:$0xff]
    %v2328 = vld [vmem:[%s2 + $0x68] sm:$0xff]
    %v2329 = vld [vmem:[%s2 + $0x70] sm:$0xff]
    %v2330 = vld [vmem:[%s2 + $0x78] sm:$0xff]
    %v2331 = vld [vmem:[%s2 + $0x80] sm:$0xff]
    %v2332 = vld [vmem:[%s2 + $0x88] sm:$0xff]
    %v2333 = vld [vmem:[%s2 + $0x90] sm:$0xff]
    %v2334 = vld [vmem:[%s2 + $0x98] sm:$0xff]
    %v2335 = vld [vmem:[%s2 + $0xa0] sm:$0xff]
    %v2336 = vld [vmem:[%s2 + $0xa8] sm:$0xff]
    %v2337 = vld [vmem:[%s2 + $0xb0] sm:$0xff]
    %v2338 = vld [vmem:[%s2 + $0xb8] sm:$0xff]
    %v2339 = vlaneseq
    %v2340 = vshrl.u32 %v2339, 7
    %v2341 = vsub.s32 0, %v2340
    %v2342 = vrot.slane %v36, %v2341
    %2343 = vmatprep.subr.mxu0 0.0
    %2344 = vmatpush1.msra.mxu0 %v2323
    %2345 = vmatprep.subr.mxu0 0.0
    %2346 = vmatpush1.msra.mxu0 %v2324
    %2347 = vmatprep.subr.mxu0 0.0
    %2348 = vmatpush1.msra.mxu0 %v2325
    %2349 = vmatprep.subr.mxu0 0.0
    %2350 = vmatpush1.msra.mxu0 %v2326
    %2351 = vmatprep.subr.mxu0 0.0
    %2352 = vmatpush1.msra.mxu0 %v2327
    %2353 = vmatprep.subr.mxu0 0.0
    %2354 = vmatpush1.msra.mxu0 %v2328
    %2355 = vmatprep.subr.mxu0 0.0
    %2356 = vmatpush1.msra.mxu0 %v2329
    %2357 = vmatprep.subr.mxu0 0.0
    %2358 = vmatpush1.msra.mxu0 %v2330
    %2359 = vmatprep.subr.mxu0 0.0
    %2360 = vmatpush1.msra.mxu0 %v2331
    %2361 = vmatprep.subr.mxu0 0.0
    %2362 = vmatpush1.msra.mxu0 %v2332
    %2363 = vmatprep.subr.mxu0 0.0
    %2364 = vmatpush1.msra.mxu0 %v2333
    %2365 = vmatprep.subr.mxu0 0.0
    %2366 = vmatpush1.msra.mxu0 %v2334
    %2367 = vmatprep.subr.mxu0 0.0
    %2368 = vmatpush1.msra.mxu0 %v2335
    %2369 = vmatprep.subr.mxu0 0.0
    %2370 = vmatpush1.msra.mxu0 %v2336
    %2371 = vmatprep.subr.mxu0 0.0
    %2372 = vmatpush1.msra.mxu0 %v2337
    %2373 = vmatprep.subr.mxu0 0.0
    %2374 = vmatpush1.msra.mxu0 %v2338
    %2375 = vmatprep.subr.mxu0 0.0
    %2376 = vmatpush1.msra.mxu0 0.0
    %2377 = vmatprep.subr.mxu0 0.0
    %2378 = vmatpush1.msra.mxu0 0.0
    %2379 = vmatprep.subr.mxu0 0.0
    %2380 = vmatpush1.msra.mxu0 0.0
    %2381 = vmatprep.subr.mxu0 0.0
    %2382 = vmatpush1.msra.mxu0 0.0
    %2383 = vmatprep.subr.mxu0 0.0
    %2384 = vmatpush1.msra.mxu0 0.0
    %2385 = vmatprep.subr.mxu0 0.0
    %2386 = vmatpush1.msra.mxu0 0.0
    %2387 = vmatprep.subr.mxu0 0.0
    %2388 = vmatpush1.msra.mxu0 0.0
    %2389 = vmatprep.subr.mxu0 0.0
    %2390 = vmatpush1.msra.mxu0 0.0
    %2391 = vmatprep.subr.mxu0 0.0
    %2392 = vmatpush1.msra.mxu0 0.0
    %2393 = vmatprep.subr.mxu0 0.0
    %2394 = vmatpush1.msra.mxu0 0.0
    %2395 = vmatprep.subr.mxu0 0.0
    %2396 = vmatpush1.msra.mxu0 0.0
    %2397 = vmatprep.subr.mxu0 0.0
    %2398 = vmatpush1.msra.mxu0 0.0
    %2399 = vmatprep.subr.mxu0 0.0
    %2400 = vmatpush1.msra.mxu0 0.0
    %2401 = vmatprep.subr.mxu0 0.0
    %2402 = vmatpush1.msra.mxu0 0.0
    %2403 = vmatprep.subr.mxu0 0.0
    %2404 = vmatpush1.msra.mxu0 0.0
    %2405 = vmatprep.subr.mxu0 0.0
    %2406 = vmatpush1.msra.mxu0 0.0
    %2407 = vmatprep.mubr.f32.mxu0 0.0
    %2408 = vmatmul.mubr.f32.gmra.mrb[0].mxu0 %v2322
    %v2409 = vpop.f32.mrb[0].mxu0
    %v2410 = vadd.f32 %v2342, %v2409
    %v2411 = vpop.f32.mrb[0].mxu0
    %2412 = vdwg.mxu0
    %v2413 = vxor.u32 %v2410, 2147483648
    %v2414 = vmul.f32 %v2413, 1.442695
    %v2415 = vpow.pop %v2414
    %v2416 = vadd.f32 %v2415, 1.0
    %v2417 = vrcp.pop %v2416
    %v2418 = vmul.f32 1.0, %v2417
    %2419 = vst [vmem:[#allocation6] sm:$0x3] %v2418
    // Predicated region
    $region22: #{lstm_model_forward.1} parent=1 // pred_check
      _
    $region23: #{lstm_model_forward.1} parent=1 // pred_check_branch
      %2421 = sbr.rel (0) target = $region25
    $region24: #{lstm_model_forward.1} parent=1 // pred_region
      %s2423 = ssub.s32 32, 32
      %2424 = vsyncadd [#allocation5], %s2423
      %s2426 = sshll.u32 [#allocation6], 4
      %s2427 = int_to_ptr.vmem [resolvable:$true] %s2426
      %2429 = dma.vmem_to_hbm [thread:$0]  %s2427, 32, %s4, [#allocation5]
    $region25: #{lstm_model_forward.1} parent=1 // pred_fallthru
      _
    // Predicated region
    $region26: #{lstm_model_forward.1} parent=1 // pred_check
      _
    $region27: #{lstm_model_forward.1} parent=1 // pred_check_branch
      %2431 = sbr.rel (0) target = $region29
    $region28: #{lstm_model_forward.1} parent=1 // pred_region
      %2432 = dma.done [#allocation5], 32
    $region29: #{lstm_model_forward.1} parent=1 // pred_fallthru
      _
    %2433 = vsyncpa [#allocation4], 1
    %2434 = vsyncpa [#allocation5], 1

</llo_original>
